<compile_context>
chip_gen: v6e
topology: v6e:2x2x1
jax: 0.10.0
libtpu: 0.0.40
codegen_flags: <defaults>
</compile_context>

<pallas_src>
import functools

import jax
import jax.numpy as jnp
from jax import lax
from jax.experimental import pallas as pl
from jax.experimental.pallas import tpu as pltpu

_HIGH = lax.Precision.HIGHEST  # only used by the pure-JAX reference

# ConvTranspose2d(k=4, s=2, p=1): output row 2j+ry gets contributions from input row
# j+dy with kernel tap ky, for (dy, ky) in _DECONV_PAIRS[ry] (same for columns/rx).
_DECONV_PAIRS = {0: ((0, 1), (-1, 3)), 1: ((0, 2), (1, 0))}


def _build_deconv_pair_weights(wd_t):
    """(ky, kx, Ci, Co) deconv taps -> (2, 2, 3, Ci, 2*Co) lane-packed matrices.

    Index [ry, t, dx+1] maps a y2 tap at row offset _DECONV_PAIRS[ry][t][0] and
    column offset dx to the (rx=0 | rx=1) lane-packed output pair; the rx half is
    zero when that column offset does not feed rx.
    """
    ci, co = wd_t.shape[2], wd_t.shape[3]
    zero = jnp.zeros((ci, co), wd_t.dtype)
    ry_blocks = []
    for ry in (0, 1):
        tap_blocks = []
        for (_dy, ky) in _DECONV_PAIRS[ry]:
            dx_blocks = []
            for dx in (-1, 0, 1):
                halves = []
                for rx in (0, 1):
                    kx = dict(_DECONV_PAIRS[rx]).get(dx)
                    halves.append(zero if kx is None else wd_t[ky, kx])
                dx_blocks.append(jnp.concatenate(halves, axis=1))   # (Ci, 2*Co)
            tap_blocks.append(jnp.stack(dx_blocks, axis=0))          # (3, Ci, 2*Co)
        ry_blocks.append(jnp.stack(tap_blocks, axis=0))              # (2, 3, Ci, 2*Co)
    return jnp.stack(ry_blocks, axis=0)                              # (2, 2, 3, Ci, 2*Co)


def _pick_vmem_limit():
    # v7x has 64 MiB VMEM per TensorCore (vs 128 MiB on v5e/v6e) -> leave headroom.
    try:
        kind = jax.devices()[0].device_kind.lower()
    except Exception:  # pragma: no cover
        kind = ""
    if "v7" in kind:
        return 48 * 1024 * 1024
    return 96 * 1024 * 1024


def _make_fused_kernel(H, W, BH, Cu, Cs, Cin, C3, Cd):
    S1 = (BH + 4) * W   # y1 rows: band + 2-row halo above and below (flattened)
    S2 = (BH + 2) * W   # y2 rows: band + 1-row halo above and below
    S3 = BH * W         # output rows of the band (pre-upsampling)

    def kernel(upm_ref, upt_ref, upb_ref, scm_ref, sct_ref, scb_ref,
               w1u_ref, w1s_ref, b1_ref, w3_ref, b3_ref, wp_ref, bp_ref,
               o_ref, y1s_ref):
        r0 = pl.program_id(1) * BH           # first image row handled by this band

        # ---- stage 1: fused channel-concat + 1x1 conv + ReLU into VMEM scratch ---
        def conv1(u, s):                     # u:(R,Cu) bf16, s:(R,Cs) bf16 -> (R,Cin) f32
            a = jnp.dot(u, w1u_ref[...], preferred_element_type=jnp.float32)
            a = a + jnp.dot(s, w1s_ref[...], preferred_element_type=jnp.float32)
            return jnp.maximum(a + b1_ref[...], 0.0)

        # 2-row halos above/below the band; rows outside the image are zeroed (the
        # halo DMA is index-clamped, so their content is irrelevant once masked).
        ih = lax.broadcasted_iota(jnp.int32, (2 * W, 1), 0)
        top = jnp.where(ih >= (2 - r0) * W, conv1(upt_ref[0, 0], sct_ref[0, 0]), 0.0)
        bot = jnp.where(ih < (H - r0 - BH) * W, conv1(upb_ref[0, 0], scb_ref[0, 0]), 0.0)
        y1s_ref[pl.ds(0, 2 * W), :] = top
        y1s_ref[pl.ds(2 * W, S3), :] = conv1(upm_ref[0], scm_ref[0])
        y1s_ref[pl.ds(2 * W + S3, 2 * W), :] = bot

        # One pltpu.roll per column offset dx (column-edge masks computed in-kernel)
        # so every per-tap slice below starts at a multiple of W -> free views.
        def dx_sources(y, S):
            col = lax.broadcasted_iota(jnp.int32, (S, 1), 0) % W
            plus = pltpu.roll(jnp.where(col == 0, 0.0, y), S - 1, axis=0)      # reads +1
            minus = pltpu.roll(jnp.where(col == W - 1, 0.0, y), 1, axis=0)     # reads -1
            return {-1: minus.astype(jnp.bfloat16),
                    0: y.astype(jnp.bfloat16),
                    1: plus.astype(jnp.bfloat16)}

        # ---- stage 2: 3x3 conv + ReLU on image rows [r0-1, r0+BH+1) --------------
        src1 = dx_sources(y1s_ref[...], S1)
        acc2 = jnp.zeros((S2, C3), jnp.float32) + b3_ref[...]
        for dy in (-1, 0, 1):
            base = (1 + dy) * W
            for dx in (-1, 0, 1):
                acc2 = acc2 + jnp.dot(src1[dx][base:base + S2, :],
                                      w3_ref[1 + dy, 1 + dx],
                                      preferred_element_type=jnp.float32)
        i2 = lax.broadcasted_iota(jnp.int32, (S2, 1), 0)
        y2 = jnp.where((i2 >= (1 - r0) * W) & (i2 < (H + 1 - r0) * W),
                       jnp.maximum(acc2, 0.0), 0.0)

        # ---- stage 3: 4x4/s2 transposed conv, written sub-pixel interleaved ------
        # rx sub-pixel packed into the lane axis (2*Cd wide), ry into output rows;
        # each ry half is stored directly into the output ref.
        src2 = dx_sources(y2, S2)
        for ry in (0, 1):
            acc = jnp.zeros((S3, 2 * Cd), jnp.float32) + bp_ref[...]
            for t, (dy, _ky) in enumerate(_DECONV_PAIRS[ry]):
                base = (1 + dy) * W
                for dx in (-1, 0, 1):
                    acc = acc + jnp.dot(src2[dx][base:base + S3, :],
                                        wp_ref[ry, t, dx + 1],
                                        preferred_element_type=jnp.float32)
            o_ref[0, :, ry, :, :] = acc.reshape(BH, W, 2 * Cd).astype(o_ref.dtype)

    return kernel


def upblok_forward(upsampled_nchw, shortcut_nchw, params, band_rows=None,
                   out_dtype=jnp.bfloat16):
    n, cu, h, w = upsampled_nchw.shape
    cs = shortcut_nchw.shape[1]
    cin = cu + cs
    c3 = params["w3"].shape[0]
    cd = params["wd"].shape[1]

    if band_rows is None:
        band_rows = h                       # fall back to one band per image
        for cand in (h // 4, h // 2):       # prefer >=2 bands (feeds both v7x cores)
            if cand >= 2 and cand % 2 == 0 and h % cand == 0:
                band_rows = cand
                break
    bh = band_rows
    assert h % bh == 0 and bh % 2 == 0, "band_rows must be even and divide H"
    assert w % 8 == 0, "W must be a multiple of 8 (sublane tiling)"
    nb = h // bh
    h2 = h // 2
    half_bh = bh // 2

    # NCHW -> NHWC, bf16 operands; the channel concat is fused into the kernel.
    up = jnp.transpose(upsampled_nchw, (0, 2, 3, 1)).astype(jnp.bfloat16)
    sc = jnp.transpose(shortcut_nchw, (0, 2, 3, 1)).astype(jnp.bfloat16)
    up_flat = up.reshape(n, h * w, cu)
    sc_flat = sc.reshape(n, h * w, cs)
    up_rows2 = up.reshape(n, h2, 2 * w, cu)     # free 2-row-pair views for the halos
    sc_rows2 = sc.reshape(n, h2, 2 * w, cs)

    # weights in matmul layout: bf16 matmul operands, f32 biases.
    w1m = jnp.transpose(params["w1"][:, :, 0, 0], (1, 0))             # (Cin, Cin)
    w1u = w1m[:cu].astype(jnp.bfloat16)                               # up half
    w1s = w1m[cu:].astype(jnp.bfloat16)                               # shortcut half
    b1 = params["b1"].reshape(1, cin).astype(jnp.float32)
    w3m = jnp.transpose(params["w3"], (2, 3, 1, 0)).astype(jnp.bfloat16)  # (3,3,Cin,C3)
    b3 = params["b3"].reshape(1, c3).astype(jnp.float32)
    wd_t = jnp.transpose(params["wd"], (2, 3, 0, 1))                  # (ky, kx, Ci, Co)
    wpair = _build_deconv_pair_weights(wd_t).astype(jnp.bfloat16)     # (2,2,3,C3,2*Cd)
    bpair = jnp.concatenate([params["bd"], params["bd"]]).reshape(1, 2 * cd)
    bpair = bpair.astype(jnp.float32)

    kernel = _make_fused_kernel(h, w, bh, cu, cs, cin, c3, cd)

    def const_spec(shape):
        nd = len(shape)
        idx = lambda ni, bi, _nd=nd: (0,) * _nd
        try:   # single-buffer constant-index inputs (reclaims duplicate VMEM buffers)
            return pl.BlockSpec(shape, idx, pipeline_mode=pl.Buffered(1))
        except TypeError:
            return pl.BlockSpec(shape, idx)

    def top_halo_map(ni, bi):      # image rows [r0-2, r0) (clamped; masked in-kernel)
        return (ni, jnp.maximum(bi * half_bh - 1, 0), 0, 0)

    def bot_halo_map(ni, bi):      # image rows [r0+BH, r0+BH+2) (clamped; masked)
        return (ni, jnp.minimum((bi + 1) * half_bh, h2 - 1), 0, 0)

    out = pl.pallas_call(
        kernel,
        out_shape=jax.ShapeDtypeStruct((n, h, 2, w, 2 * cd), out_dtype),
        grid=(n, nb),
        in_specs=[
            pl.BlockSpec((1, bh * w, cu), lambda ni, bi: (ni, bi, 0)),
            pl.BlockSpec((1, 1, 2 * w, cu), top_halo_map),
            pl.BlockSpec((1, 1, 2 * w, cu), bot_halo_map),
            pl.BlockSpec((1, bh * w, cs), lambda ni, bi: (ni, bi, 0)),
            pl.BlockSpec((1, 1, 2 * w, cs), top_halo_map),
            pl.BlockSpec((1, 1, 2 * w, cs), bot_halo_map),
            const_spec((cu, cin)),
            const_spec((cs, cin)),
            const_spec((1, cin)),
            const_spec((3, 3, cin, c3)),
            const_spec((1, c3)),
            const_spec((2, 2, 3, c3, 2 * cd)),
            const_spec((1, 2 * cd)),
        ],
        out_specs=pl.BlockSpec((1, bh, 2, w, 2 * cd),
                               lambda ni, bi: (ni, bi, 0, 0, 0)),
        scratch_shapes=[pltpu.VMEM(((bh + 4) * w, cin), jnp.float32)],
        compiler_params=pltpu.CompilerParams(
            dimension_semantics=("parallel", "parallel"),
            vmem_limit_bytes=_pick_vmem_limit()),
    )(up_flat, up_rows2, up_rows2, sc_flat, sc_rows2, sc_rows2,
      w1u, w1s, b1, w3m, b3, wpair, bpair)

    # (N, H, 2, W, 2*Cd) is exactly the row/col sub-pixel interleave of the
    # (N, 2H, 2W, Cd) output in row-major order -> free reshape, then NCHW.
    out = out.reshape(n, 2 * h, 2 * w, cd)
    return jnp.transpose(out, (0, 3, 1, 2))


# ------------------------------------------------- pure-JAX reference (ground truth)
def _ref_conv2d(x, w, b, padding):
    y = lax.conv_general_dilated(x, w, (1, 1), ((padding, padding),) * 2,
                                 dimension_numbers=("NCHW", "OIHW", "NCHW"),
                                 precision=_HIGH)
    return y + b[None, :, None, None]


def _ref_deconv_k4s2p1(x, w, b):
    wt = jnp.transpose(jnp.flip(w, (2, 3)), (1, 0, 2, 3))
    y = lax.conv_general_dilated(x, wt, (1, 1), ((2, 2), (2, 2)),
                                 lhs_dilation=(2, 2),
                                 dimension_numbers=("NCHW", "OIHW", "NCHW"),
                                 precision=_HIGH)
    return y + b[None, :, None, None]


def upblok_reference(up, sc, params):
    x = jnp.concatenate([up, sc], axis=1)
    x = jax.nn.relu(_ref_conv2d(x, params["w1"], params["b1"], 0))
    x = jax.nn.relu(_ref_conv2d(x, params["w3"], params["b3"], 1))
    return _ref_deconv_k4s2p1(x, params["wd"], params["bd"])


if __name__ == "__main__":
    key = jax.random.PRNGKey(0)
    ks = jax.random.split(key, 8)
    N, CU, CS, H, W = 2, 2, 2, 16, 16           # in_channels = CU + CS = 4
    CIN, COUT = CU + CS, 4                       # out_channels = 4

    upsampled = jax.random.normal(ks[0], (N, CU, H, W), jnp.float32)
    shortcut = jax.random.normal(ks[1], (N, CS, H, W), jnp.float32)

    params = {
        "w1": 0.3 * jax.random.normal(ks[2], (CIN, CIN, 1, 1), jnp.float32),
        "b1": 0.1 * jax.random.normal(ks[3], (CIN,), jnp.float32),
        "w3": 0.2 * jax.random.normal(ks[4], (COUT, CIN, 3, 3), jnp.float32),
        "b3": 0.1 * jax.random.normal(ks[5], (COUT,), jnp.float32),
        "wd": 0.2 * jax.random.normal(ks[6], (COUT, COUT, 4, 4), jnp.float32),
        "bd": 0.1 * jax.random.normal(ks[7], (COUT,), jnp.float32),
    }

    # band_rows=4 -> 4 row-bands per image (exercises inter-band halos and the
    # clamped halo index_maps at both image edges); for real EfficientDet shapes
    # pick the largest even band whose working set fits the per-generation VMEM.
    fwd = jax.jit(functools.partial(upblok_forward, band_rows=4))
    out = jax.block_until_ready(fwd(upsampled, shortcut, params))

    ref = upblok_reference(upsampled, shortcut, params)
    assert out.shape == (N, COUT, 2 * H, 2 * W), out.shape
    out_f32 = out.astype(jnp.float32)
    err = float(jnp.max(jnp.abs(out_f32 - ref)))
    # bf16 MXU operands (same rounding as default MXU precision) + bf16 output
    # vs. a HIGHEST-precision f32 reference -> loose comparison.
    assert jnp.allclose(out_f32, ref, rtol=3e-2, atol=8e-2), err
    print("KERNEL_OK")
</pallas_src>

<mosaic_0001>
module attributes {stable_mosaic.version = 11 : i64} {
  func.func @kernel(%arg0: i32, %arg1: i32, %arg2: memref<1x64x2xbf16, #tpu.memory_space<vmem>>, %arg3: memref<1x1x32x2xbf16, #tpu.memory_space<vmem>>, %arg4: memref<1x1x32x2xbf16, #tpu.memory_space<vmem>>, %arg5: memref<1x64x2xbf16, #tpu.memory_space<vmem>>, %arg6: memref<1x1x32x2xbf16, #tpu.memory_space<vmem>>, %arg7: memref<1x1x32x2xbf16, #tpu.memory_space<vmem>>, %arg8: memref<2x4xbf16, #tpu.memory_space<vmem>>, %arg9: memref<2x4xbf16, #tpu.memory_space<vmem>>, %arg10: memref<1x4xf32, #tpu.memory_space<vmem>>, %arg11: memref<3x3x4x4xbf16, #tpu.memory_space<vmem>>, %arg12: memref<1x4xf32, #tpu.memory_space<vmem>>, %arg13: memref<2x2x3x4x8xbf16, #tpu.memory_space<vmem>>, %arg14: memref<1x8xf32, #tpu.memory_space<vmem>>, %arg15: memref<1x4x2x16x8xbf16, #tpu.memory_space<vmem>>, %arg16: memref<128x4xf32, #tpu.memory_space<vmem>>) attributes {dimension_semantics = [#tpu.dimension_semantics<parallel>, #tpu.dimension_semantics<parallel>], iteration_bounds = array<i64: 2, 4>, scalar_prefetch = 0 : i64, scratch_operands = 1 : i64, tpu.core_type = #tpu.core_type<tc>, window_params = [{transform_indices = @transform_0, window_bounds = array<i64: 1, 64, 2>}, {transform_indices = @transform_1, window_bounds = array<i64: 1, 1, 32, 2>}, {transform_indices = @transform_2, window_bounds = array<i64: 1, 1, 32, 2>}, {transform_indices = @transform_3, window_bounds = array<i64: 1, 64, 2>}, {transform_indices = @transform_4, window_bounds = array<i64: 1, 1, 32, 2>}, {transform_indices = @transform_5, window_bounds = array<i64: 1, 1, 32, 2>}, {pipeline_mode = #tpu.pipeline_mode<synchronous>, transform_indices = @transform_6, window_bounds = array<i64: 2, 4>}, {pipeline_mode = #tpu.pipeline_mode<synchronous>, transform_indices = @transform_7, window_bounds = array<i64: 2, 4>}, {pipeline_mode = #tpu.pipeline_mode<synchronous>, transform_indices = @transform_8, window_bounds = array<i64: 1, 4>}, {pipeline_mode = #tpu.pipeline_mode<synchronous>, transform_indices = @transform_9, window_bounds = array<i64: 3, 3, 4, 4>}, {pipeline_mode = #tpu.pipeline_mode<synchronous>, transform_indices = @transform_10, window_bounds = array<i64: 1, 4>}, {pipeline_mode = #tpu.pipeline_mode<synchronous>, transform_indices = @transform_11, window_bounds = array<i64: 2, 2, 3, 4, 8>}, {pipeline_mode = #tpu.pipeline_mode<synchronous>, transform_indices = @transform_12, window_bounds = array<i64: 1, 8>}, {transform_indices = @transform_13, window_bounds = array<i64: 1, 4, 2, 16, 8>}]} {
    %c4_i32 = arith.constant 4 : i32
    %0 = arith.muli %arg1, %c4_i32 : i32
    %1 = tpu.iota {dimensions = array<i32: 0>} : vector<32x1xi32>
    %c2_i32 = arith.constant 2 : i32
    %2 = arith.subi %c2_i32, %0 : i32
    %c16_i32 = arith.constant 16 : i32
    %3 = arith.muli %2, %c16_i32 : i32
    %4 = vector.broadcast %3 : i32 to vector<32x1xi32>
    %5 = arith.cmpi sge, %1, %4 : vector<32x1xi32>
    %c0 = arith.constant 0 : index
    %c0_0 = arith.constant 0 : index
    %c0_1 = arith.constant 0 : index
    %c0_2 = arith.constant 0 : index
    %6 = vector.load %arg3[%c0, %c0_0, %c0_1, %c0_2] : memref<1x1x32x2xbf16, #tpu.memory_space<vmem>>, vector<1x1x32x2xbf16>
    %7 = vector.shape_cast %6 : vector<1x1x32x2xbf16> to vector<32x2xbf16>
    %c0_3 = arith.constant 0 : index
    %c0_4 = arith.constant 0 : index
    %c0_5 = arith.constant 0 : index
    %c0_6 = arith.constant 0 : index
    %8 = vector.load %arg6[%c0_3, %c0_4, %c0_5, %c0_6] : memref<1x1x32x2xbf16, #tpu.memory_space<vmem>>, vector<1x1x32x2xbf16>
    %9 = vector.shape_cast %8 : vector<1x1x32x2xbf16> to vector<32x2xbf16>
    %c0_7 = arith.constant 0 : index
    %c0_8 = arith.constant 0 : index
    %10 = vector.load %arg8[%c0_7, %c0_8] : memref<2x4xbf16, #tpu.memory_space<vmem>>, vector<2x4xbf16>
    %cst = arith.constant dense<0.000000e+00> : vector<32x4xf32>
    %11 = tpu.matmul %7, %10, %cst {dimension_numbers = #tpu.dot_dimension_numbers<[1], [0], [0], [1], [0, 0, 1, 1], [], []>} : vector<32x2xbf16>, vector<2x4xbf16>, vector<32x4xf32> -> vector<32x4xf32>
    %c0_9 = arith.constant 0 : index
    %c0_10 = arith.constant 0 : index
    %12 = vector.load %arg9[%c0_9, %c0_10] : memref<2x4xbf16, #tpu.memory_space<vmem>>, vector<2x4xbf16>
    %cst_11 = arith.constant dense<0.000000e+00> : vector<32x4xf32>
    %13 = tpu.matmul %9, %12, %cst_11 {dimension_numbers = #tpu.dot_dimension_numbers<[1], [0], [0], [1], [0, 0, 1, 1], [], []>} : vector<32x2xbf16>, vector<2x4xbf16>, vector<32x4xf32> -> vector<32x4xf32>
    %14 = arith.addf %11, %13 : vector<32x4xf32>
    %c0_12 = arith.constant 0 : index
    %c0_13 = arith.constant 0 : index
    %15 = vector.load %arg10[%c0_12, %c0_13] : memref<1x4xf32, #tpu.memory_space<vmem>>, vector<1x4xf32>
    %16 = vector.broadcast %15 : vector<1x4xf32> to vector<32x4xf32>
    %17 = arith.addf %14, %16 : vector<32x4xf32>
    %cst_14 = arith.constant 0.000000e+00 : f32
    %18 = vector.broadcast %cst_14 : f32 to vector<32x4xf32>
    %19 = arith.maximumf %17, %18 : vector<32x4xf32>
    %cst_15 = arith.constant 0.000000e+00 : f32
    %20 = vector.shape_cast %5 : vector<32x1xi1> to vector<32x1xi1>
    %21 = vector.broadcast %20 : vector<32x1xi1> to vector<32x4xi1>
    %22 = vector.broadcast %cst_15 : f32 to vector<32x4xf32>
    %23 = arith.select %21, %19, %22 : vector<32x4xi1>, vector<32x4xf32>
    %c16_i32_16 = arith.constant 16 : i32
    %24 = arith.subi %c16_i32_16, %0 : i32
    %c4_i32_17 = arith.constant 4 : i32
    %25 = arith.subi %24, %c4_i32_17 : i32
    %c16_i32_18 = arith.constant 16 : i32
    %26 = arith.muli %25, %c16_i32_18 : i32
    %27 = vector.broadcast %26 : i32 to vector<32x1xi32>
    %28 = arith.cmpi slt, %1, %27 : vector<32x1xi32>
    %c0_19 = arith.constant 0 : index
    %c0_20 = arith.constant 0 : index
    %c0_21 = arith.constant 0 : index
    %c0_22 = arith.constant 0 : index
    %29 = vector.load %arg4[%c0_19, %c0_20, %c0_21, %c0_22] : memref<1x1x32x2xbf16, #tpu.memory_space<vmem>>, vector<1x1x32x2xbf16>
    %30 = vector.shape_cast %29 : vector<1x1x32x2xbf16> to vector<32x2xbf16>
    %c0_23 = arith.constant 0 : index
    %c0_24 = arith.constant 0 : index
    %c0_25 = arith.constant 0 : index
    %c0_26 = arith.constant 0 : index
    %31 = vector.load %arg7[%c0_23, %c0_24, %c0_25, %c0_26] : memref<1x1x32x2xbf16, #tpu.memory_space<vmem>>, vector<1x1x32x2xbf16>
    %32 = vector.shape_cast %31 : vector<1x1x32x2xbf16> to vector<32x2xbf16>
    %c0_27 = arith.constant 0 : index
    %c0_28 = arith.constant 0 : index
    %33 = vector.load %arg8[%c0_27, %c0_28] : memref<2x4xbf16, #tpu.memory_space<vmem>>, vector<2x4xbf16>
    %cst_29 = arith.constant dense<0.000000e+00> : vector<32x4xf32>
    %34 = tpu.matmul %30, %33, %cst_29 {dimension_numbers = #tpu.dot_dimension_numbers<[1], [0], [0], [1], [0, 0, 1, 1], [], []>} : vector<32x2xbf16>, vector<2x4xbf16>, vector<32x4xf32> -> vector<32x4xf32>
    %c0_30 = arith.constant 0 : index
    %c0_31 = arith.constant 0 : index
    %35 = vector.load %arg9[%c0_30, %c0_31] : memref<2x4xbf16, #tpu.memory_space<vmem>>, vector<2x4xbf16>
    %cst_32 = arith.constant dense<0.000000e+00> : vector<32x4xf32>
    %36 = tpu.matmul %32, %35, %cst_32 {dimension_numbers = #tpu.dot_dimension_numbers<[1], [0], [0], [1], [0, 0, 1, 1], [], []>} : vector<32x2xbf16>, vector<2x4xbf16>, vector<32x4xf32> -> vector<32x4xf32>
    %37 = arith.addf %34, %36 : vector<32x4xf32>
    %c0_33 = arith.constant 0 : index
    %c0_34 = arith.constant 0 : index
    %38 = vector.load %arg10[%c0_33, %c0_34] : memref<1x4xf32, #tpu.memory_space<vmem>>, vector<1x4xf32>
    %39 = vector.broadcast %38 : vector<1x4xf32> to vector<32x4xf32>
    %40 = arith.addf %37, %39 : vector<32x4xf32>
    %cst_35 = arith.constant 0.000000e+00 : f32
    %41 = vector.broadcast %cst_35 : f32 to vector<32x4xf32>
    %42 = arith.maximumf %40, %41 : vector<32x4xf32>
    %cst_36 = arith.constant 0.000000e+00 : f32
    %43 = vector.shape_cast %28 : vector<32x1xi1> to vector<32x1xi1>
    %44 = vector.broadcast %43 : vector<32x1xi1> to vector<32x4xi1>
    %45 = vector.broadcast %cst_36 : f32 to vector<32x4xf32>
    %46 = arith.select %44, %42, %45 : vector<32x4xi1>, vector<32x4xf32>
    %c0_37 = arith.constant 0 : index
    %c0_38 = arith.constant 0 : index
    %47 = vector.load %arg16[%c0_37, %c0_38] : memref<128x4xf32, #tpu.memory_space<vmem>>, vector<32x4xf32>
    tpu.vector_store %arg16[%c0_37, %c0_38], %23 {strides = array<i32>} : memref<128x4xf32, #tpu.memory_space<vmem>>, vector<32x4xf32>,
    %c0_39 = arith.constant 0 : index
    %c0_40 = arith.constant 0 : index
    %c0_41 = arith.constant 0 : index
    %48 = vector.load %arg2[%c0_39, %c0_40, %c0_41] : memref<1x64x2xbf16, #tpu.memory_space<vmem>>, vector<1x64x2xbf16>
    %49 = vector.shape_cast %48 : vector<1x64x2xbf16> to vector<64x2xbf16>
    %c0_42 = arith.constant 0 : index
    %c0_43 = arith.constant 0 : index
    %c0_44 = arith.constant 0 : index
    %50 = vector.load %arg5[%c0_42, %c0_43, %c0_44] : memref<1x64x2xbf16, #tpu.memory_space<vmem>>, vector<1x64x2xbf16>
    %51 = vector.shape_cast %50 : vector<1x64x2xbf16> to vector<64x2xbf16>
    %c0_45 = arith.constant 0 : index
    %c0_46 = arith.constant 0 : index
    %52 = vector.load %arg8[%c0_45, %c0_46] : memref<2x4xbf16, #tpu.memory_space<vmem>>, vector<2x4xbf16>
    %cst_47 = arith.constant dense<0.000000e+00> : vector<64x4xf32>
    %53 = tpu.matmul %49, %52, %cst_47 {dimension_numbers = #tpu.dot_dimension_numbers<[1], [0], [0], [1], [0, 0, 1, 1], [], []>} : vector<64x2xbf16>, vector<2x4xbf16>, vector<64x4xf32> -> vector<64x4xf32>
    %c0_48 = arith.constant 0 : index
    %c0_49 = arith.constant 0 : index
    %54 = vector.load %arg9[%c0_48, %c0_49] : memref<2x4xbf16, #tpu.memory_space<vmem>>, vector<2x4xbf16>
    %cst_50 = arith.constant dense<0.000000e+00> : vector<64x4xf32>
    %55 = tpu.matmul %51, %54, %cst_50 {dimension_numbers = #tpu.dot_dimension_numbers<[1], [0], [0], [1], [0, 0, 1, 1], [], []>} : vector<64x2xbf16>, vector<2x4xbf16>, vector<64x4xf32> -> vector<64x4xf32>
    %56 = arith.addf %53, %55 : vector<64x4xf32>
    %c0_51 = arith.constant 0 : index
    %c0_52 = arith.constant 0 : index
    %57 = vector.load %arg10[%c0_51, %c0_52] : memref<1x4xf32, #tpu.memory_space<vmem>>, vector<1x4xf32>
    %58 = vector.broadcast %57 : vector<1x4xf32> to vector<64x4xf32>
    %59 = arith.addf %56, %58 : vector<64x4xf32>
    %cst_53 = arith.constant 0.000000e+00 : f32
    %60 = vector.broadcast %cst_53 : f32 to vector<64x4xf32>
    %61 = arith.maximumf %59, %60 : vector<64x4xf32>
    %c32 = arith.constant 32 : index
    %c0_54 = arith.constant 0 : index
    %62 = vector.load %arg16[%c32, %c0_54] : memref<128x4xf32, #tpu.memory_space<vmem>>, vector<64x4xf32>
    tpu.vector_store %arg16[%c32, %c0_54], %61 {strides = array<i32>} : memref<128x4xf32, #tpu.memory_space<vmem>>, vector<64x4xf32>,
    %c96 = arith.constant 96 : index
    %c0_55 = arith.constant 0 : index
    %63 = vector.load %arg16[%c96, %c0_55] : memref<128x4xf32, #tpu.memory_space<vmem>>, vector<32x4xf32>
    tpu.vector_store %arg16[%c96, %c0_55], %46 {strides = array<i32>} : memref<128x4xf32, #tpu.memory_space<vmem>>, vector<32x4xf32>,
    %c0_56 = arith.constant 0 : index
    %c0_57 = arith.constant 0 : index
    %64 = vector.load %arg16[%c0_56, %c0_57] : memref<128x4xf32, #tpu.memory_space<vmem>>, vector<128x4xf32>
    %65 = tpu.iota {dimensions = array<i32: 0>} : vector<128x1xi32>
    %c16_i32_58 = arith.constant 16 : i32
    %c0_i32 = arith.constant 0 : i32
    %66 = arith.cmpi eq, %c16_i32_58, %c0_i32 : i32
    %c1_i32 = arith.constant 1 : i32
    %67 = arith.select %66, %c1_i32, %c16_i32_58 : i32
    %68 = vector.broadcast %67 : i32 to vector<128x1xi32>
    %69 = arith.remsi %65, %68 : vector<128x1xi32>
    %c0_i32_59 = arith.constant 0 : i32
    %70 = vector.broadcast %c0_i32_59 : i32 to vector<128x1xi32>
    %71 = arith.cmpi ne, %69, %70 : vector<128x1xi32>
    %c0_i32_60 = arith.constant 0 : i32
    %72 = vector.broadcast %c0_i32_60 : i32 to vector<128x1xi32>
    %73 = arith.cmpi slt, %69, %72 : vector<128x1xi32>
    %c0_i32_61 = arith.constant 0 : i32
    %74 = arith.cmpi slt, %67, %c0_i32_61 : i32
    %75 = vector.broadcast %74 : i1 to vector<128x1xi1>
    %76 = vector.broadcast %75 : vector<128x1xi1> to vector<128x1xi1>
    %77 = arith.xori %73, %76 : vector<128x1xi1>
    %78 = arith.andi %77, %71 : vector<128x1xi1>
    %79 = vector.broadcast %67 : i32 to vector<128x1xi32>
    %80 = arith.addi %69, %79 : vector<128x1xi32>
    %81 = arith.select %78, %80, %69 : vector<128x1xi1>, vector<128x1xi32>
    %c0_i32_62 = arith.constant 0 : i32
    %82 = vector.broadcast %c0_i32_62 : i32 to vector<128x1xi32>
    %83 = arith.cmpi eq, %81, %82 : vector<128x1xi32>
    %cst_63 = arith.constant 0.000000e+00 : f32
    %84 = vector.shape_cast %83 : vector<128x1xi1> to vector<128x1xi1>
    %85 = vector.broadcast %84 : vector<128x1xi1> to vector<128x4xi1>
    %86 = vector.broadcast %cst_63 : f32 to vector<128x4xf32>
    %87 = arith.select %85, %86, %64 : vector<128x4xi1>, vector<128x4xf32>
    %c127_i32 = arith.constant 127 : i32
    %88 = tpu.dynamic_rotate %87 by %c127_i32 dim 0 : vector<128x4xf32>, i32 -> vector<128x4xf32>
    %c15_i32 = arith.constant 15 : i32
    %89 = vector.broadcast %c15_i32 : i32 to vector<128x1xi32>
    %90 = arith.cmpi eq, %81, %89 : vector<128x1xi32>
    %cst_64 = arith.constant 0.000000e+00 : f32
    %91 = vector.shape_cast %90 : vector<128x1xi1> to vector<128x1xi1>
    %92 = vector.broadcast %91 : vector<128x1xi1> to vector<128x4xi1>
    %93 = vector.broadcast %cst_64 : f32 to vector<128x4xf32>
    %94 = arith.select %92, %93, %64 : vector<128x4xi1>, vector<128x4xf32>
    %c1_i32_65 = arith.constant 1 : i32
    %95 = tpu.dynamic_rotate %94 by %c1_i32_65 dim 0 : vector<128x4xf32>, i32 -> vector<128x4xf32>
    %96 = arith.truncf %95 : vector<128x4xf32> to vector<128x4xbf16>
    %97 = arith.truncf %64 : vector<128x4xf32> to vector<128x4xbf16>
    %98 = arith.truncf %88 : vector<128x4xf32> to vector<128x4xbf16>
    %cst_66 = arith.constant 0.000000e+00 : f32
    %99 = vector.broadcast %cst_66 : f32 to vector<96x4xf32>
    %c0_67 = arith.constant 0 : index
    %c0_68 = arith.constant 0 : index
    %100 = vector.load %arg12[%c0_67, %c0_68] : memref<1x4xf32, #tpu.memory_space<vmem>>, vector<1x4xf32>
    %101 = vector.broadcast %100 : vector<1x4xf32> to vector<96x4xf32>
    %102 = arith.addf %99, %101 : vector<96x4xf32>
    %103 = vector.extract_strided_slice %96 {offsets = [0, 0], sizes = [96, 4], strides = [1, 1]} : vector<128x4xbf16> to vector<96x4xbf16>
    %c0_69 = arith.constant 0 : index
    %c0_70 = arith.constant 0 : index
    %c0_71 = arith.constant 0 : index
    %c0_72 = arith.constant 0 : index
    %104 = vector.load %arg11[%c0_69, %c0_70, %c0_71, %c0_72] : memref<3x3x4x4xbf16, #tpu.memory_space<vmem>>, vector<1x1x4x4xbf16>
    %105 = vector.shape_cast %104 : vector<1x1x4x4xbf16> to vector<4x4xbf16>
    %cst_73 = arith.constant dense<0.000000e+00> : vector<96x4xf32>
    %106 = tpu.matmul %103, %105, %cst_73 {dimension_numbers = #tpu.dot_dimension_numbers<[1], [0], [0], [1], [0, 0, 1, 1], [], []>} : vector<96x4xbf16>, vector<4x4xbf16>, vector<96x4xf32> -> vector<96x4xf32>
    %107 = arith.addf %102, %106 : vector<96x4xf32>
    %108 = vector.extract_strided_slice %97 {offsets = [0, 0], sizes = [96, 4], strides = [1, 1]} : vector<128x4xbf16> to vector<96x4xbf16>
    %c0_74 = arith.constant 0 : index
    %c1 = arith.constant 1 : index
    %c0_75 = arith.constant 0 : index
    %c0_76 = arith.constant 0 : index
    %109 = vector.load %arg11[%c0_74, %c1, %c0_75, %c0_76] : memref<3x3x4x4xbf16, #tpu.memory_space<vmem>>, vector<1x1x4x4xbf16>
    %110 = vector.shape_cast %109 : vector<1x1x4x4xbf16> to vector<4x4xbf16>
    %cst_77 = arith.constant dense<0.000000e+00> : vector<96x4xf32>
    %111 = tpu.matmul %108, %110, %cst_77 {dimension_numbers = #tpu.dot_dimension_numbers<[1], [0], [0], [1], [0, 0, 1, 1], [], []>} : vector<96x4xbf16>, vector<4x4xbf16>, vector<96x4xf32> -> vector<96x4xf32>
    %112 = arith.addf %107, %111 : vector<96x4xf32>
    %113 = vector.extract_strided_slice %98 {offsets = [0, 0], sizes = [96, 4], strides = [1, 1]} : vector<128x4xbf16> to vector<96x4xbf16>
    %c0_78 = arith.constant 0 : index
    %c2 = arith.constant 2 : index
    %c0_79 = arith.constant 0 : index
    %c0_80 = arith.constant 0 : index
    %114 = vector.load %arg11[%c0_78, %c2, %c0_79, %c0_80] : memref<3x3x4x4xbf16, #tpu.memory_space<vmem>>, vector<1x1x4x4xbf16>
    %115 = vector.shape_cast %114 : vector<1x1x4x4xbf16> to vector<4x4xbf16>
    %cst_81 = arith.constant dense<0.000000e+00> : vector<96x4xf32>
    %116 = tpu.matmul %113, %115, %cst_81 {dimension_numbers = #tpu.dot_dimension_numbers<[1], [0], [0], [1], [0, 0, 1, 1], [], []>} : vector<96x4xbf16>, vector<4x4xbf16>, vector<96x4xf32> -> vector<96x4xf32>
    %117 = arith.addf %112, %116 : vector<96x4xf32>
    %118 = vector.extract_strided_slice %96 {offsets = [16, 0], sizes = [96, 4], strides = [1, 1]} : vector<128x4xbf16> to vector<96x4xbf16>
    %c1_82 = arith.constant 1 : index
    %c0_83 = arith.constant 0 : index
    %c0_84 = arith.constant 0 : index
    %c0_85 = arith.constant 0 : index
    %119 = vector.load %arg11[%c1_82, %c0_83, %c0_84, %c0_85] : memref<3x3x4x4xbf16, #tpu.memory_space<vmem>>, vector<1x1x4x4xbf16>
    %120 = vector.shape_cast %119 : vector<1x1x4x4xbf16> to vector<4x4xbf16>
    %cst_86 = arith.constant dense<0.000000e+00> : vector<96x4xf32>
    %121 = tpu.matmul %118, %120, %cst_86 {dimension_numbers = #tpu.dot_dimension_numbers<[1], [0], [0], [1], [0, 0, 1, 1], [], []>} : vector<96x4xbf16>, vector<4x4xbf16>, vector<96x4xf32> -> vector<96x4xf32>
    %122 = arith.addf %117, %121 : vector<96x4xf32>
    %123 = vector.extract_strided_slice %97 {offsets = [16, 0], sizes = [96, 4], strides = [1, 1]} : vector<128x4xbf16> to vector<96x4xbf16>
    %c1_87 = arith.constant 1 : index
    %c1_88 = arith.constant 1 : index
    %c0_89 = arith.constant 0 : index
    %c0_90 = arith.constant 0 : index
    %124 = vector.load %arg11[%c1_87, %c1_88, %c0_89, %c0_90] : memref<3x3x4x4xbf16, #tpu.memory_space<vmem>>, vector<1x1x4x4xbf16>
    %125 = vector.shape_cast %124 : vector<1x1x4x4xbf16> to vector<4x4xbf16>
    %cst_91 = arith.constant dense<0.000000e+00> : vector<96x4xf32>
    %126 = tpu.matmul %123, %125, %cst_91 {dimension_numbers = #tpu.dot_dimension_numbers<[1], [0], [0], [1], [0, 0, 1, 1], [], []>} : vector<96x4xbf16>, vector<4x4xbf16>, vector<96x4xf32> -> vector<96x4xf32>
    %127 = arith.addf %122, %126 : vector<96x4xf32>
    %128 = vector.extract_strided_slice %98 {offsets = [16, 0], sizes = [96, 4], strides = [1, 1]} : vector<128x4xbf16> to vector<96x4xbf16>
    %c1_92 = arith.constant 1 : index
    %c2_93 = arith.constant 2 : index
    %c0_94 = arith.constant 0 : index
    %c0_95 = arith.constant 0 : index
    %129 = vector.load %arg11[%c1_92, %c2_93, %c0_94, %c0_95] : memref<3x3x4x4xbf16, #tpu.memory_space<vmem>>, vector<1x1x4x4xbf16>
    %130 = vector.shape_cast %129 : vector<1x1x4x4xbf16> to vector<4x4xbf16>
    %cst_96 = arith.constant dense<0.000000e+00> : vector<96x4xf32>
    %131 = tpu.matmul %128, %130, %cst_96 {dimension_numbers = #tpu.dot_dimension_numbers<[1], [0], [0], [1], [0, 0, 1, 1], [], []>} : vector<96x4xbf16>, vector<4x4xbf16>, vector<96x4xf32> -> vector<96x4xf32>
    %132 = arith.addf %127, %131 : vector<96x4xf32>
    %133 = vector.extract_strided_slice %96 {offsets = [32, 0], sizes = [96, 4], strides = [1, 1]} : vector<128x4xbf16> to vector<96x4xbf16>
    %c2_97 = arith.constant 2 : index
    %c0_98 = arith.constant 0 : index
    %c0_99 = arith.constant 0 : index
    %c0_100 = arith.constant 0 : index
    %134 = vector.load %arg11[%c2_97, %c0_98, %c0_99, %c0_100] : memref<3x3x4x4xbf16, #tpu.memory_space<vmem>>, vector<1x1x4x4xbf16>
    %135 = vector.shape_cast %134 : vector<1x1x4x4xbf16> to vector<4x4xbf16>
    %cst_101 = arith.constant dense<0.000000e+00> : vector<96x4xf32>
    %136 = tpu.matmul %133, %135, %cst_101 {dimension_numbers = #tpu.dot_dimension_numbers<[1], [0], [0], [1], [0, 0, 1, 1], [], []>} : vector<96x4xbf16>, vector<4x4xbf16>, vector<96x4xf32> -> vector<96x4xf32>
    %137 = arith.addf %132, %136 : vector<96x4xf32>
    %138 = vector.extract_strided_slice %97 {offsets = [32, 0], sizes = [96, 4], strides = [1, 1]} : vector<128x4xbf16> to vector<96x4xbf16>
    %c2_102 = arith.constant 2 : index
    %c1_103 = arith.constant 1 : index
    %c0_104 = arith.constant 0 : index
    %c0_105 = arith.constant 0 : index
    %139 = vector.load %arg11[%c2_102, %c1_103, %c0_104, %c0_105] : memref<3x3x4x4xbf16, #tpu.memory_space<vmem>>, vector<1x1x4x4xbf16>
    %140 = vector.shape_cast %139 : vector<1x1x4x4xbf16> to vector<4x4xbf16>
    %cst_106 = arith.constant dense<0.000000e+00> : vector<96x4xf32>
    %141 = tpu.matmul %138, %140, %cst_106 {dimension_numbers = #tpu.dot_dimension_numbers<[1], [0], [0], [1], [0, 0, 1, 1], [], []>} : vector<96x4xbf16>, vector<4x4xbf16>, vector<96x4xf32> -> vector<96x4xf32>
    %142 = arith.addf %137, %141 : vector<96x4xf32>
    %143 = vector.extract_strided_slice %98 {offsets = [32, 0], sizes = [96, 4], strides = [1, 1]} : vector<128x4xbf16> to vector<96x4xbf16>
    %c2_107 = arith.constant 2 : index
    %c2_108 = arith.constant 2 : index
    %c0_109 = arith.constant 0 : index
    %c0_110 = arith.constant 0 : index
    %144 = vector.load %arg11[%c2_107, %c2_108, %c0_109, %c0_110] : memref<3x3x4x4xbf16, #tpu.memory_space<vmem>>, vector<1x1x4x4xbf16>
    %145 = vector.shape_cast %144 : vector<1x1x4x4xbf16> to vector<4x4xbf16>
    %cst_111 = arith.constant dense<0.000000e+00> : vector<96x4xf32>
    %146 = tpu.matmul %143, %145, %cst_111 {dimension_numbers = #tpu.dot_dimension_numbers<[1], [0], [0], [1], [0, 0, 1, 1], [], []>} : vector<96x4xbf16>, vector<4x4xbf16>, vector<96x4xf32> -> vector<96x4xf32>
    %147 = arith.addf %142, %146 : vector<96x4xf32>
    %148 = tpu.iota {dimensions = array<i32: 0>} : vector<96x1xi32>
    %c1_i32_112 = arith.constant 1 : i32
    %149 = arith.subi %c1_i32_112, %0 : i32
    %c16_i32_113 = arith.constant 16 : i32
    %150 = arith.muli %149, %c16_i32_113 : i32
    %151 = vector.broadcast %150 : i32 to vector<96x1xi32>
    %152 = arith.cmpi sge, %148, %151 : vector<96x1xi32>
    %c17_i32 = arith.constant 17 : i32
    %153 = arith.subi %c17_i32, %0 : i32
    %c16_i32_114 = arith.constant 16 : i32
    %154 = arith.muli %153, %c16_i32_114 : i32
    %155 = vector.broadcast %154 : i32 to vector<96x1xi32>
    %156 = arith.cmpi slt, %148, %155 : vector<96x1xi32>
    %157 = arith.andi %152, %156 : vector<96x1xi1>
    %cst_115 = arith.constant 0.000000e+00 : f32
    %158 = vector.broadcast %cst_115 : f32 to vector<96x4xf32>
    %159 = arith.maximumf %147, %158 : vector<96x4xf32>
    %cst_116 = arith.constant 0.000000e+00 : f32
    %160 = vector.shape_cast %157 : vector<96x1xi1> to vector<96x1xi1>
    %161 = vector.broadcast %160 : vector<96x1xi1> to vector<96x4xi1>
    %162 = vector.broadcast %cst_116 : f32 to vector<96x4xf32>
    %163 = arith.select %161, %159, %162 : vector<96x4xi1>, vector<96x4xf32>
    %164 = tpu.iota {dimensions = array<i32: 0>} : vector<96x1xi32>
    %c16_i32_117 = arith.constant 16 : i32
    %c0_i32_118 = arith.constant 0 : i32
    %165 = arith.cmpi eq, %c16_i32_117, %c0_i32_118 : i32
    %c1_i32_119 = arith.constant 1 : i32
    %166 = arith.select %165, %c1_i32_119, %c16_i32_117 : i32
    %167 = vector.broadcast %166 : i32 to vector<96x1xi32>
    %168 = arith.remsi %164, %167 : vector<96x1xi32>
    %c0_i32_120 = arith.constant 0 : i32
    %169 = vector.broadcast %c0_i32_120 : i32 to vector<96x1xi32>
    %170 = arith.cmpi ne, %168, %169 : vector<96x1xi32>
    %c0_i32_121 = arith.constant 0 : i32
    %171 = vector.broadcast %c0_i32_121 : i32 to vector<96x1xi32>
    %172 = arith.cmpi slt, %168, %171 : vector<96x1xi32>
    %c0_i32_122 = arith.constant 0 : i32
    %173 = arith.cmpi slt, %166, %c0_i32_122 : i32
    %174 = vector.broadcast %173 : i1 to vector<96x1xi1>
    %175 = vector.broadcast %174 : vector<96x1xi1> to vector<96x1xi1>
    %176 = arith.xori %172, %175 : vector<96x1xi1>
    %177 = arith.andi %176, %170 : vector<96x1xi1>
    %178 = vector.broadcast %166 : i32 to vector<96x1xi32>
    %179 = arith.addi %168, %178 : vector<96x1xi32>
    %180 = arith.select %177, %179, %168 : vector<96x1xi1>, vector<96x1xi32>
    %c0_i32_123 = arith.constant 0 : i32
    %181 = vector.broadcast %c0_i32_123 : i32 to vector<96x1xi32>
    %182 = arith.cmpi eq, %180, %181 : vector<96x1xi32>
    %cst_124 = arith.constant 0.000000e+00 : f32
    %183 = vector.shape_cast %182 : vector<96x1xi1> to vector<96x1xi1>
    %184 = vector.broadcast %183 : vector<96x1xi1> to vector<96x4xi1>
    %185 = vector.broadcast %cst_124 : f32 to vector<96x4xf32>
    %186 = arith.select %184, %185, %163 : vector<96x4xi1>, vector<96x4xf32>
    %c95_i32 = arith.constant 95 : i32
    %187 = tpu.dynamic_rotate %186 by %c95_i32 dim 0 : vector<96x4xf32>, i32 -> vector<96x4xf32>
    %c15_i32_125 = arith.constant 15 : i32
    %188 = vector.broadcast %c15_i32_125 : i32 to vector<96x1xi32>
    %189 = arith.cmpi eq, %180, %188 : vector<96x1xi32>
    %cst_126 = arith.constant 0.000000e+00 : f32
    %190 = vector.shape_cast %189 : vector<96x1xi1> to vector<96x1xi1>
    %191 = vector.broadcast %190 : vector<96x1xi1> to vector<96x4xi1>
    %192 = vector.broadcast %cst_126 : f32 to vector<96x4xf32>
    %193 = arith.select %191, %192, %163 : vector<96x4xi1>, vector<96x4xf32>
    %c1_i32_127 = arith.constant 1 : i32
    %194 = tpu.dynamic_rotate %193 by %c1_i32_127 dim 0 : vector<96x4xf32>, i32 -> vector<96x4xf32>
    %195 = arith.truncf %194 : vector<96x4xf32> to vector<96x4xbf16>
    %196 = arith.truncf %163 : vector<96x4xf32> to vector<96x4xbf16>
    %197 = arith.truncf %187 : vector<96x4xf32> to vector<96x4xbf16>
    %cst_128 = arith.constant 0.000000e+00 : f32
    %198 = vector.broadcast %cst_128 : f32 to vector<64x8xf32>
    %c0_129 = arith.constant 0 : index
    %c0_130 = arith.constant 0 : index
    %199 = vector.load %arg14[%c0_129, %c0_130] : memref<1x8xf32, #tpu.memory_space<vmem>>, vector<1x8xf32>
    %200 = vector.broadcast %199 : vector<1x8xf32> to vector<64x8xf32>
    %201 = arith.addf %198, %200 : vector<64x8xf32>
    %202 = vector.extract_strided_slice %195 {offsets = [16, 0], sizes = [64, 4], strides = [1, 1]} : vector<96x4xbf16> to vector<64x4xbf16>
    %c0_131 = arith.constant 0 : index
    %c0_132 = arith.constant 0 : index
    %c0_133 = arith.constant 0 : index
    %c0_134 = arith.constant 0 : index
    %c0_135 = arith.constant 0 : index
    %203 = vector.load %arg13[%c0_131, %c0_132, %c0_133, %c0_134, %c0_135] : memref<2x2x3x4x8xbf16, #tpu.memory_space<vmem>>, vector<1x1x1x4x8xbf16>
    %204 = vector.shape_cast %203 : vector<1x1x1x4x8xbf16> to vector<4x8xbf16>
    %cst_136 = arith.constant dense<0.000000e+00> : vector<64x8xf32>
    %205 = tpu.matmul %202, %204, %cst_136 {dimension_numbers = #tpu.dot_dimension_numbers<[1], [0], [0], [1], [0, 0, 1, 1], [], []>} : vector<64x4xbf16>, vector<4x8xbf16>, vector<64x8xf32> -> vector<64x8xf32>
    %206 = arith.addf %201, %205 : vector<64x8xf32>
    %207 = vector.extract_strided_slice %196 {offsets = [16, 0], sizes = [64, 4], strides = [1, 1]} : vector<96x4xbf16> to vector<64x4xbf16>
    %c0_137 = arith.constant 0 : index
    %c0_138 = arith.constant 0 : index
    %c1_139 = arith.constant 1 : index
    %c0_140 = arith.constant 0 : index
    %c0_141 = arith.constant 0 : index
    %208 = vector.load %arg13[%c0_137, %c0_138, %c1_139, %c0_140, %c0_141] : memref<2x2x3x4x8xbf16, #tpu.memory_space<vmem>>, vector<1x1x1x4x8xbf16>
    %209 = vector.shape_cast %208 : vector<1x1x1x4x8xbf16> to vector<4x8xbf16>
    %cst_142 = arith.constant dense<0.000000e+00> : vector<64x8xf32>
    %210 = tpu.matmul %207, %209, %cst_142 {dimension_numbers = #tpu.dot_dimension_numbers<[1], [0], [0], [1], [0, 0, 1, 1], [], []>} : vector<64x4xbf16>, vector<4x8xbf16>, vector<64x8xf32> -> vector<64x8xf32>
    %211 = arith.addf %206, %210 : vector<64x8xf32>
    %212 = vector.extract_strided_slice %197 {offsets = [16, 0], sizes = [64, 4], strides = [1, 1]} : vector<96x4xbf16> to vector<64x4xbf16>
    %c0_143 = arith.constant 0 : index
    %c0_144 = arith.constant 0 : index
    %c2_145 = arith.constant 2 : index
    %c0_146 = arith.constant 0 : index
    %c0_147 = arith.constant 0 : index
    %213 = vector.load %arg13[%c0_143, %c0_144, %c2_145, %c0_146, %c0_147] : memref<2x2x3x4x8xbf16, #tpu.memory_space<vmem>>, vector<1x1x1x4x8xbf16>
    %214 = vector.shape_cast %213 : vector<1x1x1x4x8xbf16> to vector<4x8xbf16>
    %cst_148 = arith.constant dense<0.000000e+00> : vector<64x8xf32>
    %215 = tpu.matmul %212, %214, %cst_148 {dimension_numbers = #tpu.dot_dimension_numbers<[1], [0], [0], [1], [0, 0, 1, 1], [], []>} : vector<64x4xbf16>, vector<4x8xbf16>, vector<64x8xf32> -> vector<64x8xf32>
    %216 = arith.addf %211, %215 : vector<64x8xf32>
    %217 = vector.extract_strided_slice %195 {offsets = [0, 0], sizes = [64, 4], strides = [1, 1]} : vector<96x4xbf16> to vector<64x4xbf16>
    %c0_149 = arith.constant 0 : index
    %c1_150 = arith.constant 1 : index
    %c0_151 = arith.constant 0 : index
    %c0_152 = arith.constant 0 : index
    %c0_153 = arith.constant 0 : index
    %218 = vector.load %arg13[%c0_149, %c1_150, %c0_151, %c0_152, %c0_153] : memref<2x2x3x4x8xbf16, #tpu.memory_space<vmem>>, vector<1x1x1x4x8xbf16>
    %219 = vector.shape_cast %218 : vector<1x1x1x4x8xbf16> to vector<4x8xbf16>
    %cst_154 = arith.constant dense<0.000000e+00> : vector<64x8xf32>
    %220 = tpu.matmul %217, %219, %cst_154 {dimension_numbers = #tpu.dot_dimension_numbers<[1], [0], [0], [1], [0, 0, 1, 1], [], []>} : vector<64x4xbf16>, vector<4x8xbf16>, vector<64x8xf32> -> vector<64x8xf32>
    %221 = arith.addf %216, %220 : vector<64x8xf32>
    %222 = vector.extract_strided_slice %196 {offsets = [0, 0], sizes = [64, 4], strides = [1, 1]} : vector<96x4xbf16> to vector<64x4xbf16>
    %c0_155 = arith.constant 0 : index
    %c1_156 = arith.constant 1 : index
    %c1_157 = arith.constant 1 : index
    %c0_158 = arith.constant 0 : index
    %c0_159 = arith.constant 0 : index
    %223 = vector.load %arg13[%c0_155, %c1_156, %c1_157, %c0_158, %c0_159] : memref<2x2x3x4x8xbf16, #tpu.memory_space<vmem>>, vector<1x1x1x4x8xbf16>
    %224 = vector.shape_cast %223 : vector<1x1x1x4x8xbf16> to vector<4x8xbf16>
    %cst_160 = arith.constant dense<0.000000e+00> : vector<64x8xf32>
    %225 = tpu.matmul %222, %224, %cst_160 {dimension_numbers = #tpu.dot_dimension_numbers<[1], [0], [0], [1], [0, 0, 1, 1], [], []>} : vector<64x4xbf16>, vector<4x8xbf16>, vector<64x8xf32> -> vector<64x8xf32>
    %226 = arith.addf %221, %225 : vector<64x8xf32>
    %227 = vector.extract_strided_slice %197 {offsets = [0, 0], sizes = [64, 4], strides = [1, 1]} : vector<96x4xbf16> to vector<64x4xbf16>
    %c0_161 = arith.constant 0 : index
    %c1_162 = arith.constant 1 : index
    %c2_163 = arith.constant 2 : index
    %c0_164 = arith.constant 0 : index
    %c0_165 = arith.constant 0 : index
    %228 = vector.load %arg13[%c0_161, %c1_162, %c2_163, %c0_164, %c0_165] : memref<2x2x3x4x8xbf16, #tpu.memory_space<vmem>>, vector<1x1x1x4x8xbf16>
    %229 = vector.shape_cast %228 : vector<1x1x1x4x8xbf16> to vector<4x8xbf16>
    %cst_166 = arith.constant dense<0.000000e+00> : vector<64x8xf32>
    %230 = tpu.matmul %227, %229, %cst_166 {dimension_numbers = #tpu.dot_dimension_numbers<[1], [0], [0], [1], [0, 0, 1, 1], [], []>} : vector<64x4xbf16>, vector<4x8xbf16>, vector<64x8xf32> -> vector<64x8xf32>
    %231 = arith.addf %226, %230 : vector<64x8xf32>
    %232 = vector.shape_cast %231 : vector<64x8xf32> to vector<4x16x8xf32>
    %233 = arith.truncf %232 : vector<4x16x8xf32> to vector<4x16x8xbf16>
    %c0_167 = arith.constant 0 : index
    %c0_168 = arith.constant 0 : index
    %c0_169 = arith.constant 0 : index
    %c0_170 = arith.constant 0 : index
    %c0_171 = arith.constant 0 : index
    %234 = vector.load %arg15[%c0_167, %c0_168, %c0_169, %c0_170, %c0_171] : memref<1x4x2x16x8xbf16, #tpu.memory_space<vmem>>, vector<1x4x1x16x8xbf16>
    %235 = vector.shape_cast %234 : vector<1x4x1x16x8xbf16> to vector<4x16x8xbf16>
    %236 = vector.shape_cast %233 : vector<4x16x8xbf16> to vector<1x4x1x16x8xbf16>
    tpu.vector_store %arg15[%c0_167, %c0_168, %c0_169, %c0_170, %c0_171], %236 {strides = array<i32>} : memref<1x4x2x16x8xbf16, #tpu.memory_space<vmem>>, vector<1x4x1x16x8xbf16>,
    %cst_172 = arith.constant 0.000000e+00 : f32
    %237 = vector.broadcast %cst_172 : f32 to vector<64x8xf32>
    %c0_173 = arith.constant 0 : index
    %c0_174 = arith.constant 0 : index
    %238 = vector.load %arg14[%c0_173, %c0_174] : memref<1x8xf32, #tpu.memory_space<vmem>>, vector<1x8xf32>
    %239 = vector.broadcast %238 : vector<1x8xf32> to vector<64x8xf32>
    %240 = arith.addf %237, %239 : vector<64x8xf32>
    %241 = vector.extract_strided_slice %195 {offsets = [16, 0], sizes = [64, 4], strides = [1, 1]} : vector<96x4xbf16> to vector<64x4xbf16>
    %c1_175 = arith.constant 1 : index
    %c0_176 = arith.constant 0 : index
    %c0_177 = arith.constant 0 : index
    %c0_178 = arith.constant 0 : index
    %c0_179 = arith.constant 0 : index
    %242 = vector.load %arg13[%c1_175, %c0_176, %c0_177, %c0_178, %c0_179] : memref<2x2x3x4x8xbf16, #tpu.memory_space<vmem>>, vector<1x1x1x4x8xbf16>
    %243 = vector.shape_cast %242 : vector<1x1x1x4x8xbf16> to vector<4x8xbf16>
    %cst_180 = arith.constant dense<0.000000e+00> : vector<64x8xf32>
    %244 = tpu.matmul %241, %243, %cst_180 {dimension_numbers = #tpu.dot_dimension_numbers<[1], [0], [0], [1], [0, 0, 1, 1], [], []>} : vector<64x4xbf16>, vector<4x8xbf16>, vector<64x8xf32> -> vector<64x8xf32>
    %245 = arith.addf %240, %244 : vector<64x8xf32>
    %246 = vector.extract_strided_slice %196 {offsets = [16, 0], sizes = [64, 4], strides = [1, 1]} : vector<96x4xbf16> to vector<64x4xbf16>
    %c1_181 = arith.constant 1 : index
    %c0_182 = arith.constant 0 : index
    %c1_183 = arith.constant 1 : index
    %c0_184 = arith.constant 0 : index
    %c0_185 = arith.constant 0 : index
    %247 = vector.load %arg13[%c1_181, %c0_182, %c1_183, %c0_184, %c0_185] : memref<2x2x3x4x8xbf16, #tpu.memory_space<vmem>>, vector<1x1x1x4x8xbf16>
    %248 = vector.shape_cast %247 : vector<1x1x1x4x8xbf16> to vector<4x8xbf16>
    %cst_186 = arith.constant dense<0.000000e+00> : vector<64x8xf32>
    %249 = tpu.matmul %246, %248, %cst_186 {dimension_numbers = #tpu.dot_dimension_numbers<[1], [0], [0], [1], [0, 0, 1, 1], [], []>} : vector<64x4xbf16>, vector<4x8xbf16>, vector<64x8xf32> -> vector<64x8xf32>
    %250 = arith.addf %245, %249 : vector<64x8xf32>
    %251 = vector.extract_strided_slice %197 {offsets = [16, 0], sizes = [64, 4], strides = [1, 1]} : vector<96x4xbf16> to vector<64x4xbf16>
    %c1_187 = arith.constant 1 : index
    %c0_188 = arith.constant 0 : index
    %c2_189 = arith.constant 2 : index
    %c0_190 = arith.constant 0 : index
    %c0_191 = arith.constant 0 : index
    %252 = vector.load %arg13[%c1_187, %c0_188, %c2_189, %c0_190, %c0_191] : memref<2x2x3x4x8xbf16, #tpu.memory_space<vmem>>, vector<1x1x1x4x8xbf16>
    %253 = vector.shape_cast %252 : vector<1x1x1x4x8xbf16> to vector<4x8xbf16>
    %cst_192 = arith.constant dense<0.000000e+00> : vector<64x8xf32>
    %254 = tpu.matmul %251, %253, %cst_192 {dimension_numbers = #tpu.dot_dimension_numbers<[1], [0], [0], [1], [0, 0, 1, 1], [], []>} : vector<64x4xbf16>, vector<4x8xbf16>, vector<64x8xf32> -> vector<64x8xf32>
    %255 = arith.addf %250, %254 : vector<64x8xf32>
    %256 = vector.extract_strided_slice %195 {offsets = [32, 0], sizes = [64, 4], strides = [1, 1]} : vector<96x4xbf16> to vector<64x4xbf16>
    %c1_193 = arith.constant 1 : index
    %c1_194 = arith.constant 1 : index
    %c0_195 = arith.constant 0 : index
    %c0_196 = arith.constant 0 : index
    %c0_197 = arith.constant 0 : index
    %257 = vector.load %arg13[%c1_193, %c1_194, %c0_195, %c0_196, %c0_197] : memref<2x2x3x4x8xbf16, #tpu.memory_space<vmem>>, vector<1x1x1x4x8xbf16>
    %258 = vector.shape_cast %257 : vector<1x1x1x4x8xbf16> to vector<4x8xbf16>
    %cst_198 = arith.constant dense<0.000000e+00> : vector<64x8xf32>
    %259 = tpu.matmul %256, %258, %cst_198 {dimension_numbers = #tpu.dot_dimension_numbers<[1], [0], [0], [1], [0, 0, 1, 1], [], []>} : vector<64x4xbf16>, vector<4x8xbf16>, vector<64x8xf32> -> vector<64x8xf32>
    %260 = arith.addf %255, %259 : vector<64x8xf32>
    %261 = vector.extract_strided_slice %196 {offsets = [32, 0], sizes = [64, 4], strides = [1, 1]} : vector<96x4xbf16> to vector<64x4xbf16>
    %c1_199 = arith.constant 1 : index
    %c1_200 = arith.constant 1 : index
    %c1_201 = arith.constant 1 : index
    %c0_202 = arith.constant 0 : index
    %c0_203 = arith.constant 0 : index
    %262 = vector.load %arg13[%c1_199, %c1_200, %c1_201, %c0_202, %c0_203] : memref<2x2x3x4x8xbf16, #tpu.memory_space<vmem>>, vector<1x1x1x4x8xbf16>
    %263 = vector.shape_cast %262 : vector<1x1x1x4x8xbf16> to vector<4x8xbf16>
    %cst_204 = arith.constant dense<0.000000e+00> : vector<64x8xf32>
    %264 = tpu.matmul %261, %263, %cst_204 {dimension_numbers = #tpu.dot_dimension_numbers<[1], [0], [0], [1], [0, 0, 1, 1], [], []>} : vector<64x4xbf16>, vector<4x8xbf16>, vector<64x8xf32> -> vector<64x8xf32>
    %265 = arith.addf %260, %264 : vector<64x8xf32>
    %266 = vector.extract_strided_slice %197 {offsets = [32, 0], sizes = [64, 4], strides = [1, 1]} : vector<96x4xbf16> to vector<64x4xbf16>
    %c1_205 = arith.constant 1 : index
    %c1_206 = arith.constant 1 : index
    %c2_207 = arith.constant 2 : index
    %c0_208 = arith.constant 0 : index
    %c0_209 = arith.constant 0 : index
    %267 = vector.load %arg13[%c1_205, %c1_206, %c2_207, %c0_208, %c0_209] : memref<2x2x3x4x8xbf16, #tpu.memory_space<vmem>>, vector<1x1x1x4x8xbf16>
    %268 = vector.shape_cast %267 : vector<1x1x1x4x8xbf16> to vector<4x8xbf16>
    %cst_210 = arith.constant dense<0.000000e+00> : vector<64x8xf32>
    %269 = tpu.matmul %266, %268, %cst_210 {dimension_numbers = #tpu.dot_dimension_numbers<[1], [0], [0], [1], [0, 0, 1, 1], [], []>} : vector<64x4xbf16>, vector<4x8xbf16>, vector<64x8xf32> -> vector<64x8xf32>
    %270 = arith.addf %265, %269 : vector<64x8xf32>
    %271 = vector.shape_cast %270 : vector<64x8xf32> to vector<4x16x8xf32>
    %272 = arith.truncf %271 : vector<4x16x8xf32> to vector<4x16x8xbf16>
    %c0_211 = arith.constant 0 : index
    %c0_212 = arith.constant 0 : index
    %c1_213 = arith.constant 1 : index
    %c0_214 = arith.constant 0 : index
    %c0_215 = arith.constant 0 : index
    %273 = vector.load %arg15[%c0_211, %c0_212, %c1_213, %c0_214, %c0_215] : memref<1x4x2x16x8xbf16, #tpu.memory_space<vmem>>, vector<1x4x1x16x8xbf16>
    %274 = vector.shape_cast %273 : vector<1x4x1x16x8xbf16> to vector<4x16x8xbf16>
    %275 = vector.shape_cast %272 : vector<4x16x8xbf16> to vector<1x4x1x16x8xbf16>
    tpu.vector_store %arg15[%c0_211, %c0_212, %c1_213, %c0_214, %c0_215], %275 {strides = array<i32>} : memref<1x4x2x16x8xbf16, #tpu.memory_space<vmem>>, vector<1x4x1x16x8xbf16>,
    return
  }
  func.func @transform_0(%arg0: i32, %arg1: i32) -> (i32, i32, i32) {
    %c0_i32 = arith.constant 0 : i32
    %c0_i32_0 = arith.constant 0 : i32
    return %arg0, %arg1, %c0_i32 : i32, i32, i32
  }
  func.func @transform_1(%arg0: i32, %arg1: i32) -> (i32, i32, i32, i32) {
    %c2_i32 = arith.constant 2 : i32
    %0 = arith.muli %arg1, %c2_i32 : i32
    %c1_i32 = arith.constant 1 : i32
    %1 = arith.subi %0, %c1_i32 : i32
    %c0_i32 = arith.constant 0 : i32
    %2 = arith.maxsi %1, %c0_i32 : i32
    %c0_i32_0 = arith.constant 0 : i32
    %c0_i32_1 = arith.constant 0 : i32
    %c0_i32_2 = arith.constant 0 : i32
    return %arg0, %2, %c0_i32_0, %c0_i32_1 : i32, i32, i32, i32
  }
  func.func @transform_2(%arg0: i32, %arg1: i32) -> (i32, i32, i32, i32) {
    %c1_i32 = arith.constant 1 : i32
    %0 = arith.addi %arg1, %c1_i32 : i32
    %c2_i32 = arith.constant 2 : i32
    %1 = arith.muli %0, %c2_i32 : i32
    %c7_i32 = arith.constant 7 : i32
    %2 = arith.minsi %1, %c7_i32 : i32
    %c0_i32 = arith.constant 0 : i32
    %c0_i32_0 = arith.constant 0 : i32
    %c0_i32_1 = arith.constant 0 : i32
    return %arg0, %2, %c0_i32, %c0_i32_0 : i32, i32, i32, i32
  }
  func.func @transform_3(%arg0: i32, %arg1: i32) -> (i32, i32, i32) {
    %c0_i32 = arith.constant 0 : i32
    %c0_i32_0 = arith.constant 0 : i32
    return %arg0, %arg1, %c0_i32 : i32, i32, i32
  }
  func.func @transform_4(%arg0: i32, %arg1: i32) -> (i32, i32, i32, i32) {
    %c2_i32 = arith.constant 2 : i32
    %0 = arith.muli %arg1, %c2_i32 : i32
    %c1_i32 = arith.constant 1 : i32
    %1 = arith.subi %0, %c1_i32 : i32
    %c0_i32 = arith.constant 0 : i32
    %2 = arith.maxsi %1, %c0_i32 : i32
    %c0_i32_0 = arith.constant 0 : i32
    %c0_i32_1 = arith.constant 0 : i32
    %c0_i32_2 = arith.constant 0 : i32
    return %arg0, %2, %c0_i32_0, %c0_i32_1 : i32, i32, i32, i32
  }
  func.func @transform_5(%arg0: i32, %arg1: i32) -> (i32, i32, i32, i32) {
    %c1_i32 = arith.constant 1 : i32
    %0 = arith.addi %arg1, %c1_i32 : i32
    %c2_i32 = arith.constant 2 : i32
    %1 = arith.muli %0, %c2_i32 : i32
    %c7_i32 = arith.constant 7 : i32
    %2 = arith.minsi %1, %c7_i32 : i32
    %c0_i32 = arith.constant 0 : i32
    %c0_i32_0 = arith.constant 0 : i32
    %c0_i32_1 = arith.constant 0 : i32
    return %arg0, %2, %c0_i32, %c0_i32_0 : i32, i32, i32, i32
  }
  func.func @transform_6(%arg0: i32, %arg1: i32) -> (i32, i32) {
    %c0_i32 = arith.constant 0 : i32
    %c0_i32_0 = arith.constant 0 : i32
    %c0_i32_1 = arith.constant 0 : i32
    return %c0_i32, %c0_i32_0 : i32, i32
  }
  func.func @transform_7(%arg0: i32, %arg1: i32) -> (i32, i32) {
    %c0_i32 = arith.constant 0 : i32
    %c0_i32_0 = arith.constant 0 : i32
    %c0_i32_1 = arith.constant 0 : i32
    return %c0_i32, %c0_i32_0 : i32, i32
  }
  func.func @transform_8(%arg0: i32, %arg1: i32) -> (i32, i32) {
    %c0_i32 = arith.constant 0 : i32
    %c0_i32_0 = arith.constant 0 : i32
    %c0_i32_1 = arith.constant 0 : i32
    return %c0_i32, %c0_i32_0 : i32, i32
  }
  func.func @transform_9(%arg0: i32, %arg1: i32) -> (i32, i32, i32, i32) {
    %c0_i32 = arith.constant 0 : i32
    %c0_i32_0 = arith.constant 0 : i32
    %c0_i32_1 = arith.constant 0 : i32
    %c0_i32_2 = arith.constant 0 : i32
    %c0_i32_3 = arith.constant 0 : i32
    return %c0_i32, %c0_i32_0, %c0_i32_1, %c0_i32_2 : i32, i32, i32, i32
  }
  func.func @transform_10(%arg0: i32, %arg1: i32) -> (i32, i32) {
    %c0_i32 = arith.constant 0 : i32
    %c0_i32_0 = arith.constant 0 : i32
    %c0_i32_1 = arith.constant 0 : i32
    return %c0_i32, %c0_i32_0 : i32, i32
  }
  func.func @transform_11(%arg0: i32, %arg1: i32) -> (i32, i32, i32, i32, i32) {
    %c0_i32 = arith.constant 0 : i32
    %c0_i32_0 = arith.constant 0 : i32
    %c0_i32_1 = arith.constant 0 : i32
    %c0_i32_2 = arith.constant 0 : i32
    %c0_i32_3 = arith.constant 0 : i32
    %c0_i32_4 = arith.constant 0 : i32
    return %c0_i32, %c0_i32_0, %c0_i32_1, %c0_i32_2, %c0_i32_3 : i32, i32, i32, i32, i32
  }
  func.func @transform_12(%arg0: i32, %arg1: i32) -> (i32, i32) {
    %c0_i32 = arith.constant 0 : i32
    %c0_i32_0 = arith.constant 0 : i32
    %c0_i32_1 = arith.constant 0 : i32
    return %c0_i32, %c0_i32_0 : i32, i32
  }
  func.func @transform_13(%arg0: i32, %arg1: i32) -> (i32, i32, i32, i32, i32) {
    %c0_i32 = arith.constant 0 : i32
    %c0_i32_0 = arith.constant 0 : i32
    %c0_i32_1 = arith.constant 0 : i32
    %c0_i32_2 = arith.constant 0 : i32
    return %arg0, %arg1, %c0_i32, %c0_i32_0, %c0_i32_1 : i32, i32, i32, i32, i32
  }
}

</mosaic_0001>

<llo_original>
// kernel: upblok_forward.1
$region0: #{upblok_forward.1}
  #allocation0 [shape = 'u32[]', space=smem, size = 0x4, offset = 0x4, fixed_abs, tag = 'smem constant byte address 0x4 - core index']
  #allocation1 [shape = 'u32[144,128]{1,0:T(1,128)}', space=vmem, size = 0x12000, scoped, tag = 'internal scratch']
  #allocation2 [shape = 'f32[128,4]{1,0:T(8,128)}', space=vmem, size = 0x10000, scoped, tag = 'scratch operand']
  %s0 = inlined_call_operand.vmem [shape: bf16[2,256,2], index: 0, kind: input, shape index: {}, may-alias: {0,1,2}]
  %s1 = inlined_call_operand.vmem [shape: bf16[2,8,32,2], index: 1, kind: input, shape index: {}, may-alias: {0,1,2}]
  %s2 = inlined_call_operand.vmem [shape: bf16[2,8,32,2], index: 2, kind: input, shape index: {}, may-alias: {0,1,2}]
  %s3 = inlined_call_operand.vmem [shape: bf16[2,256,2], index: 3, kind: input, shape index: {}, may-alias: {3,4,5}]
  %s4 = inlined_call_operand.vmem [shape: bf16[2,8,32,2], index: 4, kind: input, shape index: {}, may-alias: {3,4,5}]
  %s5 = inlined_call_operand.vmem [shape: bf16[2,8,32,2], index: 5, kind: input, shape index: {}, may-alias: {3,4,5}]
  %s6 = inlined_call_operand.vmem [shape: bf16[2,4], index: 6, kind: input, shape index: {}]
  %s7 = inlined_call_operand.vmem [shape: bf16[2,4], index: 7, kind: input, shape index: {}]
  %s8 = inlined_call_operand.vmem [shape: f32[1,4], index: 8, kind: input, shape index: {}]
  %s9 = inlined_call_operand.vmem [shape: bf16[3,3,4,4], index: 9, kind: input, shape index: {}]
  %s10 = inlined_call_operand.vmem [shape: f32[1,4], index: 10, kind: input, shape index: {}]
  %s11 = inlined_call_operand.vmem [shape: bf16[2,2,3,4,8], index: 11, kind: input, shape index: {}]
  %s12 = inlined_call_operand.vmem [shape: f32[1,8], index: 12, kind: input, shape index: {}]
  %s13 = inlined_call_operand.vmem [shape: bf16[2,16,2,16,8], index: 13, kind: output, shape index: {}]
  %s14 = sld [smem:[#allocation0]]
  $region85: #{upblok_forward.1} parent=0
    _
  %s16 = ssub.s32 1, %s14
  %s17 = scalar_select 0, %s16, %s14
  loop: start=0, step=1, limit=10
  $region2: #{upblok_forward.1} parent=0 // loop_pre_header
    _
  $region3: #{upblok_forward.1} parent=0 // loop_header
    %s19 = sphi 0, %s23
    %p20 = scmp.ge.s32.totalorder %s19, 10
    %s26 = sphi 0, %s38
    %s27 = sphi 0, %s34
    %s28 = sphi 0, %s26
    %s29 = sphi 0, %s27
    %s30 = sphi 0, %s28
    %s31 = sphi 0, %s29
    %s43 = sphi 0, %s45
    %s46 = sphi 0, %s43
    %s47 = sphi 0, %s46
    %s63 = sphi 0, %s47
    %s79 = sphi 0, %s81
    %s82 = sphi 0, %s79
    %s83 = sphi 0, %s82
    %s99 = sphi 0, %s83
    %s115 = sphi 0, %s117
    %s118 = sphi 0, %s115
    %s119 = sphi 0, %s118
    %s135 = sphi 0, %s119
    %s143 = sphi 0, %s145
    %s146 = sphi 0, %s143
    %s147 = sphi 0, %s146
    %s163 = sphi 0, %s147
    %s179 = sphi 0, %s181
    %s182 = sphi 0, %s179
    %s183 = sphi 0, %s182
    %s199 = sphi 0, %s183
    %s215 = sphi 0, %s217
    %s218 = sphi 0, %s215
    %s219 = sphi 0, %s218
    %s235 = sphi 0, %s219
    %s239 = sphi 0, %s239
    %s241 = sphi 0, %s239
    %s242 = sphi 0, %s241
    %s256 = sphi 0, %s242
    %s260 = sphi 0, %s260
    %s262 = sphi 0, %s260
    %s263 = sphi 0, %s262
    %s277 = sphi 0, %s263
    %s281 = sphi 0, %s281
    %s283 = sphi 0, %s281
    %s284 = sphi 0, %s283
    %s298 = sphi 0, %s284
    %s302 = sphi 0, %s302
    %s304 = sphi 0, %s302
    %s305 = sphi 0, %s304
    %s319 = sphi 0, %s305
    %s323 = sphi 0, %s323
    %s325 = sphi 0, %s323
    %s326 = sphi 0, %s325
    %s340 = sphi 0, %s326
    %s344 = sphi 0, %s344
    %s346 = sphi 0, %s344
    %s347 = sphi 0, %s346
    %s361 = sphi 0, %s347
    %s365 = sphi 0, %s365
    %s367 = sphi 0, %s365
    %s368 = sphi 0, %s367
    %s382 = sphi 0, %s368
    %s390 = sphi 0, %s392
    %s393 = sphi 0, %s390
    %s394 = sphi 0, %s393
    %s410 = sphi 0, %s394
  $region4: #{upblok_forward.1} parent=0 // loop_header_branch
    %22 = sbr.rel (%p20) target = $region8
  $region5: #{upblok_forward.1} parent=0 // loop_body
    %s24 = ssub.s32 %s19, 1
    %s25 = ssub.s32 %s19, 2
    %s32 = sadd.s32 1, %s27
    %p33 = scmp.ge.s32.totalorder %s32, 4
    %s34 = scalar_select %p33, 0, %s32
    %s35 = sadd.s32 1, %s26
    %s36 = scalar_select %p33, %s35, %s26
    %p37 = scmp.ge.s32.totalorder %s36, 2
    %s38 = scalar_select %p37, 0, %s36
    %s39 = ssub.s32 %s26, %s38
    %s40 = ssub.s32 %s27, %s34
    %s41 = sor.u32 %s39, %s40
    %p42 = scmp.eq.s32.totalorder %s41, 0
    %s44 = sadd.s32 %s43, 1
    %s45 = scalar_select %p42, %s43, %s44
    %p48 = pneg %p42
    %p49 = scmp.eq.s32.totalorder %s19, 7
    %p50 = por %p48, %p49
    %p51 = scmp.ne.s32.totalorder %s43, %s46
    %p52 = scmp.eq.s32.totalorder %s19, 0
    %p53 = por %p51, %p52
    %p54 = scmp.ne.s32.totalorder %s43, %s46
    %p55 = scmp.eq.s32.totalorder %s24, 7
    %p56 = por %p54, %p55
    %p57 = scmp.ne.s32.totalorder %s46, %s47
    %p58 = scmp.eq.s32.totalorder %s24, 0
    %p59 = por %p57, %p58
    %p60 = scmp.ne.s32.totalorder %s46, %s47
    %p61 = scmp.eq.s32.totalorder %s25, 7
    %p62 = por %p60, %p61
    %p64 = scmp.ne.s32.totalorder %s47, %s63
    %p65 = scmp.eq.s32.totalorder %s25, 0
    %p66 = por %p64, %p65
    %s67 = smul.u32 %s27, 2
    %s68 = ssub.s32 %s67, 1
    %p69 = scmp.gt.s32.totalorder %s68, 0
    %s70 = scalar_select %p69, %s68, 0
    %s71 = smul.u32 %s34, 2
    %s72 = ssub.s32 %s71, 1
    %p73 = scmp.gt.s32.totalorder %s72, 0
    %s74 = scalar_select %p73, %s72, 0
    %s75 = ssub.s32 %s26, %s38
    %s76 = ssub.s32 %s70, %s74
    %s77 = sor.u32 %s75, %s76
    %p78 = scmp.eq.s32.totalorder %s77, 0
    %s80 = sadd.s32 %s79, 1
    %s81 = scalar_select %p78, %s79, %s80
    %p84 = pneg %p78
    %p85 = scmp.eq.s32.totalorder %s19, 7
    %p86 = por %p84, %p85
    %p87 = scmp.ne.s32.totalorder %s79, %s82
    %p88 = scmp.eq.s32.totalorder %s19, 0
    %p89 = por %p87, %p88
    %p90 = scmp.ne.s32.totalorder %s79, %s82
    %p91 = scmp.eq.s32.totalorder %s24, 7
    %p92 = por %p90, %p91
    %p93 = scmp.ne.s32.totalorder %s82, %s83
    %p94 = scmp.eq.s32.totalorder %s24, 0
    %p95 = por %p93, %p94
    %p96 = scmp.ne.s32.totalorder %s82, %s83
    %p97 = scmp.eq.s32.totalorder %s25, 7
    %p98 = por %p96, %p97
    %p100 = scmp.ne.s32.totalorder %s83, %s99
    %p101 = scmp.eq.s32.totalorder %s25, 0
    %p102 = por %p100, %p101
    %s103 = sadd.s32 %s27, 1
    %s104 = smul.u32 %s103, 2
    %p105 = scmp.lt.s32.totalorder %s104, 7
    %s106 = scalar_select %p105, %s104, 7
    %s107 = sadd.s32 %s34, 1
    %s108 = smul.u32 %s107, 2
    %p109 = scmp.lt.s32.totalorder %s108, 7
    %s110 = scalar_select %p109, %s108, 7
    %s111 = ssub.s32 %s26, %s38
    %s112 = ssub.s32 %s106, %s110
    %s113 = sor.u32 %s111, %s112
    %p114 = scmp.eq.s32.totalorder %s113, 0
    %s116 = sadd.s32 %s115, 1
    %s117 = scalar_select %p114, %s115, %s116
    %p120 = pneg %p114
    %p121 = scmp.eq.s32.totalorder %s19, 7
    %p122 = por %p120, %p121
    %p123 = scmp.ne.s32.totalorder %s115, %s118
    %p124 = scmp.eq.s32.totalorder %s19, 0
    %p125 = por %p123, %p124
    %p126 = scmp.ne.s32.totalorder %s115, %s118
    %p127 = scmp.eq.s32.totalorder %s24, 7
    %p128 = por %p126, %p127
    %p129 = scmp.ne.s32.totalorder %s118, %s119
    %p130 = scmp.eq.s32.totalorder %s24, 0
    %p131 = por %p129, %p130
    %p132 = scmp.ne.s32.totalorder %s118, %s119
    %p133 = scmp.eq.s32.totalorder %s25, 7
    %p134 = por %p132, %p133
    %p136 = scmp.ne.s32.totalorder %s119, %s135
    %p137 = scmp.eq.s32.totalorder %s25, 0
    %p138 = por %p136, %p137
    %s139 = ssub.s32 %s26, %s38
    %s140 = ssub.s32 %s27, %s34
    %s141 = sor.u32 %s139, %s140
    %p142 = scmp.eq.s32.totalorder %s141, 0
    %s144 = sadd.s32 %s143, 1
    %s145 = scalar_select %p142, %s143, %s144
    %p148 = pneg %p142
    %p149 = scmp.eq.s32.totalorder %s19, 7
    %p150 = por %p148, %p149
    %p151 = scmp.ne.s32.totalorder %s143, %s146
    %p152 = scmp.eq.s32.totalorder %s19, 0
    %p153 = por %p151, %p152
    %p154 = scmp.ne.s32.totalorder %s143, %s146
    %p155 = scmp.eq.s32.totalorder %s24, 7
    %p156 = por %p154, %p155
    %p157 = scmp.ne.s32.totalorder %s146, %s147
    %p158 = scmp.eq.s32.totalorder %s24, 0
    %p159 = por %p157, %p158
    %p160 = scmp.ne.s32.totalorder %s146, %s147
    %p161 = scmp.eq.s32.totalorder %s25, 7
    %p162 = por %p160, %p161
    %p164 = scmp.ne.s32.totalorder %s147, %s163
    %p165 = scmp.eq.s32.totalorder %s25, 0
    %p166 = por %p164, %p165
    %s167 = smul.u32 %s27, 2
    %s168 = ssub.s32 %s167, 1
    %p169 = scmp.gt.s32.totalorder %s168, 0
    %s170 = scalar_select %p169, %s168, 0
    %s171 = smul.u32 %s34, 2
    %s172 = ssub.s32 %s171, 1
    %p173 = scmp.gt.s32.totalorder %s172, 0
    %s174 = scalar_select %p173, %s172, 0
    %s175 = ssub.s32 %s26, %s38
    %s176 = ssub.s32 %s170, %s174
    %s177 = sor.u32 %s175, %s176
    %p178 = scmp.eq.s32.totalorder %s177, 0
    %s180 = sadd.s32 %s179, 1
    %s181 = scalar_select %p178, %s179, %s180
    %p184 = pneg %p178
    %p185 = scmp.eq.s32.totalorder %s19, 7
    %p186 = por %p184, %p185
    %p187 = scmp.ne.s32.totalorder %s179, %s182
    %p188 = scmp.eq.s32.totalorder %s19, 0
    %p189 = por %p187, %p188
    %p190 = scmp.ne.s32.totalorder %s179, %s182
    %p191 = scmp.eq.s32.totalorder %s24, 7
    %p192 = por %p190, %p191
    %p193 = scmp.ne.s32.totalorder %s182, %s183
    %p194 = scmp.eq.s32.totalorder %s24, 0
    %p195 = por %p193, %p194
    %p196 = scmp.ne.s32.totalorder %s182, %s183
    %p197 = scmp.eq.s32.totalorder %s25, 7
    %p198 = por %p196, %p197
    %p200 = scmp.ne.s32.totalorder %s183, %s199
    %p201 = scmp.eq.s32.totalorder %s25, 0
    %p202 = por %p200, %p201
    %s203 = sadd.s32 %s27, 1
    %s204 = smul.u32 %s203, 2
    %p205 = scmp.lt.s32.totalorder %s204, 7
    %s206 = scalar_select %p205, %s204, 7
    %s207 = sadd.s32 %s34, 1
    %s208 = smul.u32 %s207, 2
    %p209 = scmp.lt.s32.totalorder %s208, 7
    %s210 = scalar_select %p209, %s208, 7
    %s211 = ssub.s32 %s26, %s38
    %s212 = ssub.s32 %s206, %s210
    %s213 = sor.u32 %s211, %s212
    %p214 = scmp.eq.s32.totalorder %s213, 0
    %s216 = sadd.s32 %s215, 1
    %s217 = scalar_select %p214, %s215, %s216
    %p220 = pneg %p214
    %p221 = scmp.eq.s32.totalorder %s19, 7
    %p222 = por %p220, %p221
    %p223 = scmp.ne.s32.totalorder %s215, %s218
    %p224 = scmp.eq.s32.totalorder %s19, 0
    %p225 = por %p223, %p224
    %p226 = scmp.ne.s32.totalorder %s215, %s218
    %p227 = scmp.eq.s32.totalorder %s24, 7
    %p228 = por %p226, %p227
    %p229 = scmp.ne.s32.totalorder %s218, %s219
    %p230 = scmp.eq.s32.totalorder %s24, 0
    %p231 = por %p229, %p230
    %p232 = scmp.ne.s32.totalorder %s218, %s219
    %p233 = scmp.eq.s32.totalorder %s25, 7
    %p234 = por %p232, %p233
    %p236 = scmp.ne.s32.totalorder %s219, %s235
    %p237 = scmp.eq.s32.totalorder %s25, 0
    %p238 = por %p236, %p237
    %s240 = sadd.s32 %s239, 1
    %p243 = scmp.eq.s32.totalorder %s19, 7
    %p244 = scmp.ne.s32.totalorder %s239, %s241
    %p245 = scmp.eq.s32.totalorder %s19, 0
    %p246 = por %p244, %p245
    %p247 = scmp.ne.s32.totalorder %s239, %s241
    %p248 = scmp.eq.s32.totalorder %s24, 7
    %p249 = por %p247, %p248
    %p250 = scmp.ne.s32.totalorder %s241, %s242
    %p251 = scmp.eq.s32.totalorder %s24, 0
    %p252 = por %p250, %p251
    %p253 = scmp.ne.s32.totalorder %s241, %s242
    %p254 = scmp.eq.s32.totalorder %s25, 7
    %p255 = por %p253, %p254
    %p257 = scmp.ne.s32.totalorder %s242, %s256
    %p258 = scmp.eq.s32.totalorder %s25, 0
    %p259 = por %p257, %p258
    %s261 = sadd.s32 %s260, 1
    %p264 = scmp.eq.s32.totalorder %s19, 7
    %p265 = scmp.ne.s32.totalorder %s260, %s262
    %p266 = scmp.eq.s32.totalorder %s19, 0
    %p267 = por %p265, %p266
    %p268 = scmp.ne.s32.totalorder %s260, %s262
    %p269 = scmp.eq.s32.totalorder %s24, 7
    %p270 = por %p268, %p269
    %p271 = scmp.ne.s32.totalorder %s262, %s263
    %p272 = scmp.eq.s32.totalorder %s24, 0
    %p273 = por %p271, %p272
    %p274 = scmp.ne.s32.totalorder %s262, %s263
    %p275 = scmp.eq.s32.totalorder %s25, 7
    %p276 = por %p274, %p275
    %p278 = scmp.ne.s32.totalorder %s263, %s277
    %p279 = scmp.eq.s32.totalorder %s25, 0
    %p280 = por %p278, %p279
    %s282 = sadd.s32 %s281, 1
    %p285 = scmp.eq.s32.totalorder %s19, 7
    %p286 = scmp.ne.s32.totalorder %s281, %s283
    %p287 = scmp.eq.s32.totalorder %s19, 0
    %p288 = por %p286, %p287
    %p289 = scmp.ne.s32.totalorder %s281, %s283
    %p290 = scmp.eq.s32.totalorder %s24, 7
    %p291 = por %p289, %p290
    %p292 = scmp.ne.s32.totalorder %s283, %s284
    %p293 = scmp.eq.s32.totalorder %s24, 0
    %p294 = por %p292, %p293
    %p295 = scmp.ne.s32.totalorder %s283, %s284
    %p296 = scmp.eq.s32.totalorder %s25, 7
    %p297 = por %p295, %p296
    %p299 = scmp.ne.s32.totalorder %s284, %s298
    %p300 = scmp.eq.s32.totalorder %s25, 0
    %p301 = por %p299, %p300
    %s303 = sadd.s32 %s302, 1
    %p306 = scmp.eq.s32.totalorder %s19, 7
    %p307 = scmp.ne.s32.totalorder %s302, %s304
    %p308 = scmp.eq.s32.totalorder %s19, 0
    %p309 = por %p307, %p308
    %p310 = scmp.ne.s32.totalorder %s302, %s304
    %p311 = scmp.eq.s32.totalorder %s24, 7
    %p312 = por %p310, %p311
    %p313 = scmp.ne.s32.totalorder %s304, %s305
    %p314 = scmp.eq.s32.totalorder %s24, 0
    %p315 = por %p313, %p314
    %p316 = scmp.ne.s32.totalorder %s304, %s305
    %p317 = scmp.eq.s32.totalorder %s25, 7
    %p318 = por %p316, %p317
    %p320 = scmp.ne.s32.totalorder %s305, %s319
    %p321 = scmp.eq.s32.totalorder %s25, 0
    %p322 = por %p320, %p321
    %s324 = sadd.s32 %s323, 1
    %p327 = scmp.eq.s32.totalorder %s19, 7
    %p328 = scmp.ne.s32.totalorder %s323, %s325
    %p329 = scmp.eq.s32.totalorder %s19, 0
    %p330 = por %p328, %p329
    %p331 = scmp.ne.s32.totalorder %s323, %s325
    %p332 = scmp.eq.s32.totalorder %s24, 7
    %p333 = por %p331, %p332
    %p334 = scmp.ne.s32.totalorder %s325, %s326
    %p335 = scmp.eq.s32.totalorder %s24, 0
    %p336 = por %p334, %p335
    %p337 = scmp.ne.s32.totalorder %s325, %s326
    %p338 = scmp.eq.s32.totalorder %s25, 7
    %p339 = por %p337, %p338
    %p341 = scmp.ne.s32.totalorder %s326, %s340
    %p342 = scmp.eq.s32.totalorder %s25, 0
    %p343 = por %p341, %p342
    %s345 = sadd.s32 %s344, 1
    %p348 = scmp.eq.s32.totalorder %s19, 7
    %p349 = scmp.ne.s32.totalorder %s344, %s346
    %p350 = scmp.eq.s32.totalorder %s19, 0
    %p351 = por %p349, %p350
    %p352 = scmp.ne.s32.totalorder %s344, %s346
    %p353 = scmp.eq.s32.totalorder %s24, 7
    %p354 = por %p352, %p353
    %p355 = scmp.ne.s32.totalorder %s346, %s347
    %p356 = scmp.eq.s32.totalorder %s24, 0
    %p357 = por %p355, %p356
    %p358 = scmp.ne.s32.totalorder %s346, %s347
    %p359 = scmp.eq.s32.totalorder %s25, 7
    %p360 = por %p358, %p359
    %p362 = scmp.ne.s32.totalorder %s347, %s361
    %p363 = scmp.eq.s32.totalorder %s25, 0
    %p364 = por %p362, %p363
    %s366 = sadd.s32 %s365, 1
    %p369 = scmp.eq.s32.totalorder %s19, 7
    %p370 = scmp.ne.s32.totalorder %s365, %s367
    %p371 = scmp.eq.s32.totalorder %s19, 0
    %p372 = por %p370, %p371
    %p373 = scmp.ne.s32.totalorder %s365, %s367
    %p374 = scmp.eq.s32.totalorder %s24, 7
    %p375 = por %p373, %p374
    %p376 = scmp.ne.s32.totalorder %s367, %s368
    %p377 = scmp.eq.s32.totalorder %s24, 0
    %p378 = por %p376, %p377
    %p379 = scmp.ne.s32.totalorder %s367, %s368
    %p380 = scmp.eq.s32.totalorder %s25, 7
    %p381 = por %p379, %p380
    %p383 = scmp.ne.s32.totalorder %s368, %s382
    %p384 = scmp.eq.s32.totalorder %s25, 0
    %p385 = por %p383, %p384
    %s386 = ssub.s32 %s26, %s38
    %s387 = ssub.s32 %s27, %s34
    %s388 = sor.u32 %s386, %s387
    %p389 = scmp.eq.s32.totalorder %s388, 0
    %s391 = sadd.s32 %s390, 1
    %s392 = scalar_select %p389, %s390, %s391
    %p395 = pneg %p389
    %p396 = scmp.eq.s32.totalorder %s19, 7
    %p397 = por %p395, %p396
    %p398 = scmp.ne.s32.totalorder %s390, %s393
    %p399 = scmp.eq.s32.totalorder %s19, 0
    %p400 = por %p398, %p399
    %p401 = scmp.ne.s32.totalorder %s390, %s393
    %p402 = scmp.eq.s32.totalorder %s24, 7
    %p403 = por %p401, %p402
    %p404 = scmp.ne.s32.totalorder %s393, %s394
    %p405 = scmp.eq.s32.totalorder %s24, 0
    %p406 = por %p404, %p405
    %p407 = scmp.ne.s32.totalorder %s393, %s394
    %p408 = scmp.eq.s32.totalorder %s25, 7
    %p409 = por %p407, %p408
    %p411 = scmp.ne.s32.totalorder %s394, %s410
    %p412 = scmp.eq.s32.totalorder %s25, 0
    %p413 = por %p411, %p412
    %p414 = scmp.le.s32.totalorder 1, %s19
    %p415 = scmp.lt.s32.totalorder %s19, 9
    %p416 = pnand %p414, %p415
    %p417 = pneg %p416
    // Predicated region
    $region9: #{upblok_forward.1} parent=5 // pred_check
      _
    $region10: #{upblok_forward.1} parent=5 // pred_check_branch
      %419 = sbr.rel (%p416) target = $region12
    $region11: #{upblok_forward.1} parent=5 // pred_region
      %s420 = ssub.s32 %s19, 1
      // Predicated region
      $region13: #{upblok_forward.1} parent=11 // pred_check
        %p421 = pneg %p252
      $region14: #{upblok_forward.1} parent=11 // pred_check_branch
        %423 = sbr.rel (%p421) target = $region16
      $region15: #{upblok_forward.1} parent=11 // pred_region
        _
      $region16: #{upblok_forward.1} parent=11 // pred_fallthru
        _
      // Predicated region
      $region17: #{upblok_forward.1} parent=11 // pred_check
        %p424 = pneg %p273
      $region18: #{upblok_forward.1} parent=11 // pred_check_branch
        %426 = sbr.rel (%p424) target = $region20
      $region19: #{upblok_forward.1} parent=11 // pred_region
        _
      $region20: #{upblok_forward.1} parent=11 // pred_fallthru
        _
      // Predicated region
      $region21: #{upblok_forward.1} parent=11 // pred_check
        %p427 = pneg %p294
      $region22: #{upblok_forward.1} parent=11 // pred_check_branch
        %429 = sbr.rel (%p427) target = $region24
      $region23: #{upblok_forward.1} parent=11 // pred_region
        _
      $region24: #{upblok_forward.1} parent=11 // pred_fallthru
        _
      // Predicated region
      $region25: #{upblok_forward.1} parent=11 // pred_check
        %p430 = pneg %p315
      $region26: #{upblok_forward.1} parent=11 // pred_check_branch
        %432 = sbr.rel (%p430) target = $region28
      $region27: #{upblok_forward.1} parent=11 // pred_region
        _
      $region28: #{upblok_forward.1} parent=11 // pred_fallthru
        _
      // Predicated region
      $region29: #{upblok_forward.1} parent=11 // pred_check
        %p433 = pneg %p336
      $region30: #{upblok_forward.1} parent=11 // pred_check_branch
        %435 = sbr.rel (%p433) target = $region32
      $region31: #{upblok_forward.1} parent=11 // pred_region
        _
      $region32: #{upblok_forward.1} parent=11 // pred_fallthru
        _
      // Predicated region
      $region33: #{upblok_forward.1} parent=11 // pred_check
        %p436 = pneg %p357
      $region34: #{upblok_forward.1} parent=11 // pred_check_branch
        %438 = sbr.rel (%p436) target = $region36
      $region35: #{upblok_forward.1} parent=11 // pred_region
        _
      $region36: #{upblok_forward.1} parent=11 // pred_fallthru
        _
      // Predicated region
      $region37: #{upblok_forward.1} parent=11 // pred_check
        %p439 = pneg %p378
      $region38: #{upblok_forward.1} parent=11 // pred_check_branch
        %441 = sbr.rel (%p439) target = $region40
      $region39: #{upblok_forward.1} parent=11 // pred_region
        _
      $region40: #{upblok_forward.1} parent=11 // pred_fallthru
        _
    $region12: #{upblok_forward.1} parent=5 // pred_fallthru
      _
    %p442 = scmp.lt.s32.totalorder %s19, 8
    // Predicated region
    $region41: #{upblok_forward.1} parent=5 // pred_check
      %p443 = pneg %p442
    $region42: #{upblok_forward.1} parent=5 // pred_check_branch
      %445 = sbr.rel (%p443) target = $region44
    $region43: #{upblok_forward.1} parent=5 // pred_region
      // Predicated region
      $region45: #{upblok_forward.1} parent=43 // pred_check
        %p446 = pneg %p53
      $region46: #{upblok_forward.1} parent=43 // pred_check_branch
        %448 = sbr.rel (%p446) target = $region48
      $region47: #{upblok_forward.1} parent=43 // pred_region
        %s449 = smul.u32 8, %s27
        %p450 = scmp.lt.s32.totalorder %s26, 1
        %s451 = scalar_select %p450, %s26, 1
        %p452 = scmp.lt.s32.totalorder %s449, 31
        %s453 = scalar_select %p452, %s449, 31
        %s454 = smul.addr %s451, 32
        %s455 = sadd.s32 %s453, %s454
        %s456 = smul.addr %s455, 4
        %s457 = scalar_lea.vmem %s0, %s456
        %s458 = smul.u32 8, %s27
      $region48: #{upblok_forward.1} parent=43 // pred_fallthru
        _
      // Predicated region
      $region49: #{upblok_forward.1} parent=43 // pred_check
        %p459 = pneg %p89
      $region50: #{upblok_forward.1} parent=43 // pred_check_branch
        %461 = sbr.rel (%p459) target = $region52
      $region51: #{upblok_forward.1} parent=43 // pred_region
        %s462 = smul.u32 %s27, 2
        %s463 = ssub.s32 %s462, 1
        %p464 = scmp.gt.s32.totalorder %s463, 0
        %s465 = scalar_select %p464, %s463, 0
        %p466 = scmp.lt.s32.totalorder %s26, 1
        %s467 = scalar_select %p466, %s26, 1
        %p468 = scmp.lt.s32.totalorder %s465, 7
        %s469 = scalar_select %p468, %s465, 7
        %s470 = smul.addr %s469, 4
        %s471 = smul.addr %s467, 32
        %s472 = sadd.s32 %s470, %s471
        %s473 = smul.addr %s472, 4
        %s474 = scalar_lea.vmem %s1, %s473
        %s475 = smul.u32 %s27, 2
        %s476 = ssub.s32 %s475, 1
        %p477 = scmp.gt.s32.totalorder %s476, 0
        %s478 = scalar_select %p477, %s476, 0
      $region52: #{upblok_forward.1} parent=43 // pred_fallthru
        _
      // Predicated region
      $region53: #{upblok_forward.1} parent=43 // pred_check
        %p479 = pneg %p125
      $region54: #{upblok_forward.1} parent=43 // pred_check_branch
        %481 = sbr.rel (%p479) target = $region56
      $region55: #{upblok_forward.1} parent=43 // pred_region
        %s482 = sadd.s32 %s27, 1
        %s483 = smul.u32 %s482, 2
        %p484 = scmp.lt.s32.totalorder %s483, 7
        %s485 = scalar_select %p484, %s483, 7
        %p486 = scmp.lt.s32.totalorder %s26, 1
        %s487 = scalar_select %p486, %s26, 1
        %p488 = scmp.lt.s32.totalorder %s485, 7
        %s489 = scalar_select %p488, %s485, 7
        %s490 = smul.addr %s489, 4
        %s491 = smul.addr %s487, 32
        %s492 = sadd.s32 %s490, %s491
        %s493 = smul.addr %s492, 4
        %s494 = scalar_lea.vmem %s2, %s493
        %s495 = sadd.s32 %s27, 1
        %s496 = smul.u32 %s495, 2
        %p497 = scmp.lt.s32.totalorder %s496, 7
        %s498 = scalar_select %p497, %s496, 7
      $region56: #{upblok_forward.1} parent=43 // pred_fallthru
        _
      // Predicated region
      $region57: #{upblok_forward.1} parent=43 // pred_check
        %p499 = pneg %p153
      $region58: #{upblok_forward.1} parent=43 // pred_check_branch
        %501 = sbr.rel (%p499) target = $region60
      $region59: #{upblok_forward.1} parent=43 // pred_region
        %s502 = smul.u32 8, %s27
        %p503 = scmp.lt.s32.totalorder %s26, 1
        %s504 = scalar_select %p503, %s26, 1
        %p505 = scmp.lt.s32.totalorder %s502, 31
        %s506 = scalar_select %p505, %s502, 31
        %s507 = smul.addr %s504, 32
        %s508 = sadd.s32 %s506, %s507
        %s509 = smul.addr %s508, 4
        %s510 = scalar_lea.vmem %s3, %s509
        %s511 = smul.u32 8, %s27
      $region60: #{upblok_forward.1} parent=43 // pred_fallthru
        _
      // Predicated region
      $region61: #{upblok_forward.1} parent=43 // pred_check
        %p512 = pneg %p189
      $region62: #{upblok_forward.1} parent=43 // pred_check_branch
        %514 = sbr.rel (%p512) target = $region64
      $region63: #{upblok_forward.1} parent=43 // pred_region
        %s515 = smul.u32 %s27, 2
        %s516 = ssub.s32 %s515, 1
        %p517 = scmp.gt.s32.totalorder %s516, 0
        %s518 = scalar_select %p517, %s516, 0
        %p519 = scmp.lt.s32.totalorder %s26, 1
        %s520 = scalar_select %p519, %s26, 1
        %p521 = scmp.lt.s32.totalorder %s518, 7
        %s522 = scalar_select %p521, %s518, 7
        %s523 = smul.addr %s522, 4
        %s524 = smul.addr %s520, 32
        %s525 = sadd.s32 %s523, %s524
        %s526 = smul.addr %s525, 4
        %s527 = scalar_lea.vmem %s4, %s526
        %s528 = smul.u32 %s27, 2
        %s529 = ssub.s32 %s528, 1
        %p530 = scmp.gt.s32.totalorder %s529, 0
        %s531 = scalar_select %p530, %s529, 0
      $region64: #{upblok_forward.1} parent=43 // pred_fallthru
        _
      // Predicated region
      $region65: #{upblok_forward.1} parent=43 // pred_check
        %p532 = pneg %p225
      $region66: #{upblok_forward.1} parent=43 // pred_check_branch
        %534 = sbr.rel (%p532) target = $region68
      $region67: #{upblok_forward.1} parent=43 // pred_region
        %s535 = sadd.s32 %s27, 1
        %s536 = smul.u32 %s535, 2
        %p537 = scmp.lt.s32.totalorder %s536, 7
        %s538 = scalar_select %p537, %s536, 7
        %p539 = scmp.lt.s32.totalorder %s26, 1
        %s540 = scalar_select %p539, %s26, 1
        %p541 = scmp.lt.s32.totalorder %s538, 7
        %s542 = scalar_select %p541, %s538, 7
        %s543 = smul.addr %s542, 4
        %s544 = smul.addr %s540, 32
        %s545 = sadd.s32 %s543, %s544
        %s546 = smul.addr %s545, 4
        %s547 = scalar_lea.vmem %s5, %s546
        %s548 = sadd.s32 %s27, 1
        %s549 = smul.u32 %s548, 2
        %p550 = scmp.lt.s32.totalorder %s549, 7
        %s551 = scalar_select %p550, %s549, 7
      $region68: #{upblok_forward.1} parent=43 // pred_fallthru
        _
    $region44: #{upblok_forward.1} parent=5 // pred_fallthru
      _
    %p552 = scmp.le.s32.totalorder 1, %s19
    %p553 = scmp.lt.s32.totalorder %s19, 9
    %p554 = pnand %p552, %p553
    %p555 = pneg %p554
    // Predicated region
    $region69: #{upblok_forward.1} parent=5 // pred_check
      _
    $region70: #{upblok_forward.1} parent=5 // pred_check_branch
      %557 = sbr.rel (%p554) target = $region72
    $region71: #{upblok_forward.1} parent=5 // pred_region
      %s558 = ssub.s32 %s19, 1
      %s559 = smul.u32 8, %s29
      %p560 = scmp.lt.s32.totalorder %s28, 1
      %s561 = scalar_select %p560, %s28, 1
      %p562 = scmp.lt.s32.totalorder %s559, 31
      %s563 = scalar_select %p562, %s559, 31
      %s564 = smul.addr %s561, 32
      %s565 = sadd.s32 %s563, %s564
      %s566 = smul.addr %s565, 4
      %s567 = scalar_lea.vmem %s0, %s566
      %p568 = pneg %p59
      %p569 = pneg %p56
      %s570 = smul.u32 %s29, 2
      %s571 = ssub.s32 %s570, 1
      %p572 = scmp.gt.s32.totalorder %s571, 0
      %s573 = scalar_select %p572, %s571, 0
      %p574 = scmp.lt.s32.totalorder %s28, 1
      %s575 = scalar_select %p574, %s28, 1
      %p576 = scmp.lt.s32.totalorder %s573, 7
      %s577 = scalar_select %p576, %s573, 7
      %s578 = smul.addr %s577, 4
      %s579 = smul.addr %s575, 32
      %s580 = sadd.s32 %s578, %s579
      %s581 = smul.addr %s580, 4
      %s582 = scalar_lea.vmem %s1, %s581
      %p583 = pneg %p95
      %p584 = pneg %p92
      %s585 = sadd.s32 %s29, 1
      %s586 = smul.u32 %s585, 2
      %p587 = scmp.lt.s32.totalorder %s586, 7
      %s588 = scalar_select %p587, %s586, 7
      %p589 = scmp.lt.s32.totalorder %s28, 1
      %s590 = scalar_select %p589, %s28, 1
      %p591 = scmp.lt.s32.totalorder %s588, 7
      %s592 = scalar_select %p591, %s588, 7
      %s593 = smul.addr %s592, 4
      %s594 = smul.addr %s590, 32
      %s595 = sadd.s32 %s593, %s594
      %s596 = smul.addr %s595, 4
      %s597 = scalar_lea.vmem %s2, %s596
      %p598 = pneg %p131
      %p599 = pneg %p128
      %s600 = smul.u32 8, %s29
      %p601 = scmp.lt.s32.totalorder %s28, 1
      %s602 = scalar_select %p601, %s28, 1
      %p603 = scmp.lt.s32.totalorder %s600, 31
      %s604 = scalar_select %p603, %s600, 31
      %s605 = smul.addr %s602, 32
      %s606 = sadd.s32 %s604, %s605
      %s607 = smul.addr %s606, 4
      %s608 = scalar_lea.vmem %s3, %s607
      %p609 = pneg %p159
      %p610 = pneg %p156
      %s611 = smul.u32 %s29, 2
      %s612 = ssub.s32 %s611, 1
      %p613 = scmp.gt.s32.totalorder %s612, 0
      %s614 = scalar_select %p613, %s612, 0
      %p615 = scmp.lt.s32.totalorder %s28, 1
      %s616 = scalar_select %p615, %s28, 1
      %p617 = scmp.lt.s32.totalorder %s614, 7
      %s618 = scalar_select %p617, %s614, 7
      %s619 = smul.addr %s618, 4
      %s620 = smul.addr %s616, 32
      %s621 = sadd.s32 %s619, %s620
      %s622 = smul.addr %s621, 4
      %s623 = scalar_lea.vmem %s4, %s622
      %p624 = pneg %p195
      %p625 = pneg %p192
      %s626 = sadd.s32 %s29, 1
      %s627 = smul.u32 %s626, 2
      %p628 = scmp.lt.s32.totalorder %s627, 7
      %s629 = scalar_select %p628, %s627, 7
      %p630 = scmp.lt.s32.totalorder %s28, 1
      %s631 = scalar_select %p630, %s28, 1
      %p632 = scmp.lt.s32.totalorder %s629, 7
      %s633 = scalar_select %p632, %s629, 7
      %s634 = smul.addr %s633, 4
      %s635 = smul.addr %s631, 32
      %s636 = sadd.s32 %s634, %s635
      %s637 = smul.addr %s636, 4
      %s638 = scalar_lea.vmem %s5, %s637
      %p639 = pneg %p231
      %p640 = pneg %p228
      %p641 = pneg %p252
      %p642 = pneg %p249
      %p643 = pneg %p273
      %p644 = pneg %p270
      %p645 = pneg %p294
      %p646 = pneg %p291
      %p647 = pneg %p315
      %p648 = pneg %p312
      %p649 = pneg %p336
      %p650 = pneg %p333
      %p651 = pneg %p357
      %p652 = pneg %p354
      %p653 = pneg %p378
      %p654 = pneg %p375
      %p655 = pneg %p406
      %p656 = pneg %p403
      %s657 = smul.u32 4, %s29
      %p658 = scmp.lt.s32.totalorder %s28, 1
      %s659 = scalar_select %p658, %s28, 1
      %p660 = scmp.lt.s32.totalorder %s657, 15
      %s661 = scalar_select %p660, %s657, 15
      %s662 = smul.addr %s661, 4
      %s663 = smul.addr %s659, 64
      %s664 = sadd.s32 %s662, %s663
      %s665 = smul.addr %s664, 4
      %s666 = scalar_lea.vmem %s13, %s665
      %s667 = smul.u32 8, %s29
      %p668 = scmp.lt.s32.totalorder %s28, 1
      %s669 = scalar_select %p668, %s28, 1
      %p670 = scmp.lt.s32.totalorder %s667, 31
      %s671 = scalar_select %p670, %s667, 31
      %s672 = smul.addr %s669, 32
      %s673 = sadd.s32 %s671, %s672
      %s674 = smul.addr %s673, 4
      %s675 = scalar_lea.vmem %s0, %s674
      %s676 = smul.u32 8, %s29
      %s677 = smul.u32 %s29, 2
      %s678 = ssub.s32 %s677, 1
      %p679 = scmp.gt.s32.totalorder %s678, 0
      %s680 = scalar_select %p679, %s678, 0
      %p681 = scmp.lt.s32.totalorder %s28, 1
      %s682 = scalar_select %p681, %s28, 1
      %p683 = scmp.lt.s32.totalorder %s680, 7
      %s684 = scalar_select %p683, %s680, 7
      %s685 = smul.addr %s684, 4
      %s686 = smul.addr %s682, 32
      %s687 = sadd.s32 %s685, %s686
      %s688 = smul.addr %s687, 4
      %s689 = scalar_lea.vmem %s1, %s688
      %s690 = smul.u32 %s29, 2
      %s691 = ssub.s32 %s690, 1
      %p692 = scmp.gt.s32.totalorder %s691, 0
      %s693 = scalar_select %p692, %s691, 0
      %s694 = sadd.s32 %s29, 1
      %s695 = smul.u32 %s694, 2
      %p696 = scmp.lt.s32.totalorder %s695, 7
      %s697 = scalar_select %p696, %s695, 7
      %p698 = scmp.lt.s32.totalorder %s28, 1
      %s699 = scalar_select %p698, %s28, 1
      %p700 = scmp.lt.s32.totalorder %s697, 7
      %s701 = scalar_select %p700, %s697, 7
      %s702 = smul.addr %s701, 4
      %s703 = smul.addr %s699, 32
      %s704 = sadd.s32 %s702, %s703
      %s705 = smul.addr %s704, 4
      %s706 = scalar_lea.vmem %s2, %s705
      %s707 = sadd.s32 %s29, 1
      %s708 = smul.u32 %s707, 2
      %p709 = scmp.lt.s32.totalorder %s708, 7
      %s710 = scalar_select %p709, %s708, 7
      %s711 = smul.u32 8, %s29
      %p712 = scmp.lt.s32.totalorder %s28, 1
      %s713 = scalar_select %p712, %s28, 1
      %p714 = scmp.lt.s32.totalorder %s711, 31
      %s715 = scalar_select %p714, %s711, 31
      %s716 = smul.addr %s713, 32
      %s717 = sadd.s32 %s715, %s716
      %s718 = smul.addr %s717, 4
      %s719 = scalar_lea.vmem %s3, %s718
      %s720 = smul.u32 8, %s29
      %s721 = smul.u32 %s29, 2
      %s722 = ssub.s32 %s721, 1
      %p723 = scmp.gt.s32.totalorder %s722, 0
      %s724 = scalar_select %p723, %s722, 0
      %p725 = scmp.lt.s32.totalorder %s28, 1
      %s726 = scalar_select %p725, %s28, 1
      %p727 = scmp.lt.s32.totalorder %s724, 7
      %s728 = scalar_select %p727, %s724, 7
      %s729 = smul.addr %s728, 4
      %s730 = smul.addr %s726, 32
      %s731 = sadd.s32 %s729, %s730
      %s732 = smul.addr %s731, 4
      %s733 = scalar_lea.vmem %s4, %s732
      %s734 = smul.u32 %s29, 2
      %s735 = ssub.s32 %s734, 1
      %p736 = scmp.gt.s32.totalorder %s735, 0
      %s737 = scalar_select %p736, %s735, 0
      %s738 = sadd.s32 %s29, 1
      %s739 = smul.u32 %s738, 2
      %p740 = scmp.lt.s32.totalorder %s739, 7
      %s741 = scalar_select %p740, %s739, 7
      %p742 = scmp.lt.s32.totalorder %s28, 1
      %s743 = scalar_select %p742, %s28, 1
      %p744 = scmp.lt.s32.totalorder %s741, 7
      %s745 = scalar_select %p744, %s741, 7
      %s746 = smul.addr %s745, 4
      %s747 = smul.addr %s743, 32
      %s748 = sadd.s32 %s746, %s747
      %s749 = smul.addr %s748, 4
      %s750 = scalar_lea.vmem %s5, %s749
      %s751 = sadd.s32 %s29, 1
      %s752 = smul.u32 %s751, 2
      %p753 = scmp.lt.s32.totalorder %s752, 7
      %s754 = scalar_select %p753, %s752, 7
      %s755 = smul.u32 4, %s29
      %p756 = scmp.lt.s32.totalorder %s28, 1
      %s757 = scalar_select %p756, %s28, 1
      %p758 = scmp.lt.s32.totalorder %s755, 15
      %s759 = scalar_select %p758, %s755, 15
      %s760 = smul.addr %s759, 4
      %s761 = smul.addr %s757, 64
      %s762 = sadd.s32 %s760, %s761
      %s763 = smul.addr %s762, 4
      %s764 = scalar_lea.vmem %s13, %s763
      %s765 = smul.u32 4, %s29
      %s767 = smul.u32 %s29, 4
      %v768 = vlaneseq
      %v769 = vshrl.u32 %v768, 7
      %v770 = vadd.s32 %v769, 8
      %v771 = vadd.s32 %v769, 16
      %v772 = vadd.s32 %v769, 24
      %s773 = ssub.s32 2, %s767
      %s774 = smul.u32 %s773, 16
      %v775 = vstv %s774
      %vm776 = vcmp.ge.s32.totalorder %v769, %v775
      %vm777 = vcmp.ge.s32.totalorder %v770, %v775
      %vm778 = vcmp.ge.s32.totalorder %v771, %v775
      %vm779 = vcmp.ge.s32.totalorder %v772, %v775
      %v780 = vld [vmem:[%s689] sm:$0xf]
      %v781 = vld [vmem:[%s689 + $0x4] sm:$0xf]
      %v782 = vld [vmem:[%s689 + $0x8] sm:$0xf]
      %v783 = vld [vmem:[%s689 + $0xc] sm:$0xf]
      %v784 = vld [vmem:[%s733] sm:$0xf]
      %v785 = vld [vmem:[%s733 + $0x4] sm:$0xf]
      %v786 = vld [vmem:[%s733 + $0x8] sm:$0xf]
      %v787 = vld [vmem:[%s733 + $0xc] sm:$0xf]
      %v788 = vld [vmem:[%s6] sm:$0x1]
      %v789 = vld [vmem:[%s7] sm:$0x1]
      %v794 = vunpack.c.l.b16 %v784
      %v795 = vunpack.c.l.b16 %v785
      %v796 = vunpack.c.l.b16 %v786
      %v797 = vunpack.c.l.b16 %v787
      %v798 = vpack.c.b16 %v795, %v794
      %v799 = vpack.c.b16 %v797, %v796
      %vm800 = vcmask 15360
      %v802 = vsel %vm800, %v798, 0
      %v805 = vsel %vm800, %v799, 0
      %vm807 = vcmask 1040384
      %v809 = vsel %vm807, %v789, 0
      %811 = vmatprep.subr.bf16.mxu0 0
      %812 = vmatpush1.bf16.msra.mxu0 0
      %813 = vmatprep.subr.bf16.mxu0 0
      %814 = vmatpush1.bf16.msra.mxu0 0
      %815 = vmatprep.subr.bf16.mxu0 0
      %816 = vmatpush1.bf16.msra.mxu0 0
      %817 = vmatprep.subr.bf16.mxu0 0
      %818 = vmatpush1.bf16.msra.mxu0 0
      %819 = vmatprep.subr.bf16.mxu0 0
      %820 = vmatpush1.bf16.msra.mxu0 0
      %821 = vmatprep.subr.bf16.mxu0 0
      %822 = vmatpush1.bf16.msra.mxu0 0
      %823 = vmatprep.subr.bf16.mxu0 0
      %824 = vmatpush1.bf16.msra.mxu0 0
      %825 = vmatprep.subr.bf16.mxu0 0
      %826 = vmatpush1.bf16.msra.mxu0 %v809
      %827 = vmatprep.subr.bf16.mxu0 0
      %828 = vmatpush2.bf16.msra.mxu0 0
      %829 = vmatprep.subr.bf16.mxu0 0
      %830 = vmatpush2.bf16.msra.mxu0 0
      %831 = vmatprep.subr.bf16.mxu0 0
      %832 = vmatpush2.bf16.msra.mxu0 0
      %833 = vmatprep.subr.bf16.mxu0 0
      %834 = vmatpush2.bf16.msra.mxu0 0
      %835 = vmatprep.subr.bf16.mxu0 0
      %836 = vmatpush2.bf16.msra.mxu0 0
      %837 = vmatprep.subr.bf16.mxu0 0
      %838 = vmatpush2.bf16.msra.mxu0 0
      %839 = vmatprep.subr.bf16.mxu0 0
      %840 = vmatpush2.bf16.msra.mxu0 0
      %841 = vmatprep.subr.bf16.mxu0 0
      %842 = vmatpush2.bf16.msra.mxu0 0
      %843 = vmatprep.mubr.bf16.mxu0 0
      %844 = vmatmul.mubr.bf16.gmra.mxu0 %v802
      %v845 = vpop.f32.mrf.mxu0
      %v846 = vadd.f32 0.0, %v845
      %v847 = vpop.f32.mrf.mxu0
      %v848 = vpop.f32.mrf.mxu0
      %v849 = vadd.f32 0.0, %v848
      %v850 = vpop.f32.mrf.mxu0
      %851 = vmatprep.mubr.bf16.mxu0 0
      %852 = vmatmul.mubr.bf16.gmra.mxu0 %v805
      %v853 = vpop.f32.mrf.mxu0
      %v854 = vadd.f32 0.0, %v853
      %v855 = vpop.f32.mrf.mxu0
      %v856 = vpop.f32.mrf.mxu0
      %v857 = vadd.f32 0.0, %v856
      %v858 = vpop.f32.mrf.mxu0
      %859 = vdwg.mxu0
      %v864 = vunpack.c.l.b16 %v780
      %v865 = vunpack.c.l.b16 %v781
      %v866 = vunpack.c.l.b16 %v782
      %v867 = vunpack.c.l.b16 %v783
      %v868 = vpack.c.b16 %v865, %v864
      %v869 = vpack.c.b16 %v867, %v866
      %v871 = vsel %vm800, %v868, 0
      %v874 = vsel %vm800, %v869, 0
      %v877 = vsel %vm807, %v788, 0
      %879 = vmatprep.subr.bf16.mxu0 0
      %880 = vmatpush1.bf16.msra.mxu0 0
      %881 = vmatprep.subr.bf16.mxu0 0
      %882 = vmatpush1.bf16.msra.mxu0 0
      %883 = vmatprep.subr.bf16.mxu0 0
      %884 = vmatpush1.bf16.msra.mxu0 0
      %885 = vmatprep.subr.bf16.mxu0 0
      %886 = vmatpush1.bf16.msra.mxu0 0
      %887 = vmatprep.subr.bf16.mxu0 0
      %888 = vmatpush1.bf16.msra.mxu0 0
      %889 = vmatprep.subr.bf16.mxu0 0
      %890 = vmatpush1.bf16.msra.mxu0 0
      %891 = vmatprep.subr.bf16.mxu0 0
      %892 = vmatpush1.bf16.msra.mxu0 0
      %893 = vmatprep.subr.bf16.mxu0 0
      %894 = vmatpush1.bf16.msra.mxu0 %v877
      %895 = vmatprep.subr.bf16.mxu0 0
      %896 = vmatpush2.bf16.msra.mxu0 0
      %897 = vmatprep.subr.bf16.mxu0 0
      %898 = vmatpush2.bf16.msra.mxu0 0
      %899 = vmatprep.subr.bf16.mxu0 0
      %900 = vmatpush2.bf16.msra.mxu0 0
      %901 = vmatprep.subr.bf16.mxu0 0
      %902 = vmatpush2.bf16.msra.mxu0 0
      %903 = vmatprep.subr.bf16.mxu0 0
      %904 = vmatpush2.bf16.msra.mxu0 0
      %905 = vmatprep.subr.bf16.mxu0 0
      %906 = vmatpush2.bf16.msra.mxu0 0
      %907 = vmatprep.subr.bf16.mxu0 0
      %908 = vmatpush2.bf16.msra.mxu0 0
      %909 = vmatprep.subr.bf16.mxu0 0
      %910 = vmatpush2.bf16.msra.mxu0 0
      %911 = vmatprep.mubr.bf16.mxu0 0
      %912 = vmatmul.mubr.bf16.gmra.mxu0 %v871
      %v913 = vpop.f32.mrf.mxu0
      %v914 = vadd.f32 %v846, %v913
      %v915 = vpop.f32.mrf.mxu0
      %v916 = vpop.f32.mrf.mxu0
      %v917 = vadd.f32 %v849, %v916
      %v918 = vpop.f32.mrf.mxu0
      %919 = vmatprep.mubr.bf16.mxu0 0
      %920 = vmatmul.mubr.bf16.gmra.mxu0 %v874
      %v921 = vpop.f32.mrf.mxu0
      %v922 = vadd.f32 %v854, %v921
      %v923 = vpop.f32.mrf.mxu0
      %v924 = vpop.f32.mrf.mxu0
      %v925 = vadd.f32 %v857, %v924
      %v926 = vpop.f32.mrf.mxu0
      %927 = vdwg.mxu0
      %v928 = vld [vmem:[%s8] sm:$0x1]
      %v930 = vlaneseq
      %v931 = vshrl.u32 %v930, 7
      %v932 = vsub.s32 0, %v931
      %v933 = vrot.slane %v928, %v932
      %v935 = vadd.f32 %v914, %v933
      %v936 = vadd.f32 %v917, %v933
      %v937 = vadd.f32 %v922, %v933
      %v938 = vadd.f32 %v925, %v933
      %v939 = vmax.f32 %v935, 0.0
      %v940 = vmax.f32 %v936, 0.0
      %v941 = vmax.f32 %v937, 0.0
      %v942 = vmax.f32 %v938, 0.0
      %v943 = vsel %vm776, 1, 0
      %v944 = vsel %vm777, 1, 0
      %v945 = vsel %vm778, 1, 0
      %v946 = vsel %vm779, 1, 0
      %vm947 = vcmp.eq.s32.totalorder %v943, 1
      %vm948 = vcmp.eq.s32.totalorder %v944, 1
      %vm949 = vcmp.eq.s32.totalorder %v945, 1
      %vm950 = vcmp.eq.s32.totalorder %v946, 1
      %v951 = vsel %vm947, %v939, 0.0
      %v952 = vsel %vm948, %v940, 0.0
      %v953 = vsel %vm949, %v941, 0.0
      %v954 = vsel %vm950, %v942, 0.0
      %s955 = ssub.s32 12, %s767
      %s956 = smul.u32 %s955, 16
      %v957 = vstv %s956
      %vm958 = vcmp.lt.s32.totalorder %v769, %v957
      %vm959 = vcmp.lt.s32.totalorder %v770, %v957
      %vm960 = vcmp.lt.s32.totalorder %v771, %v957
      %vm961 = vcmp.lt.s32.totalorder %v772, %v957
      %v962 = vld [vmem:[%s706] sm:$0xf]
      %v963 = vld [vmem:[%s706 + $0x4] sm:$0xf]
      %v964 = vld [vmem:[%s706 + $0x8] sm:$0xf]
      %v965 = vld [vmem:[%s706 + $0xc] sm:$0xf]
      %v966 = vld [vmem:[%s750] sm:$0xf]
      %v967 = vld [vmem:[%s750 + $0x4] sm:$0xf]
      %v968 = vld [vmem:[%s750 + $0x8] sm:$0xf]
      %v969 = vld [vmem:[%s750 + $0xc] sm:$0xf]
      %v974 = vunpack.c.l.b16 %v966
      %v975 = vunpack.c.l.b16 %v967
      %v976 = vunpack.c.l.b16 %v968
      %v977 = vunpack.c.l.b16 %v969
      %v978 = vpack.c.b16 %v975, %v974
      %v979 = vpack.c.b16 %v977, %v976
      %v981 = vsel %vm800, %v978, 0
      %v984 = vsel %vm800, %v979, 0
      %986 = vmatprep.subr.bf16.mxu0 0
      %987 = vmatpush1.bf16.msra.mxu0 0
      %988 = vmatprep.subr.bf16.mxu0 0
      %989 = vmatpush1.bf16.msra.mxu0 0
      %990 = vmatprep.subr.bf16.mxu0 0
      %991 = vmatpush1.bf16.msra.mxu0 0
      %992 = vmatprep.subr.bf16.mxu0 0
      %993 = vmatpush1.bf16.msra.mxu0 0
      %994 = vmatprep.subr.bf16.mxu0 0
      %995 = vmatpush1.bf16.msra.mxu0 0
      %996 = vmatprep.subr.bf16.mxu0 0
      %997 = vmatpush1.bf16.msra.mxu0 0
      %998 = vmatprep.subr.bf16.mxu0 0
      %999 = vmatpush1.bf16.msra.mxu0 0
      %1000 = vmatprep.subr.bf16.mxu0 0
      %1001 = vmatpush1.bf16.msra.mxu0 %v809
      %1002 = vmatprep.subr.bf16.mxu0 0
      %1003 = vmatpush2.bf16.msra.mxu0 0
      %1004 = vmatprep.subr.bf16.mxu0 0
      %1005 = vmatpush2.bf16.msra.mxu0 0
      %1006 = vmatprep.subr.bf16.mxu0 0
      %1007 = vmatpush2.bf16.msra.mxu0 0
      %1008 = vmatprep.subr.bf16.mxu0 0
      %1009 = vmatpush2.bf16.msra.mxu0 0
      %1010 = vmatprep.subr.bf16.mxu0 0
      %1011 = vmatpush2.bf16.msra.mxu0 0
      %1012 = vmatprep.subr.bf16.mxu0 0
      %1013 = vmatpush2.bf16.msra.mxu0 0
      %1014 = vmatprep.subr.bf16.mxu0 0
      %1015 = vmatpush2.bf16.msra.mxu0 0
      %1016 = vmatprep.subr.bf16.mxu0 0
      %1017 = vmatpush2.bf16.msra.mxu0 0
      %1018 = vmatprep.mubr.bf16.mxu0 0
      %1019 = vmatmul.mubr.bf16.gmra.mxu0 %v981
      %v1020 = vpop.f32.mrf.mxu0
      %v1021 = vadd.f32 0.0, %v1020
      %v1022 = vpop.f32.mrf.mxu0
      %v1023 = vpop.f32.mrf.mxu0
      %v1024 = vadd.f32 0.0, %v1023
      %v1025 = vpop.f32.mrf.mxu0
      %1026 = vmatprep.mubr.bf16.mxu0 0
      %1027 = vmatmul.mubr.bf16.gmra.mxu0 %v984
      %v1028 = vpop.f32.mrf.mxu0
      %v1029 = vadd.f32 0.0, %v1028
      %v1030 = vpop.f32.mrf.mxu0
      %v1031 = vpop.f32.mrf.mxu0
      %v1032 = vadd.f32 0.0, %v1031
      %v1033 = vpop.f32.mrf.mxu0
      %1034 = vdwg.mxu0
      %v1039 = vunpack.c.l.b16 %v962
      %v1040 = vunpack.c.l.b16 %v963
      %v1041 = vunpack.c.l.b16 %v964
      %v1042 = vunpack.c.l.b16 %v965
      %v1043 = vpack.c.b16 %v1040, %v1039
      %v1044 = vpack.c.b16 %v1042, %v1041
      %v1046 = vsel %vm800, %v1043, 0
      %v1049 = vsel %vm800, %v1044, 0
      %1051 = vmatprep.subr.bf16.mxu0 0
      %1052 = vmatpush1.bf16.msra.mxu0 0
      %1053 = vmatprep.subr.bf16.mxu0 0
      %1054 = vmatpush1.bf16.msra.mxu0 0
      %1055 = vmatprep.subr.bf16.mxu0 0
      %1056 = vmatpush1.bf16.msra.mxu0 0
      %1057 = vmatprep.subr.bf16.mxu0 0
      %1058 = vmatpush1.bf16.msra.mxu0 0
      %1059 = vmatprep.subr.bf16.mxu0 0
      %1060 = vmatpush1.bf16.msra.mxu0 0
      %1061 = vmatprep.subr.bf16.mxu0 0
      %1062 = vmatpush1.bf16.msra.mxu0 0
      %1063 = vmatprep.subr.bf16.mxu0 0
      %1064 = vmatpush1.bf16.msra.mxu0 0
      %1065 = vmatprep.subr.bf16.mxu0 0
      %1066 = vmatpush1.bf16.msra.mxu0 %v877
      %1067 = vmatprep.subr.bf16.mxu0 0
      %1068 = vmatpush2.bf16.msra.mxu0 0
      %1069 = vmatprep.subr.bf16.mxu0 0
      %1070 = vmatpush2.bf16.msra.mxu0 0
      %1071 = vmatprep.subr.bf16.mxu0 0
      %1072 = vmatpush2.bf16.msra.mxu0 0
      %1073 = vmatprep.subr.bf16.mxu0 0
      %1074 = vmatpush2.bf16.msra.mxu0 0
      %1075 = vmatprep.subr.bf16.mxu0 0
      %1076 = vmatpush2.bf16.msra.mxu0 0
      %1077 = vmatprep.subr.bf16.mxu0 0
      %1078 = vmatpush2.bf16.msra.mxu0 0
      %1079 = vmatprep.subr.bf16.mxu0 0
      %1080 = vmatpush2.bf16.msra.mxu0 0
      %1081 = vmatprep.subr.bf16.mxu0 0
      %1082 = vmatpush2.bf16.msra.mxu0 0
      %1083 = vmatprep.mubr.bf16.mxu0 0
      %1084 = vmatmul.mubr.bf16.gmra.mxu0 %v1046
      %v1085 = vpop.f32.mrf.mxu0
      %v1086 = vadd.f32 %v1021, %v1085
      %v1087 = vpop.f32.mrf.mxu0
      %v1088 = vpop.f32.mrf.mxu0
      %v1089 = vadd.f32 %v1024, %v1088
      %v1090 = vpop.f32.mrf.mxu0
      %1091 = vmatprep.mubr.bf16.mxu0 0
      %1092 = vmatmul.mubr.bf16.gmra.mxu0 %v1049
      %v1093 = vpop.f32.mrf.mxu0
      %v1094 = vadd.f32 %v1029, %v1093
      %v1095 = vpop.f32.mrf.mxu0
      %v1096 = vpop.f32.mrf.mxu0
      %v1097 = vadd.f32 %v1032, %v1096
      %v1098 = vpop.f32.mrf.mxu0
      %1099 = vdwg.mxu0
      %v1100 = vadd.f32 %v1086, %v933
      %v1101 = vadd.f32 %v1089, %v933
      %v1102 = vadd.f32 %v1094, %v933
      %v1103 = vadd.f32 %v1097, %v933
      %v1104 = vmax.f32 %v1100, 0.0
      %v1105 = vmax.f32 %v1101, 0.0
      %v1106 = vmax.f32 %v1102, 0.0
      %v1107 = vmax.f32 %v1103, 0.0
      %v1108 = vsel %vm958, 1, 0
      %v1109 = vsel %vm959, 1, 0
      %v1110 = vsel %vm960, 1, 0
      %v1111 = vsel %vm961, 1, 0
      %vm1112 = vcmp.eq.s32.totalorder %v1108, 1
      %vm1113 = vcmp.eq.s32.totalorder %v1109, 1
      %vm1114 = vcmp.eq.s32.totalorder %v1110, 1
      %vm1115 = vcmp.eq.s32.totalorder %v1111, 1
      %v1116 = vsel %vm1112, %v1104, 0.0
      %v1117 = vsel %vm1113, %v1105, 0.0
      %v1118 = vsel %vm1114, %v1106, 0.0
      %v1119 = vsel %vm1115, %v1107, 0.0
      %vm1120 = vcmask 31744
      %1121 = vst.msk [vmem:[#allocation2] sm:$0xff] %vm1120, %v951
      %1122 = vst.msk [vmem:[#allocation2 + $0x8] sm:$0xff] %vm1120, %v952
      %1123 = vst.msk [vmem:[#allocation2 + $0x10] sm:$0xff] %vm1120, %v953
      %1124 = vst.msk [vmem:[#allocation2 + $0x18] sm:$0xff] %vm1120, %v954
      %v1125 = vld [vmem:[%s675] sm:$0xf]
      %v1126 = vld [vmem:[%s675 + $0x4] sm:$0xf]
      %v1127 = vld [vmem:[%s675 + $0x8] sm:$0xf]
      %v1128 = vld [vmem:[%s675 + $0xc] sm:$0xf]
      %v1129 = vld [vmem:[%s675 + $0x10] sm:$0xf]
      %v1130 = vld [vmem:[%s675 + $0x14] sm:$0xf]
      %v1131 = vld [vmem:[%s675 + $0x18] sm:$0xf]
      %v1132 = vld [vmem:[%s675 + $0x1c] sm:$0xf]
      %v1133 = vld [vmem:[%s719] sm:$0xf]
      %v1134 = vld [vmem:[%s719 + $0x4] sm:$0xf]
      %v1135 = vld [vmem:[%s719 + $0x8] sm:$0xf]
      %v1136 = vld [vmem:[%s719 + $0xc] sm:$0xf]
      %v1137 = vld [vmem:[%s719 + $0x10] sm:$0xf]
      %v1138 = vld [vmem:[%s719 + $0x14] sm:$0xf]
      %v1139 = vld [vmem:[%s719 + $0x18] sm:$0xf]
      %v1140 = vld [vmem:[%s719 + $0x1c] sm:$0xf]
      %v1141 = vld [vmem:[%s6] sm:$0x1]
      %v1142 = vld [vmem:[%s7] sm:$0x1]
      %v1151 = vunpack.c.l.b16 %v1133
      %v1152 = vunpack.c.l.b16 %v1134
      %v1153 = vunpack.c.l.b16 %v1135
      %v1154 = vunpack.c.l.b16 %v1136
      %v1155 = vunpack.c.l.b16 %v1137
      %v1156 = vunpack.c.l.b16 %v1138
      %v1157 = vunpack.c.l.b16 %v1139
      %v1158 = vunpack.c.l.b16 %v1140
      %v1159 = vpack.c.b16 %v1152, %v1151
      %v1160 = vpack.c.b16 %v1154, %v1153
      %v1161 = vpack.c.b16 %v1156, %v1155
      %v1162 = vpack.c.b16 %v1158, %v1157
      %v1164 = vsel %vm800, %v1159, 0
      %v1167 = vsel %vm800, %v1160, 0
      %v1170 = vsel %vm800, %v1161, 0
      %v1173 = vsel %vm800, %v1162, 0
      %v1176 = vsel %vm807, %v1142, 0
      %1178 = vmatprep.subr.bf16.mxu0 0
      %1179 = vmatpush1.bf16.msra.mxu0 0
      %1180 = vmatprep.subr.bf16.mxu0 0
      %1181 = vmatpush1.bf16.msra.mxu0 0
      %1182 = vmatprep.subr.bf16.mxu0 0
      %1183 = vmatpush1.bf16.msra.mxu0 0
      %1184 = vmatprep.subr.bf16.mxu0 0
      %1185 = vmatpush1.bf16.msra.mxu0 0
      %1186 = vmatprep.subr.bf16.mxu0 0
      %1187 = vmatpush1.bf16.msra.mxu0 0
      %1188 = vmatprep.subr.bf16.mxu0 0
      %1189 = vmatpush1.bf16.msra.mxu0 0
      %1190 = vmatprep.subr.bf16.mxu0 0
      %1191 = vmatpush1.bf16.msra.mxu0 0
      %1192 = vmatprep.subr.bf16.mxu0 0
      %1193 = vmatpush1.bf16.msra.mxu0 %v1176
      %1194 = vmatprep.subr.bf16.mxu0 0
      %1195 = vmatpush2.bf16.msra.mxu0 0
      %1196 = vmatprep.subr.bf16.mxu0 0
      %1197 = vmatpush2.bf16.msra.mxu0 0
      %1198 = vmatprep.subr.bf16.mxu0 0
      %1199 = vmatpush2.bf16.msra.mxu0 0
      %1200 = vmatprep.subr.bf16.mxu0 0
      %1201 = vmatpush2.bf16.msra.mxu0 0
      %1202 = vmatprep.subr.bf16.mxu0 0
      %1203 = vmatpush2.bf16.msra.mxu0 0
      %1204 = vmatprep.subr.bf16.mxu0 0
      %1205 = vmatpush2.bf16.msra.mxu0 0
      %1206 = vmatprep.subr.bf16.mxu0 0
      %1207 = vmatpush2.bf16.msra.mxu0 0
      %1208 = vmatprep.subr.bf16.mxu0 0
      %1209 = vmatpush2.bf16.msra.mxu0 0
      %1210 = vmatprep.mubr.bf16.mxu0 0
      %1211 = vmatmul.mubr.bf16.gmra.mxu0 %v1164
      %v1212 = vpop.f32.mrf.mxu0
      %v1213 = vadd.f32 0.0, %v1212
      %v1214 = vpop.f32.mrf.mxu0
      %v1215 = vpop.f32.mrf.mxu0
      %v1216 = vadd.f32 0.0, %v1215
      %v1217 = vpop.f32.mrf.mxu0
      %1218 = vmatprep.mubr.bf16.mxu0 0
      %1219 = vmatmul.mubr.bf16.gmra.mxu0 %v1167
      %v1220 = vpop.f32.mrf.mxu0
      %v1221 = vadd.f32 0.0, %v1220
      %v1222 = vpop.f32.mrf.mxu0
      %v1223 = vpop.f32.mrf.mxu0
      %v1224 = vadd.f32 0.0, %v1223
      %v1225 = vpop.f32.mrf.mxu0
      %1226 = vmatprep.mubr.bf16.mxu0 0
      %1227 = vmatmul.mubr.bf16.gmra.mxu0 %v1170
      %v1228 = vpop.f32.mrf.mxu0
      %v1229 = vadd.f32 0.0, %v1228
      %v1230 = vpop.f32.mrf.mxu0
      %v1231 = vpop.f32.mrf.mxu0
      %v1232 = vadd.f32 0.0, %v1231
      %v1233 = vpop.f32.mrf.mxu0
      %1234 = vmatprep.mubr.bf16.mxu0 0
      %1235 = vmatmul.mubr.bf16.gmra.mxu0 %v1173
      %v1236 = vpop.f32.mrf.mxu0
      %v1237 = vadd.f32 0.0, %v1236
      %v1238 = vpop.f32.mrf.mxu0
      %v1239 = vpop.f32.mrf.mxu0
      %v1240 = vadd.f32 0.0, %v1239
      %v1241 = vpop.f32.mrf.mxu0
      %1242 = vdwg.mxu0
      %v1251 = vunpack.c.l.b16 %v1125
      %v1252 = vunpack.c.l.b16 %v1126
      %v1253 = vunpack.c.l.b16 %v1127
      %v1254 = vunpack.c.l.b16 %v1128
      %v1255 = vunpack.c.l.b16 %v1129
      %v1256 = vunpack.c.l.b16 %v1130
      %v1257 = vunpack.c.l.b16 %v1131
      %v1258 = vunpack.c.l.b16 %v1132
      %v1259 = vpack.c.b16 %v1252, %v1251
      %v1260 = vpack.c.b16 %v1254, %v1253
      %v1261 = vpack.c.b16 %v1256, %v1255
      %v1262 = vpack.c.b16 %v1258, %v1257
      %v1264 = vsel %vm800, %v1259, 0
      %v1267 = vsel %vm800, %v1260, 0
      %v1270 = vsel %vm800, %v1261, 0
      %v1273 = vsel %vm800, %v1262, 0
      %v1276 = vsel %vm807, %v1141, 0
      %1278 = vmatprep.subr.bf16.mxu0 0
      %1279 = vmatpush1.bf16.msra.mxu0 0
      %1280 = vmatprep.subr.bf16.mxu0 0
      %1281 = vmatpush1.bf16.msra.mxu0 0
      %1282 = vmatprep.subr.bf16.mxu0 0
      %1283 = vmatpush1.bf16.msra.mxu0 0
      %1284 = vmatprep.subr.bf16.mxu0 0
      %1285 = vmatpush1.bf16.msra.mxu0 0
      %1286 = vmatprep.subr.bf16.mxu0 0
      %1287 = vmatpush1.bf16.msra.mxu0 0
      %1288 = vmatprep.subr.bf16.mxu0 0
      %1289 = vmatpush1.bf16.msra.mxu0 0
      %1290 = vmatprep.subr.bf16.mxu0 0
      %1291 = vmatpush1.bf16.msra.mxu0 0
      %1292 = vmatprep.subr.bf16.mxu0 0
      %1293 = vmatpush1.bf16.msra.mxu0 %v1276
      %1294 = vmatprep.subr.bf16.mxu0 0
      %1295 = vmatpush2.bf16.msra.mxu0 0
      %1296 = vmatprep.subr.bf16.mxu0 0
      %1297 = vmatpush2.bf16.msra.mxu0 0
      %1298 = vmatprep.subr.bf16.mxu0 0
      %1299 = vmatpush2.bf16.msra.mxu0 0
      %1300 = vmatprep.subr.bf16.mxu0 0
      %1301 = vmatpush2.bf16.msra.mxu0 0
      %1302 = vmatprep.subr.bf16.mxu0 0
      %1303 = vmatpush2.bf16.msra.mxu0 0
      %1304 = vmatprep.subr.bf16.mxu0 0
      %1305 = vmatpush2.bf16.msra.mxu0 0
      %1306 = vmatprep.subr.bf16.mxu0 0
      %1307 = vmatpush2.bf16.msra.mxu0 0
      %1308 = vmatprep.subr.bf16.mxu0 0
      %1309 = vmatpush2.bf16.msra.mxu0 0
      %1310 = vmatprep.mubr.bf16.mxu0 0
      %1311 = vmatmul.mubr.bf16.gmra.mxu0 %v1264
      %v1312 = vpop.f32.mrf.mxu0
      %v1313 = vadd.f32 %v1213, %v1312
      %v1314 = vpop.f32.mrf.mxu0
      %v1315 = vpop.f32.mrf.mxu0
      %v1316 = vadd.f32 %v1216, %v1315
      %v1317 = vpop.f32.mrf.mxu0
      %1318 = vmatprep.mubr.bf16.mxu0 0
      %1319 = vmatmul.mubr.bf16.gmra.mxu0 %v1267
      %v1320 = vpop.f32.mrf.mxu0
      %v1321 = vadd.f32 %v1221, %v1320
      %v1322 = vpop.f32.mrf.mxu0
      %v1323 = vpop.f32.mrf.mxu0
      %v1324 = vadd.f32 %v1224, %v1323
      %v1325 = vpop.f32.mrf.mxu0
      %1326 = vmatprep.mubr.bf16.mxu0 0
      %1327 = vmatmul.mubr.bf16.gmra.mxu0 %v1270
      %v1328 = vpop.f32.mrf.mxu0
      %v1329 = vadd.f32 %v1229, %v1328
      %v1330 = vpop.f32.mrf.mxu0
      %v1331 = vpop.f32.mrf.mxu0
      %v1332 = vadd.f32 %v1232, %v1331
      %v1333 = vpop.f32.mrf.mxu0
      %1334 = vmatprep.mubr.bf16.mxu0 0
      %1335 = vmatmul.mubr.bf16.gmra.mxu0 %v1273
      %v1336 = vpop.f32.mrf.mxu0
      %v1337 = vadd.f32 %v1237, %v1336
      %v1338 = vpop.f32.mrf.mxu0
      %v1339 = vpop.f32.mrf.mxu0
      %v1340 = vadd.f32 %v1240, %v1339
      %v1341 = vpop.f32.mrf.mxu0
      %1342 = vdwg.mxu0
      %v1343 = vld [vmem:[%s8] sm:$0x1]
      %v1345 = vlaneseq
      %v1346 = vshrl.u32 %v1345, 7
      %v1347 = vsub.s32 0, %v1346
      %v1348 = vrot.slane %v1343, %v1347
      %v1350 = vadd.f32 %v1313, %v1348
      %v1351 = vadd.f32 %v1316, %v1348
      %v1352 = vadd.f32 %v1321, %v1348
      %v1353 = vadd.f32 %v1324, %v1348
      %v1354 = vadd.f32 %v1329, %v1348
      %v1355 = vadd.f32 %v1332, %v1348
      %v1356 = vadd.f32 %v1337, %v1348
      %v1357 = vadd.f32 %v1340, %v1348
      %v1358 = vmax.f32 %v1350, 0.0
      %v1359 = vmax.f32 %v1351, 0.0
      %v1360 = vmax.f32 %v1352, 0.0
      %v1361 = vmax.f32 %v1353, 0.0
      %v1362 = vmax.f32 %v1354, 0.0
      %v1363 = vmax.f32 %v1355, 0.0
      %v1364 = vmax.f32 %v1356, 0.0
      %v1365 = vmax.f32 %v1357, 0.0
      %1366 = vst.msk [vmem:[#allocation2 + $0x20] sm:$0xff] %vm1120, %v1358
      %1367 = vst.msk [vmem:[#allocation2 + $0x28] sm:$0xff] %vm1120, %v1359
      %1368 = vst.msk [vmem:[#allocation2 + $0x30] sm:$0xff] %vm1120, %v1360
      %1369 = vst.msk [vmem:[#allocation2 + $0x38] sm:$0xff] %vm1120, %v1361
      %1370 = vst.msk [vmem:[#allocation2 + $0x40] sm:$0xff] %vm1120, %v1362
      %1371 = vst.msk [vmem:[#allocation2 + $0x48] sm:$0xff] %vm1120, %v1363
      %1372 = vst.msk [vmem:[#allocation2 + $0x50] sm:$0xff] %vm1120, %v1364
      %1373 = vst.msk [vmem:[#allocation2 + $0x58] sm:$0xff] %vm1120, %v1365
      %1374 = vst.msk [vmem:[#allocation2 + $0x60] sm:$0xff] %vm1120, %v1116
      %1375 = vst.msk [vmem:[#allocation2 + $0x68] sm:$0xff] %vm1120, %v1117
      %1376 = vst.msk [vmem:[#allocation2 + $0x70] sm:$0xff] %vm1120, %v1118
      %1377 = vst.msk [vmem:[#allocation2 + $0x78] sm:$0xff] %vm1120, %v1119
      %v1378 = vld [vmem:[#allocation2] sm:$0xff]
      %v1379 = vld [vmem:[#allocation2 + $0x8] sm:$0xff]
      %v1380 = vld [vmem:[#allocation2 + $0x10] sm:$0xff]
      %v1381 = vld [vmem:[#allocation2 + $0x18] sm:$0xff]
      %v1382 = vld [vmem:[#allocation2 + $0x20] sm:$0xff]
      %v1383 = vld [vmem:[#allocation2 + $0x28] sm:$0xff]
      %v1384 = vld [vmem:[#allocation2 + $0x30] sm:$0xff]
      %v1385 = vld [vmem:[#allocation2 + $0x38] sm:$0xff]
      %v1386 = vld [vmem:[#allocation2 + $0x40] sm:$0xff]
      %v1387 = vld [vmem:[#allocation2 + $0x48] sm:$0xff]
      %v1388 = vld [vmem:[#allocation2 + $0x50] sm:$0xff]
      %v1389 = vld [vmem:[#allocation2 + $0x58] sm:$0xff]
      %v1390 = vld [vmem:[#allocation2 + $0x60] sm:$0xff]
      %v1391 = vld [vmem:[#allocation2 + $0x68] sm:$0xff]
      %v1392 = vld [vmem:[#allocation2 + $0x70] sm:$0xff]
      %v1393 = vld [vmem:[#allocation2 + $0x78] sm:$0xff]
      %v1394 = vadd.s32 %v769, 32
      %v1395 = vadd.s32 %v769, 40
      %v1396 = vadd.s32 %v769, 48
      %v1397 = vadd.s32 %v769, 56
      %v1398 = vadd.s32 %v769, 64
      %v1399 = vadd.s32 %v769, 72
      %v1400 = vadd.s32 %v769, 80
      %v1401 = vadd.s32 %v769, 88
      %v1402 = vadd.s32 %v769, 96
      %v1403 = vadd.s32 %v769, 104
      %v1404 = vadd.s32 %v769, 112
      %v1405 = vadd.s32 %v769, 120
      %vm1406 = vcmp.lt.s32.totalorder %v769, 0
      %v1407 = vsub.s32 0, %v769
      %v1408 = vsel %vm1406, %v1407, %v769
      %v1409 = vshrl.u32 %v1408, 4
      %v1410 = vand.u32 %v1408, 15
      %v1411 = vsub.s32 0, %v1410
      %v1412 = vsel %vm1406, %v1411, %v1410
      %vm1413 = vcmp.lt.s32.totalorder %v770, 0
      %v1414 = vsub.s32 0, %v770
      %v1415 = vsel %vm1413, %v1414, %v770
      %v1416 = vshrl.u32 %v1415, 4
      %v1417 = vand.u32 %v1415, 15
      %v1418 = vsub.s32 0, %v1417
      %v1419 = vsel %vm1413, %v1418, %v1417
      %vm1420 = vcmp.lt.s32.totalorder %v771, 0
      %v1421 = vsub.s32 0, %v771
      %v1422 = vsel %vm1420, %v1421, %v771
      %v1423 = vshrl.u32 %v1422, 4
      %v1424 = vand.u32 %v1422, 15
      %v1425 = vsub.s32 0, %v1424
      %v1426 = vsel %vm1420, %v1425, %v1424
      %vm1427 = vcmp.lt.s32.totalorder %v772, 0
      %v1428 = vsub.s32 0, %v772
      %v1429 = vsel %vm1427, %v1428, %v772
      %v1430 = vshrl.u32 %v1429, 4
      %v1431 = vand.u32 %v1429, 15
      %v1432 = vsub.s32 0, %v1431
      %v1433 = vsel %vm1427, %v1432, %v1431
      %vm1434 = vcmp.lt.s32.totalorder %v1394, 0
      %v1435 = vsub.s32 0, %v1394
      %v1436 = vsel %vm1434, %v1435, %v1394
      %v1437 = vshrl.u32 %v1436, 4
      %v1438 = vand.u32 %v1436, 15
      %v1439 = vsub.s32 0, %v1438
      %v1440 = vsel %vm1434, %v1439, %v1438
      %vm1441 = vcmp.lt.s32.totalorder %v1395, 0
      %v1442 = vsub.s32 0, %v1395
      %v1443 = vsel %vm1441, %v1442, %v1395
      %v1444 = vshrl.u32 %v1443, 4
      %v1445 = vand.u32 %v1443, 15
      %v1446 = vsub.s32 0, %v1445
      %v1447 = vsel %vm1441, %v1446, %v1445
      %vm1448 = vcmp.lt.s32.totalorder %v1396, 0
      %v1449 = vsub.s32 0, %v1396
      %v1450 = vsel %vm1448, %v1449, %v1396
      %v1451 = vshrl.u32 %v1450, 4
      %v1452 = vand.u32 %v1450, 15
      %v1453 = vsub.s32 0, %v1452
      %v1454 = vsel %vm1448, %v1453, %v1452
      %vm1455 = vcmp.lt.s32.totalorder %v1397, 0
      %v1456 = vsub.s32 0, %v1397
      %v1457 = vsel %vm1455, %v1456, %v1397
      %v1458 = vshrl.u32 %v1457, 4
      %v1459 = vand.u32 %v1457, 15
      %v1460 = vsub.s32 0, %v1459
      %v1461 = vsel %vm1455, %v1460, %v1459
      %vm1462 = vcmp.lt.s32.totalorder %v1398, 0
      %v1463 = vsub.s32 0, %v1398
      %v1464 = vsel %vm1462, %v1463, %v1398
      %v1465 = vshrl.u32 %v1464, 4
      %v1466 = vand.u32 %v1464, 15
      %v1467 = vsub.s32 0, %v1466
      %v1468 = vsel %vm1462, %v1467, %v1466
      %vm1469 = vcmp.lt.s32.totalorder %v1399, 0
      %v1470 = vsub.s32 0, %v1399
      %v1471 = vsel %vm1469, %v1470, %v1399
      %v1472 = vshrl.u32 %v1471, 4
      %v1473 = vand.u32 %v1471, 15
      %v1474 = vsub.s32 0, %v1473
      %v1475 = vsel %vm1469, %v1474, %v1473
      %vm1476 = vcmp.lt.s32.totalorder %v1400, 0
      %v1477 = vsub.s32 0, %v1400
      %v1478 = vsel %vm1476, %v1477, %v1400
      %v1479 = vshrl.u32 %v1478, 4
      %v1480 = vand.u32 %v1478, 15
      %v1481 = vsub.s32 0, %v1480
      %v1482 = vsel %vm1476, %v1481, %v1480
      %vm1483 = vcmp.lt.s32.totalorder %v1401, 0
      %v1484 = vsub.s32 0, %v1401
      %v1485 = vsel %vm1483, %v1484, %v1401
      %v1486 = vshrl.u32 %v1485, 4
      %v1487 = vand.u32 %v1485, 15
      %v1488 = vsub.s32 0, %v1487
      %v1489 = vsel %vm1483, %v1488, %v1487
      %vm1490 = vcmp.lt.s32.totalorder %v1402, 0
      %v1491 = vsub.s32 0, %v1402
      %v1492 = vsel %vm1490, %v1491, %v1402
      %v1493 = vshrl.u32 %v1492, 4
      %v1494 = vand.u32 %v1492, 15
      %v1495 = vsub.s32 0, %v1494
      %v1496 = vsel %vm1490, %v1495, %v1494
      %vm1497 = vcmp.lt.s32.totalorder %v1403, 0
      %v1498 = vsub.s32 0, %v1403
      %v1499 = vsel %vm1497, %v1498, %v1403
      %v1500 = vshrl.u32 %v1499, 4
      %v1501 = vand.u32 %v1499, 15
      %v1502 = vsub.s32 0, %v1501
      %v1503 = vsel %vm1497, %v1502, %v1501
      %vm1504 = vcmp.lt.s32.totalorder %v1404, 0
      %v1505 = vsub.s32 0, %v1404
      %v1506 = vsel %vm1504, %v1505, %v1404
      %v1507 = vshrl.u32 %v1506, 4
      %v1508 = vand.u32 %v1506, 15
      %v1509 = vsub.s32 0, %v1508
      %v1510 = vsel %vm1504, %v1509, %v1508
      %vm1511 = vcmp.lt.s32.totalorder %v1405, 0
      %v1512 = vsub.s32 0, %v1405
      %v1513 = vsel %vm1511, %v1512, %v1405
      %v1514 = vshrl.u32 %v1513, 4
      %v1515 = vand.u32 %v1513, 15
      %v1516 = vsub.s32 0, %v1515
      %v1517 = vsel %vm1511, %v1516, %v1515
      %vm1518 = vcmp.ne.s32.totalorder %v1412, 0
      %vm1519 = vcmp.ne.s32.totalorder %v1419, 0
      %vm1520 = vcmp.ne.s32.totalorder %v1426, 0
      %vm1521 = vcmp.ne.s32.totalorder %v1433, 0
      %vm1522 = vcmp.ne.s32.totalorder %v1440, 0
      %vm1523 = vcmp.ne.s32.totalorder %v1447, 0
      %vm1524 = vcmp.ne.s32.totalorder %v1454, 0
      %vm1525 = vcmp.ne.s32.totalorder %v1461, 0
      %vm1526 = vcmp.ne.s32.totalorder %v1468, 0
      %vm1527 = vcmp.ne.s32.totalorder %v1475, 0
      %vm1528 = vcmp.ne.s32.totalorder %v1482, 0
      %vm1529 = vcmp.ne.s32.totalorder %v1489, 0
      %vm1530 = vcmp.ne.s32.totalorder %v1496, 0
      %vm1531 = vcmp.ne.s32.totalorder %v1503, 0
      %vm1532 = vcmp.ne.s32.totalorder %v1510, 0
      %vm1533 = vcmp.ne.s32.totalorder %v1517, 0
      %vm1534 = vcmp.lt.s32.totalorder %v1412, 0
      %vm1535 = vcmp.lt.s32.totalorder %v1419, 0
      %vm1536 = vcmp.lt.s32.totalorder %v1426, 0
      %vm1537 = vcmp.lt.s32.totalorder %v1433, 0
      %vm1538 = vcmp.lt.s32.totalorder %v1440, 0
      %vm1539 = vcmp.lt.s32.totalorder %v1447, 0
      %vm1540 = vcmp.lt.s32.totalorder %v1454, 0
      %vm1541 = vcmp.lt.s32.totalorder %v1461, 0
      %vm1542 = vcmp.lt.s32.totalorder %v1468, 0
      %vm1543 = vcmp.lt.s32.totalorder %v1475, 0
      %vm1544 = vcmp.lt.s32.totalorder %v1482, 0
      %vm1545 = vcmp.lt.s32.totalorder %v1489, 0
      %vm1546 = vcmp.lt.s32.totalorder %v1496, 0
      %vm1547 = vcmp.lt.s32.totalorder %v1503, 0
      %vm1548 = vcmp.lt.s32.totalorder %v1510, 0
      %vm1549 = vcmp.lt.s32.totalorder %v1517, 0
      %vm1550 = vmand %vm1534, %vm1518
      %vm1551 = vmand %vm1535, %vm1519
      %vm1552 = vmand %vm1536, %vm1520
      %vm1553 = vmand %vm1537, %vm1521
      %vm1554 = vmand %vm1538, %vm1522
      %vm1555 = vmand %vm1539, %vm1523
      %vm1556 = vmand %vm1540, %vm1524
      %vm1557 = vmand %vm1541, %vm1525
      %vm1558 = vmand %vm1542, %vm1526
      %vm1559 = vmand %vm1543, %vm1527
      %vm1560 = vmand %vm1544, %vm1528
      %vm1561 = vmand %vm1545, %vm1529
      %vm1562 = vmand %vm1546, %vm1530
      %vm1563 = vmand %vm1547, %vm1531
      %vm1564 = vmand %vm1548, %vm1532
      %vm1565 = vmand %vm1549, %vm1533
      %v1566 = vadd.s32 %v1412, 16
      %v1567 = vadd.s32 %v1419, 16
      %v1568 = vadd.s32 %v1426, 16
      %v1569 = vadd.s32 %v1433, 16
      %v1570 = vadd.s32 %v1440, 16
      %v1571 = vadd.s32 %v1447, 16
      %v1572 = vadd.s32 %v1454, 16
      %v1573 = vadd.s32 %v1461, 16
      %v1574 = vadd.s32 %v1468, 16
      %v1575 = vadd.s32 %v1475, 16
      %v1576 = vadd.s32 %v1482, 16
      %v1577 = vadd.s32 %v1489, 16
      %v1578 = vadd.s32 %v1496, 16
      %v1579 = vadd.s32 %v1503, 16
      %v1580 = vadd.s32 %v1510, 16
      %v1581 = vadd.s32 %v1517, 16
      %v1582 = vsel %vm1550, %v1566, %v1412
      %v1583 = vsel %vm1551, %v1567, %v1419
      %v1584 = vsel %vm1552, %v1568, %v1426
      %v1585 = vsel %vm1553, %v1569, %v1433
      %v1586 = vsel %vm1554, %v1570, %v1440
      %v1587 = vsel %vm1555, %v1571, %v1447
      %v1588 = vsel %vm1556, %v1572, %v1454
      %v1589 = vsel %vm1557, %v1573, %v1461
      %v1590 = vsel %vm1558, %v1574, %v1468
      %v1591 = vsel %vm1559, %v1575, %v1475
      %v1592 = vsel %vm1560, %v1576, %v1482
      %v1593 = vsel %vm1561, %v1577, %v1489
      %v1594 = vsel %vm1562, %v1578, %v1496
      %v1595 = vsel %vm1563, %v1579, %v1503
      %v1596 = vsel %vm1564, %v1580, %v1510
      %v1597 = vsel %vm1565, %v1581, %v1517
      %vm1598 = vcmp.eq.s32.totalorder %v1582, 0
      %vm1599 = vcmp.eq.s32.totalorder %v1583, 0
      %vm1600 = vcmp.eq.s32.totalorder %v1584, 0
      %vm1601 = vcmp.eq.s32.totalorder %v1585, 0
      %vm1602 = vcmp.eq.s32.totalorder %v1586, 0
      %vm1603 = vcmp.eq.s32.totalorder %v1587, 0
      %vm1604 = vcmp.eq.s32.totalorder %v1588, 0
      %vm1605 = vcmp.eq.s32.totalorder %v1589, 0
      %vm1606 = vcmp.eq.s32.totalorder %v1590, 0
      %vm1607 = vcmp.eq.s32.totalorder %v1591, 0
      %vm1608 = vcmp.eq.s32.totalorder %v1592, 0
      %vm1609 = vcmp.eq.s32.totalorder %v1593, 0
      %vm1610 = vcmp.eq.s32.totalorder %v1594, 0
      %vm1611 = vcmp.eq.s32.totalorder %v1595, 0
      %vm1612 = vcmp.eq.s32.totalorder %v1596, 0
      %vm1613 = vcmp.eq.s32.totalorder %v1597, 0
      %v1614 = vsel %vm1598, 1, 0
      %v1615 = vsel %vm1599, 1, 0
      %v1616 = vsel %vm1600, 1, 0
      %v1617 = vsel %vm1601, 1, 0
      %v1618 = vsel %vm1602, 1, 0
      %v1619 = vsel %vm1603, 1, 0
      %v1620 = vsel %vm1604, 1, 0
      %v1621 = vsel %vm1605, 1, 0
      %v1622 = vsel %vm1606, 1, 0
      %v1623 = vsel %vm1607, 1, 0
      %v1624 = vsel %vm1608, 1, 0
      %v1625 = vsel %vm1609, 1, 0
      %v1626 = vsel %vm1610, 1, 0
      %v1627 = vsel %vm1611, 1, 0
      %v1628 = vsel %vm1612, 1, 0
      %v1629 = vsel %vm1613, 1, 0
      %vm1630 = vcmp.eq.s32.totalorder %v1614, 1
      %vm1631 = vcmp.eq.s32.totalorder %v1615, 1
      %vm1632 = vcmp.eq.s32.totalorder %v1616, 1
      %vm1633 = vcmp.eq.s32.totalorder %v1617, 1
      %vm1634 = vcmp.eq.s32.totalorder %v1618, 1
      %vm1635 = vcmp.eq.s32.totalorder %v1619, 1
      %vm1636 = vcmp.eq.s32.totalorder %v1620, 1
      %vm1637 = vcmp.eq.s32.totalorder %v1621, 1
      %vm1638 = vcmp.eq.s32.totalorder %v1622, 1
      %vm1639 = vcmp.eq.s32.totalorder %v1623, 1
      %vm1640 = vcmp.eq.s32.totalorder %v1624, 1
      %vm1641 = vcmp.eq.s32.totalorder %v1625, 1
      %vm1642 = vcmp.eq.s32.totalorder %v1626, 1
      %vm1643 = vcmp.eq.s32.totalorder %v1627, 1
      %vm1644 = vcmp.eq.s32.totalorder %v1628, 1
      %vm1645 = vcmp.eq.s32.totalorder %v1629, 1
      %v1646 = vsel %vm1630, 0.0, %v1378
      %v1647 = vsel %vm1631, 0.0, %v1379
      %v1648 = vsel %vm1632, 0.0, %v1380
      %v1649 = vsel %vm1633, 0.0, %v1381
      %v1650 = vsel %vm1634, 0.0, %v1382
      %v1651 = vsel %vm1635, 0.0, %v1383
      %v1652 = vsel %vm1636, 0.0, %v1384
      %v1653 = vsel %vm1637, 0.0, %v1385
      %v1654 = vsel %vm1638, 0.0, %v1386
      %v1655 = vsel %vm1639, 0.0, %v1387
      %v1656 = vsel %vm1640, 0.0, %v1388
      %v1657 = vsel %vm1641, 0.0, %v1389
      %v1658 = vsel %vm1642, 0.0, %v1390
      %v1659 = vsel %vm1643, 0.0, %v1391
      %v1660 = vsel %vm1644, 0.0, %v1392
      %v1661 = vsel %vm1645, 0.0, %v1393
      %v1662 = vrot.slane %v1646, 1
      %v1663 = vrot.slane %v1647, 1
      %v1664 = vrot.slane %v1648, 1
      %v1665 = vrot.slane %v1649, 1
      %v1666 = vrot.slane %v1650, 1
      %v1667 = vrot.slane %v1651, 1
      %v1668 = vrot.slane %v1652, 1
      %v1669 = vrot.slane %v1653, 1
      %v1670 = vrot.slane %v1654, 1
      %v1671 = vrot.slane %v1655, 1
      %v1672 = vrot.slane %v1656, 1
      %v1673 = vrot.slane %v1657, 1
      %v1674 = vrot.slane %v1658, 1
      %v1675 = vrot.slane %v1659, 1
      %v1676 = vrot.slane %v1660, 1
      %v1677 = vrot.slane %v1661, 1
      %vm1678 = vcmp.lt.s32.totalorder %v769, 7
      %v1679 = vsel %vm1678, %v1676, %v1677
      %v1680 = vsel %vm1678, %v1675, %v1676
      %v1681 = vsel %vm1678, %v1674, %v1675
      %v1682 = vsel %vm1678, %v1673, %v1674
      %v1683 = vsel %vm1678, %v1672, %v1673
      %v1684 = vsel %vm1678, %v1671, %v1672
      %v1685 = vsel %vm1678, %v1670, %v1671
      %v1686 = vsel %vm1678, %v1669, %v1670
      %v1687 = vsel %vm1678, %v1668, %v1669
      %v1688 = vsel %vm1678, %v1667, %v1668
      %v1689 = vsel %vm1678, %v1666, %v1667
      %v1690 = vsel %vm1678, %v1665, %v1666
      %v1691 = vsel %vm1678, %v1664, %v1665
      %v1692 = vsel %vm1678, %v1663, %v1664
      %v1693 = vsel %vm1678, %v1662, %v1663
      %v1694 = vsel %vm1678, %v1677, %v1662
      %vm1695 = vcmp.eq.s32.totalorder %v1582, 15
      %vm1696 = vcmp.eq.s32.totalorder %v1583, 15
      %vm1697 = vcmp.eq.s32.totalorder %v1584, 15
      %vm1698 = vcmp.eq.s32.totalorder %v1585, 15
      %vm1699 = vcmp.eq.s32.totalorder %v1586, 15
      %vm1700 = vcmp.eq.s32.totalorder %v1587, 15
      %vm1701 = vcmp.eq.s32.totalorder %v1588, 15
      %vm1702 = vcmp.eq.s32.totalorder %v1589, 15
      %vm1703 = vcmp.eq.s32.totalorder %v1590, 15
      %vm1704 = vcmp.eq.s32.totalorder %v1591, 15
      %vm1705 = vcmp.eq.s32.totalorder %v1592, 15
      %vm1706 = vcmp.eq.s32.totalorder %v1593, 15
      %vm1707 = vcmp.eq.s32.totalorder %v1594, 15
      %vm1708 = vcmp.eq.s32.totalorder %v1595, 15
      %vm1709 = vcmp.eq.s32.totalorder %v1596, 15
      %vm1710 = vcmp.eq.s32.totalorder %v1597, 15
      %v1711 = vsel %vm1695, 1, 0
      %v1712 = vsel %vm1696, 1, 0
      %v1713 = vsel %vm1697, 1, 0
      %v1714 = vsel %vm1698, 1, 0
      %v1715 = vsel %vm1699, 1, 0
      %v1716 = vsel %vm1700, 1, 0
      %v1717 = vsel %vm1701, 1, 0
      %v1718 = vsel %vm1702, 1, 0
      %v1719 = vsel %vm1703, 1, 0
      %v1720 = vsel %vm1704, 1, 0
      %v1721 = vsel %vm1705, 1, 0
      %v1722 = vsel %vm1706, 1, 0
      %v1723 = vsel %vm1707, 1, 0
      %v1724 = vsel %vm1708, 1, 0
      %v1725 = vsel %vm1709, 1, 0
      %v1726 = vsel %vm1710, 1, 0
      %vm1727 = vcmp.eq.s32.totalorder %v1711, 1
      %vm1728 = vcmp.eq.s32.totalorder %v1712, 1
      %vm1729 = vcmp.eq.s32.totalorder %v1713, 1
      %vm1730 = vcmp.eq.s32.totalorder %v1714, 1
      %vm1731 = vcmp.eq.s32.totalorder %v1715, 1
      %vm1732 = vcmp.eq.s32.totalorder %v1716, 1
      %vm1733 = vcmp.eq.s32.totalorder %v1717, 1
      %vm1734 = vcmp.eq.s32.totalorder %v1718, 1
      %vm1735 = vcmp.eq.s32.totalorder %v1719, 1
      %vm1736 = vcmp.eq.s32.totalorder %v1720, 1
      %vm1737 = vcmp.eq.s32.totalorder %v1721, 1
      %vm1738 = vcmp.eq.s32.totalorder %v1722, 1
      %vm1739 = vcmp.eq.s32.totalorder %v1723, 1
      %vm1740 = vcmp.eq.s32.totalorder %v1724, 1
      %vm1741 = vcmp.eq.s32.totalorder %v1725, 1
      %vm1742 = vcmp.eq.s32.totalorder %v1726, 1
      %v1743 = vsel %vm1727, 0.0, %v1378
      %v1744 = vsel %vm1728, 0.0, %v1379
      %v1745 = vsel %vm1729, 0.0, %v1380
      %v1746 = vsel %vm1730, 0.0, %v1381
      %v1747 = vsel %vm1731, 0.0, %v1382
      %v1748 = vsel %vm1732, 0.0, %v1383
      %v1749 = vsel %vm1733, 0.0, %v1384
      %v1750 = vsel %vm1734, 0.0, %v1385
      %v1751 = vsel %vm1735, 0.0, %v1386
      %v1752 = vsel %vm1736, 0.0, %v1387
      %v1753 = vsel %vm1737, 0.0, %v1388
      %v1754 = vsel %vm1738, 0.0, %v1389
      %v1755 = vsel %vm1739, 0.0, %v1390
      %v1756 = vsel %vm1740, 0.0, %v1391
      %v1757 = vsel %vm1741, 0.0, %v1392
      %v1758 = vsel %vm1742, 0.0, %v1393
      %v1759 = vrot.slane %v1743, 7
      %v1760 = vrot.slane %v1744, 7
      %v1761 = vrot.slane %v1745, 7
      %v1762 = vrot.slane %v1746, 7
      %v1763 = vrot.slane %v1747, 7
      %v1764 = vrot.slane %v1748, 7
      %v1765 = vrot.slane %v1749, 7
      %v1766 = vrot.slane %v1750, 7
      %v1767 = vrot.slane %v1751, 7
      %v1768 = vrot.slane %v1752, 7
      %v1769 = vrot.slane %v1753, 7
      %v1770 = vrot.slane %v1754, 7
      %v1771 = vrot.slane %v1755, 7
      %v1772 = vrot.slane %v1756, 7
      %v1773 = vrot.slane %v1757, 7
      %v1774 = vrot.slane %v1758, 7
      %vm1775 = vcmp.lt.s32.totalorder %v769, 1
      %v1776 = vsel %vm1775, %v1773, %v1774
      %v1777 = vsel %vm1775, %v1772, %v1773
      %v1778 = vsel %vm1775, %v1771, %v1772
      %v1779 = vsel %vm1775, %v1770, %v1771
      %v1780 = vsel %vm1775, %v1769, %v1770
      %v1781 = vsel %vm1775, %v1768, %v1769
      %v1782 = vsel %vm1775, %v1767, %v1768
      %v1783 = vsel %vm1775, %v1766, %v1767
      %v1784 = vsel %vm1775, %v1765, %v1766
      %v1785 = vsel %vm1775, %v1764, %v1765
      %v1786 = vsel %vm1775, %v1763, %v1764
      %v1787 = vsel %vm1775, %v1762, %v1763
      %v1788 = vsel %vm1775, %v1761, %v1762
      %v1789 = vsel %vm1775, %v1760, %v1761
      %v1790 = vsel %vm1775, %v1759, %v1760
      %v1791 = vsel %vm1775, %v1774, %v1759
      %v1792 = vpack.c.bf16 %v1790, %v1791
      %v1793 = vpack.c.bf16 %v1788, %v1789
      %v1794 = vpack.c.bf16 %v1786, %v1787
      %v1795 = vpack.c.bf16 %v1784, %v1785
      %v1796 = vpack.c.bf16 %v1782, %v1783
      %v1797 = vpack.c.bf16 %v1780, %v1781
      %v1798 = vpack.c.bf16 %v1778, %v1779
      %v1799 = vpack.c.bf16 %v1776, %v1777
      %v1800 = vpack.c.bf16 %v1379, %v1378
      %v1801 = vpack.c.bf16 %v1381, %v1380
      %v1802 = vpack.c.bf16 %v1383, %v1382
      %v1803 = vpack.c.bf16 %v1385, %v1384
      %v1804 = vpack.c.bf16 %v1387, %v1386
      %v1805 = vpack.c.bf16 %v1389, %v1388
      %v1806 = vpack.c.bf16 %v1391, %v1390
      %v1807 = vpack.c.bf16 %v1393, %v1392
      %v1808 = vpack.c.bf16 %v1692, %v1693
      %v1809 = vpack.c.bf16 %v1690, %v1691
      %v1810 = vpack.c.bf16 %v1688, %v1689
      %v1811 = vpack.c.bf16 %v1686, %v1687
      %v1812 = vpack.c.bf16 %v1684, %v1685
      %v1813 = vpack.c.bf16 %v1682, %v1683
      %v1814 = vpack.c.bf16 %v1680, %v1681
      %v1815 = vpack.c.bf16 %v1694, %v1679
      %v1816 = vld [vmem:[%s10] sm:$0x1]
      %v1818 = vlaneseq
      %v1819 = vshrl.u32 %v1818, 7
      %v1820 = vsub.s32 0, %v1819
      %v1821 = vrot.slane %v1816, %v1820
      %v1823 = vadd.f32 %v1821, 0.0
      %v1824 = vld [vmem:[%s9] sm:$0x3]
      %v1826 = vsel %vm1120, %v1792, 0
      %v1829 = vsel %vm1120, %v1793, 0
      %v1832 = vsel %vm1120, %v1794, 0
      %v1835 = vsel %vm1120, %v1795, 0
      %v1838 = vsel %vm1120, %v1796, 0
      %v1841 = vsel %vm1120, %v1797, 0
      %vm1843 = vcmask 1041408
      %v1845 = vsel %vm1843, %v1824, 0
      %1847 = vmatprep.subr.bf16.mxu0 0
      %1848 = vmatpush1.bf16.msra.mxu0 0
      %1849 = vmatprep.subr.bf16.mxu0 0
      %1850 = vmatpush1.bf16.msra.mxu0 0
      %1851 = vmatprep.subr.bf16.mxu0 0
      %1852 = vmatpush1.bf16.msra.mxu0 0
      %1853 = vmatprep.subr.bf16.mxu0 0
      %1854 = vmatpush1.bf16.msra.mxu0 0
      %1855 = vmatprep.subr.bf16.mxu0 0
      %1856 = vmatpush1.bf16.msra.mxu0 0
      %1857 = vmatprep.subr.bf16.mxu0 0
      %1858 = vmatpush1.bf16.msra.mxu0 0
      %1859 = vmatprep.subr.bf16.mxu0 0
      %1860 = vmatpush1.bf16.msra.mxu0 0
      %1861 = vmatprep.subr.bf16.mxu0 0
      %1862 = vmatpush1.bf16.msra.mxu0 %v1845
      %1863 = vmatprep.subr.bf16.mxu0 0
      %1864 = vmatpush2.bf16.msra.mxu0 0
      %1865 = vmatprep.subr.bf16.mxu0 0
      %1866 = vmatpush2.bf16.msra.mxu0 0
      %1867 = vmatprep.subr.bf16.mxu0 0
      %1868 = vmatpush2.bf16.msra.mxu0 0
      %1869 = vmatprep.subr.bf16.mxu0 0
      %1870 = vmatpush2.bf16.msra.mxu0 0
      %1871 = vmatprep.subr.bf16.mxu0 0
      %1872 = vmatpush2.bf16.msra.mxu0 0
      %1873 = vmatprep.subr.bf16.mxu0 0
      %1874 = vmatpush2.bf16.msra.mxu0 0
      %1875 = vmatprep.subr.bf16.mxu0 0
      %1876 = vmatpush2.bf16.msra.mxu0 0
      %1877 = vmatprep.subr.bf16.mxu0 0
      %1878 = vmatpush2.bf16.msra.mxu0 0
      %1879 = vmatprep.mubr.bf16.mxu0 0
      %1880 = vmatmul.mubr.bf16.gmra.mxu0 %v1826
      %v1881 = vpop.f32.mrf.mxu0
      %v1882 = vadd.f32 0.0, %v1881
      %v1883 = vpop.f32.mrf.mxu0
      %v1884 = vpop.f32.mrf.mxu0
      %v1885 = vadd.f32 0.0, %v1884
      %v1886 = vpop.f32.mrf.mxu0
      %1887 = vmatprep.mubr.bf16.mxu0 0
      %1888 = vmatmul.mubr.bf16.gmra.mxu0 %v1829
      %v1889 = vpop.f32.mrf.mxu0
      %v1890 = vadd.f32 0.0, %v1889
      %v1891 = vpop.f32.mrf.mxu0
      %v1892 = vpop.f32.mrf.mxu0
      %v1893 = vadd.f32 0.0, %v1892
      %v1894 = vpop.f32.mrf.mxu0
      %1895 = vmatprep.mubr.bf16.mxu0 0
      %1896 = vmatmul.mubr.bf16.gmra.mxu0 %v1832
      %v1897 = vpop.f32.mrf.mxu0
      %v1898 = vadd.f32 0.0, %v1897
      %v1899 = vpop.f32.mrf.mxu0
      %v1900 = vpop.f32.mrf.mxu0
      %v1901 = vadd.f32 0.0, %v1900
      %v1902 = vpop.f32.mrf.mxu0
      %1903 = vmatprep.mubr.bf16.mxu0 0
      %1904 = vmatmul.mubr.bf16.gmra.mxu0 %v1835
      %v1905 = vpop.f32.mrf.mxu0
      %v1906 = vadd.f32 0.0, %v1905
      %v1907 = vpop.f32.mrf.mxu0
      %v1908 = vpop.f32.mrf.mxu0
      %v1909 = vadd.f32 0.0, %v1908
      %v1910 = vpop.f32.mrf.mxu0
      %1911 = vmatprep.mubr.bf16.mxu0 0
      %1912 = vmatmul.mubr.bf16.gmra.mxu0 %v1838
      %v1913 = vpop.f32.mrf.mxu0
      %v1914 = vadd.f32 0.0, %v1913
      %v1915 = vpop.f32.mrf.mxu0
      %v1916 = vpop.f32.mrf.mxu0
      %v1917 = vadd.f32 0.0, %v1916
      %v1918 = vpop.f32.mrf.mxu0
      %1919 = vmatprep.mubr.bf16.mxu0 0
      %1920 = vmatmul.mubr.bf16.gmra.mxu0 %v1841
      %v1921 = vpop.f32.mrf.mxu0
      %v1922 = vadd.f32 0.0, %v1921
      %v1923 = vpop.f32.mrf.mxu0
      %v1924 = vpop.f32.mrf.mxu0
      %v1925 = vadd.f32 0.0, %v1924
      %v1926 = vpop.f32.mrf.mxu0
      %1927 = vdwg.mxu0
      %v1928 = vadd.f32 %v1823, %v1882
      %v1929 = vadd.f32 %v1823, %v1885
      %v1930 = vadd.f32 %v1823, %v1890
      %v1931 = vadd.f32 %v1823, %v1893
      %v1932 = vadd.f32 %v1823, %v1898
      %v1933 = vadd.f32 %v1823, %v1901
      %v1934 = vadd.f32 %v1823, %v1906
      %v1935 = vadd.f32 %v1823, %v1909
      %v1936 = vadd.f32 %v1823, %v1914
      %v1937 = vadd.f32 %v1823, %v1917
      %v1938 = vadd.f32 %v1823, %v1922
      %v1939 = vadd.f32 %v1823, %v1925
      %s1940 = scalar_lea.vmem %s9, 2
      %v1941 = vld [vmem:[%s1940] sm:$0x3]
      %v1943 = vsel %vm1120, %v1800, 0
      %v1946 = vsel %vm1120, %v1801, 0
      %v1949 = vsel %vm1120, %v1802, 0
      %v1952 = vsel %vm1120, %v1803, 0
      %v1955 = vsel %vm1120, %v1804, 0
      %v1958 = vsel %vm1120, %v1805, 0
      %v1961 = vsel %vm1843, %v1941, 0
      %1963 = vmatprep.subr.bf16.mxu0 0
      %1964 = vmatpush1.bf16.msra.mxu0 0
      %1965 = vmatprep.subr.bf16.mxu0 0
      %1966 = vmatpush1.bf16.msra.mxu0 0
      %1967 = vmatprep.subr.bf16.mxu0 0
      %1968 = vmatpush1.bf16.msra.mxu0 0
      %1969 = vmatprep.subr.bf16.mxu0 0
      %1970 = vmatpush1.bf16.msra.mxu0 0
      %1971 = vmatprep.subr.bf16.mxu0 0
      %1972 = vmatpush1.bf16.msra.mxu0 0
      %1973 = vmatprep.subr.bf16.mxu0 0
      %1974 = vmatpush1.bf16.msra.mxu0 0
      %1975 = vmatprep.subr.bf16.mxu0 0
      %1976 = vmatpush1.bf16.msra.mxu0 0
      %1977 = vmatprep.subr.bf16.mxu0 0
      %1978 = vmatpush1.bf16.msra.mxu0 %v1961
      %1979 = vmatprep.subr.bf16.mxu0 0
      %1980 = vmatpush2.bf16.msra.mxu0 0
      %1981 = vmatprep.subr.bf16.mxu0 0
      %1982 = vmatpush2.bf16.msra.mxu0 0
      %1983 = vmatprep.subr.bf16.mxu0 0
      %1984 = vmatpush2.bf16.msra.mxu0 0
      %1985 = vmatprep.subr.bf16.mxu0 0
      %1986 = vmatpush2.bf16.msra.mxu0 0
      %1987 = vmatprep.subr.bf16.mxu0 0
      %1988 = vmatpush2.bf16.msra.mxu0 0
      %1989 = vmatprep.subr.bf16.mxu0 0
      %1990 = vmatpush2.bf16.msra.mxu0 0
      %1991 = vmatprep.subr.bf16.mxu0 0
      %1992 = vmatpush2.bf16.msra.mxu0 0
      %1993 = vmatprep.subr.bf16.mxu0 0
      %1994 = vmatpush2.bf16.msra.mxu0 0
      %1995 = vmatprep.mubr.bf16.mxu0 0
      %1996 = vmatmul.mubr.bf16.gmra.mxu0 %v1943
      %v1997 = vpop.f32.mrf.mxu0
      %v1998 = vadd.f32 0.0, %v1997
      %v1999 = vpop.f32.mrf.mxu0
      %v2000 = vpop.f32.mrf.mxu0
      %v2001 = vadd.f32 0.0, %v2000
      %v2002 = vpop.f32.mrf.mxu0
      %2003 = vmatprep.mubr.bf16.mxu0 0
      %2004 = vmatmul.mubr.bf16.gmra.mxu0 %v1946
      %v2005 = vpop.f32.mrf.mxu0
      %v2006 = vadd.f32 0.0, %v2005
      %v2007 = vpop.f32.mrf.mxu0
      %v2008 = vpop.f32.mrf.mxu0
      %v2009 = vadd.f32 0.0, %v2008
      %v2010 = vpop.f32.mrf.mxu0
      %2011 = vmatprep.mubr.bf16.mxu0 0
      %2012 = vmatmul.mubr.bf16.gmra.mxu0 %v1949
      %v2013 = vpop.f32.mrf.mxu0
      %v2014 = vadd.f32 0.0, %v2013
      %v2015 = vpop.f32.mrf.mxu0
      %v2016 = vpop.f32.mrf.mxu0
      %v2017 = vadd.f32 0.0, %v2016
      %v2018 = vpop.f32.mrf.mxu0
      %2019 = vmatprep.mubr.bf16.mxu0 0
      %2020 = vmatmul.mubr.bf16.gmra.mxu0 %v1952
      %v2021 = vpop.f32.mrf.mxu0
      %v2022 = vadd.f32 0.0, %v2021
      %v2023 = vpop.f32.mrf.mxu0
      %v2024 = vpop.f32.mrf.mxu0
      %v2025 = vadd.f32 0.0, %v2024
      %v2026 = vpop.f32.mrf.mxu0
      %2027 = vmatprep.mubr.bf16.mxu0 0
      %2028 = vmatmul.mubr.bf16.gmra.mxu0 %v1955
      %v2029 = vpop.f32.mrf.mxu0
      %v2030 = vadd.f32 0.0, %v2029
      %v2031 = vpop.f32.mrf.mxu0
      %v2032 = vpop.f32.mrf.mxu0
      %v2033 = vadd.f32 0.0, %v2032
      %v2034 = vpop.f32.mrf.mxu0
      %2035 = vmatprep.mubr.bf16.mxu0 0
      %2036 = vmatmul.mubr.bf16.gmra.mxu0 %v1958
      %v2037 = vpop.f32.mrf.mxu0
      %v2038 = vadd.f32 0.0, %v2037
      %v2039 = vpop.f32.mrf.mxu0
      %v2040 = vpop.f32.mrf.mxu0
      %v2041 = vadd.f32 0.0, %v2040
      %v2042 = vpop.f32.mrf.mxu0
      %2043 = vdwg.mxu0
      %v2044 = vadd.f32 %v1928, %v1998
      %v2045 = vadd.f32 %v1929, %v2001
      %v2046 = vadd.f32 %v1930, %v2006
      %v2047 = vadd.f32 %v1931, %v2009
      %v2048 = vadd.f32 %v1932, %v2014
      %v2049 = vadd.f32 %v1933, %v2017
      %v2050 = vadd.f32 %v1934, %v2022
      %v2051 = vadd.f32 %v1935, %v2025
      %v2052 = vadd.f32 %v1936, %v2030
      %v2053 = vadd.f32 %v1937, %v2033
      %v2054 = vadd.f32 %v1938, %v2038
      %v2055 = vadd.f32 %v1939, %v2041
      %s2056 = scalar_lea.vmem %s9, 4
      %v2057 = vld [vmem:[%s2056] sm:$0x3]
      %v2059 = vsel %vm1120, %v1808, 0
      %v2062 = vsel %vm1120, %v1809, 0
      %v2065 = vsel %vm1120, %v1810, 0
      %v2068 = vsel %vm1120, %v1811, 0
      %v2071 = vsel %vm1120, %v1812, 0
      %v2074 = vsel %vm1120, %v1813, 0
      %v2077 = vsel %vm1843, %v2057, 0
      %2079 = vmatprep.subr.bf16.mxu0 0
      %2080 = vmatpush1.bf16.msra.mxu0 0
      %2081 = vmatprep.subr.bf16.mxu0 0
      %2082 = vmatpush1.bf16.msra.mxu0 0
      %2083 = vmatprep.subr.bf16.mxu0 0
      %2084 = vmatpush1.bf16.msra.mxu0 0
      %2085 = vmatprep.subr.bf16.mxu0 0
      %2086 = vmatpush1.bf16.msra.mxu0 0
      %2087 = vmatprep.subr.bf16.mxu0 0
      %2088 = vmatpush1.bf16.msra.mxu0 0
      %2089 = vmatprep.subr.bf16.mxu0 0
      %2090 = vmatpush1.bf16.msra.mxu0 0
      %2091 = vmatprep.subr.bf16.mxu0 0
      %2092 = vmatpush1.bf16.msra.mxu0 0
      %2093 = vmatprep.subr.bf16.mxu0 0
      %2094 = vmatpush1.bf16.msra.mxu0 %v2077
      %2095 = vmatprep.subr.bf16.mxu0 0
      %2096 = vmatpush2.bf16.msra.mxu0 0
      %2097 = vmatprep.subr.bf16.mxu0 0
      %2098 = vmatpush2.bf16.msra.mxu0 0
      %2099 = vmatprep.subr.bf16.mxu0 0
      %2100 = vmatpush2.bf16.msra.mxu0 0
      %2101 = vmatprep.subr.bf16.mxu0 0
      %2102 = vmatpush2.bf16.msra.mxu0 0
      %2103 = vmatprep.subr.bf16.mxu0 0
      %2104 = vmatpush2.bf16.msra.mxu0 0
      %2105 = vmatprep.subr.bf16.mxu0 0
      %2106 = vmatpush2.bf16.msra.mxu0 0
      %2107 = vmatprep.subr.bf16.mxu0 0
      %2108 = vmatpush2.bf16.msra.mxu0 0
      %2109 = vmatprep.subr.bf16.mxu0 0
      %2110 = vmatpush2.bf16.msra.mxu0 0
      %2111 = vmatprep.mubr.bf16.mxu0 0
      %2112 = vmatmul.mubr.bf16.gmra.mxu0 %v2059
      %v2113 = vpop.f32.mrf.mxu0
      %v2114 = vadd.f32 0.0, %v2113
      %v2115 = vpop.f32.mrf.mxu0
      %v2116 = vpop.f32.mrf.mxu0
      %v2117 = vadd.f32 0.0, %v2116
      %v2118 = vpop.f32.mrf.mxu0
      %2119 = vmatprep.mubr.bf16.mxu0 0
      %2120 = vmatmul.mubr.bf16.gmra.mxu0 %v2062
      %v2121 = vpop.f32.mrf.mxu0
      %v2122 = vadd.f32 0.0, %v2121
      %v2123 = vpop.f32.mrf.mxu0
      %v2124 = vpop.f32.mrf.mxu0
      %v2125 = vadd.f32 0.0, %v2124
      %v2126 = vpop.f32.mrf.mxu0
      %2127 = vmatprep.mubr.bf16.mxu0 0
      %2128 = vmatmul.mubr.bf16.gmra.mxu0 %v2065
      %v2129 = vpop.f32.mrf.mxu0
      %v2130 = vadd.f32 0.0, %v2129
      %v2131 = vpop.f32.mrf.mxu0
      %v2132 = vpop.f32.mrf.mxu0
      %v2133 = vadd.f32 0.0, %v2132
      %v2134 = vpop.f32.mrf.mxu0
      %2135 = vmatprep.mubr.bf16.mxu0 0
      %2136 = vmatmul.mubr.bf16.gmra.mxu0 %v2068
      %v2137 = vpop.f32.mrf.mxu0
      %v2138 = vadd.f32 0.0, %v2137
      %v2139 = vpop.f32.mrf.mxu0
      %v2140 = vpop.f32.mrf.mxu0
      %v2141 = vadd.f32 0.0, %v2140
      %v2142 = vpop.f32.mrf.mxu0
      %2143 = vmatprep.mubr.bf16.mxu0 0
      %2144 = vmatmul.mubr.bf16.gmra.mxu0 %v2071
      %v2145 = vpop.f32.mrf.mxu0
      %v2146 = vadd.f32 0.0, %v2145
      %v2147 = vpop.f32.mrf.mxu0
      %v2148 = vpop.f32.mrf.mxu0
      %v2149 = vadd.f32 0.0, %v2148
      %v2150 = vpop.f32.mrf.mxu0
      %2151 = vmatprep.mubr.bf16.mxu0 0
      %2152 = vmatmul.mubr.bf16.gmra.mxu0 %v2074
      %v2153 = vpop.f32.mrf.mxu0
      %v2154 = vadd.f32 0.0, %v2153
      %v2155 = vpop.f32.mrf.mxu0
      %v2156 = vpop.f32.mrf.mxu0
      %v2157 = vadd.f32 0.0, %v2156
      %v2158 = vpop.f32.mrf.mxu0
      %2159 = vdwg.mxu0
      %v2160 = vadd.f32 %v2044, %v2114
      %v2161 = vadd.f32 %v2045, %v2117
      %v2162 = vadd.f32 %v2046, %v2122
      %v2163 = vadd.f32 %v2047, %v2125
      %v2164 = vadd.f32 %v2048, %v2130
      %v2165 = vadd.f32 %v2049, %v2133
      %v2166 = vadd.f32 %v2050, %v2138
      %v2167 = vadd.f32 %v2051, %v2141
      %v2168 = vadd.f32 %v2052, %v2146
      %v2169 = vadd.f32 %v2053, %v2149
      %v2170 = vadd.f32 %v2054, %v2154
      %v2171 = vadd.f32 %v2055, %v2157
      %s2172 = scalar_lea.vmem %s9, 6
      %v2173 = vld [vmem:[%s2172] sm:$0x3]
      %v2175 = vsel %vm1120, %v1798, 0
      %v2178 = vsel %vm1843, %v2173, 0
      %2180 = vmatprep.subr.bf16.mxu0 0
      %2181 = vmatpush1.bf16.msra.mxu0 0
      %2182 = vmatprep.subr.bf16.mxu0 0
      %2183 = vmatpush1.bf16.msra.mxu0 0
      %2184 = vmatprep.subr.bf16.mxu0 0
      %2185 = vmatpush1.bf16.msra.mxu0 0
      %2186 = vmatprep.subr.bf16.mxu0 0
      %2187 = vmatpush1.bf16.msra.mxu0 0
      %2188 = vmatprep.subr.bf16.mxu0 0
      %2189 = vmatpush1.bf16.msra.mxu0 0
      %2190 = vmatprep.subr.bf16.mxu0 0
      %2191 = vmatpush1.bf16.msra.mxu0 0
      %2192 = vmatprep.subr.bf16.mxu0 0
      %2193 = vmatpush1.bf16.msra.mxu0 0
      %2194 = vmatprep.subr.bf16.mxu0 0
      %2195 = vmatpush1.bf16.msra.mxu0 %v2178
      %2196 = vmatprep.subr.bf16.mxu0 0
      %2197 = vmatpush2.bf16.msra.mxu0 0
      %2198 = vmatprep.subr.bf16.mxu0 0
      %2199 = vmatpush2.bf16.msra.mxu0 0
      %2200 = vmatprep.subr.bf16.mxu0 0
      %2201 = vmatpush2.bf16.msra.mxu0 0
      %2202 = vmatprep.subr.bf16.mxu0 0
      %2203 = vmatpush2.bf16.msra.mxu0 0
      %2204 = vmatprep.subr.bf16.mxu0 0
      %2205 = vmatpush2.bf16.msra.mxu0 0
      %2206 = vmatprep.subr.bf16.mxu0 0
      %2207 = vmatpush2.bf16.msra.mxu0 0
      %2208 = vmatprep.subr.bf16.mxu0 0
      %2209 = vmatpush2.bf16.msra.mxu0 0
      %2210 = vmatprep.subr.bf16.mxu0 0
      %2211 = vmatpush2.bf16.msra.mxu0 0
      %2212 = vmatprep.mubr.bf16.mxu0 0
      %2213 = vmatmul.mubr.bf16.gmra.mxu0 %v1829
      %v2214 = vpop.f32.mrf.mxu0
      %v2215 = vadd.f32 0.0, %v2214
      %v2216 = vpop.f32.mrf.mxu0
      %v2217 = vpop.f32.mrf.mxu0
      %v2218 = vadd.f32 0.0, %v2217
      %v2219 = vpop.f32.mrf.mxu0
      %2220 = vmatprep.mubr.bf16.mxu0 0
      %2221 = vmatmul.mubr.bf16.gmra.mxu0 %v1832
      %v2222 = vpop.f32.mrf.mxu0
      %v2223 = vadd.f32 0.0, %v2222
      %v2224 = vpop.f32.mrf.mxu0
      %v2225 = vpop.f32.mrf.mxu0
      %v2226 = vadd.f32 0.0, %v2225
      %v2227 = vpop.f32.mrf.mxu0
      %2228 = vmatprep.mubr.bf16.mxu0 0
      %2229 = vmatmul.mubr.bf16.gmra.mxu0 %v1835
      %v2230 = vpop.f32.mrf.mxu0
      %v2231 = vadd.f32 0.0, %v2230
      %v2232 = vpop.f32.mrf.mxu0
      %v2233 = vpop.f32.mrf.mxu0
      %v2234 = vadd.f32 0.0, %v2233
      %v2235 = vpop.f32.mrf.mxu0
      %2236 = vmatprep.mubr.bf16.mxu0 0
      %2237 = vmatmul.mubr.bf16.gmra.mxu0 %v1838
      %v2238 = vpop.f32.mrf.mxu0
      %v2239 = vadd.f32 0.0, %v2238
      %v2240 = vpop.f32.mrf.mxu0
      %v2241 = vpop.f32.mrf.mxu0
      %v2242 = vadd.f32 0.0, %v2241
      %v2243 = vpop.f32.mrf.mxu0
      %2244 = vmatprep.mubr.bf16.mxu0 0
      %2245 = vmatmul.mubr.bf16.gmra.mxu0 %v1841
      %v2246 = vpop.f32.mrf.mxu0
      %v2247 = vadd.f32 0.0, %v2246
      %v2248 = vpop.f32.mrf.mxu0
      %v2249 = vpop.f32.mrf.mxu0
      %v2250 = vadd.f32 0.0, %v2249
      %v2251 = vpop.f32.mrf.mxu0
      %2252 = vmatprep.mubr.bf16.mxu0 0
      %2253 = vmatmul.mubr.bf16.gmra.mxu0 %v2175
      %v2254 = vpop.f32.mrf.mxu0
      %v2255 = vadd.f32 0.0, %v2254
      %v2256 = vpop.f32.mrf.mxu0
      %v2257 = vpop.f32.mrf.mxu0
      %v2258 = vadd.f32 0.0, %v2257
      %v2259 = vpop.f32.mrf.mxu0
      %2260 = vdwg.mxu0
      %v2261 = vadd.f32 %v2160, %v2215
      %v2262 = vadd.f32 %v2161, %v2218
      %v2263 = vadd.f32 %v2162, %v2223
      %v2264 = vadd.f32 %v2163, %v2226
      %v2265 = vadd.f32 %v2164, %v2231
      %v2266 = vadd.f32 %v2165, %v2234
      %v2267 = vadd.f32 %v2166, %v2239
      %v2268 = vadd.f32 %v2167, %v2242
      %v2269 = vadd.f32 %v2168, %v2247
      %v2270 = vadd.f32 %v2169, %v2250
      %v2271 = vadd.f32 %v2170, %v2255
      %v2272 = vadd.f32 %v2171, %v2258
      %s2273 = scalar_lea.vmem %s9, 8
      %v2274 = vld [vmem:[%s2273] sm:$0x3]
      %v2276 = vsel %vm1120, %v1806, 0
      %v2279 = vsel %vm1843, %v2274, 0
      %2281 = vmatprep.subr.bf16.mxu0 0
      %2282 = vmatpush1.bf16.msra.mxu0 0
      %2283 = vmatprep.subr.bf16.mxu0 0
      %2284 = vmatpush1.bf16.msra.mxu0 0
      %2285 = vmatprep.subr.bf16.mxu0 0
      %2286 = vmatpush1.bf16.msra.mxu0 0
      %2287 = vmatprep.subr.bf16.mxu0 0
      %2288 = vmatpush1.bf16.msra.mxu0 0
      %2289 = vmatprep.subr.bf16.mxu0 0
      %2290 = vmatpush1.bf16.msra.mxu0 0
      %2291 = vmatprep.subr.bf16.mxu0 0
      %2292 = vmatpush1.bf16.msra.mxu0 0
      %2293 = vmatprep.subr.bf16.mxu0 0
      %2294 = vmatpush1.bf16.msra.mxu0 0
      %2295 = vmatprep.subr.bf16.mxu0 0
      %2296 = vmatpush1.bf16.msra.mxu0 %v2279
      %2297 = vmatprep.subr.bf16.mxu0 0
      %2298 = vmatpush2.bf16.msra.mxu0 0
      %2299 = vmatprep.subr.bf16.mxu0 0
      %2300 = vmatpush2.bf16.msra.mxu0 0
      %2301 = vmatprep.subr.bf16.mxu0 0
      %2302 = vmatpush2.bf16.msra.mxu0 0
      %2303 = vmatprep.subr.bf16.mxu0 0
      %2304 = vmatpush2.bf16.msra.mxu0 0
      %2305 = vmatprep.subr.bf16.mxu0 0
      %2306 = vmatpush2.bf16.msra.mxu0 0
      %2307 = vmatprep.subr.bf16.mxu0 0
      %2308 = vmatpush2.bf16.msra.mxu0 0
      %2309 = vmatprep.subr.bf16.mxu0 0
      %2310 = vmatpush2.bf16.msra.mxu0 0
      %2311 = vmatprep.subr.bf16.mxu0 0
      %2312 = vmatpush2.bf16.msra.mxu0 0
      %2313 = vmatprep.mubr.bf16.mxu0 0
      %2314 = vmatmul.mubr.bf16.gmra.mxu0 %v1946
      %v2315 = vpop.f32.mrf.mxu0
      %v2316 = vadd.f32 0.0, %v2315
      %v2317 = vpop.f32.mrf.mxu0
      %v2318 = vpop.f32.mrf.mxu0
      %v2319 = vadd.f32 0.0, %v2318
      %v2320 = vpop.f32.mrf.mxu0
      %2321 = vmatprep.mubr.bf16.mxu0 0
      %2322 = vmatmul.mubr.bf16.gmra.mxu0 %v1949
      %v2323 = vpop.f32.mrf.mxu0
      %v2324 = vadd.f32 0.0, %v2323
      %v2325 = vpop.f32.mrf.mxu0
      %v2326 = vpop.f32.mrf.mxu0
      %v2327 = vadd.f32 0.0, %v2326
      %v2328 = vpop.f32.mrf.mxu0
      %2329 = vmatprep.mubr.bf16.mxu0 0
      %2330 = vmatmul.mubr.bf16.gmra.mxu0 %v1952
      %v2331 = vpop.f32.mrf.mxu0
      %v2332 = vadd.f32 0.0, %v2331
      %v2333 = vpop.f32.mrf.mxu0
      %v2334 = vpop.f32.mrf.mxu0
      %v2335 = vadd.f32 0.0, %v2334
      %v2336 = vpop.f32.mrf.mxu0
      %2337 = vmatprep.mubr.bf16.mxu0 0
      %2338 = vmatmul.mubr.bf16.gmra.mxu0 %v1955
      %v2339 = vpop.f32.mrf.mxu0
      %v2340 = vadd.f32 0.0, %v2339
      %v2341 = vpop.f32.mrf.mxu0
      %v2342 = vpop.f32.mrf.mxu0
      %v2343 = vadd.f32 0.0, %v2342
      %v2344 = vpop.f32.mrf.mxu0
      %2345 = vmatprep.mubr.bf16.mxu0 0
      %2346 = vmatmul.mubr.bf16.gmra.mxu0 %v1958
      %v2347 = vpop.f32.mrf.mxu0
      %v2348 = vadd.f32 0.0, %v2347
      %v2349 = vpop.f32.mrf.mxu0
      %v2350 = vpop.f32.mrf.mxu0
      %v2351 = vadd.f32 0.0, %v2350
      %v2352 = vpop.f32.mrf.mxu0
      %2353 = vmatprep.mubr.bf16.mxu0 0
      %2354 = vmatmul.mubr.bf16.gmra.mxu0 %v2276
      %v2355 = vpop.f32.mrf.mxu0
      %v2356 = vadd.f32 0.0, %v2355
      %v2357 = vpop.f32.mrf.mxu0
      %v2358 = vpop.f32.mrf.mxu0
      %v2359 = vadd.f32 0.0, %v2358
      %v2360 = vpop.f32.mrf.mxu0
      %2361 = vdwg.mxu0
      %v2362 = vadd.f32 %v2261, %v2316
      %v2363 = vadd.f32 %v2262, %v2319
      %v2364 = vadd.f32 %v2263, %v2324
      %v2365 = vadd.f32 %v2264, %v2327
      %v2366 = vadd.f32 %v2265, %v2332
      %v2367 = vadd.f32 %v2266, %v2335
      %v2368 = vadd.f32 %v2267, %v2340
      %v2369 = vadd.f32 %v2268, %v2343
      %v2370 = vadd.f32 %v2269, %v2348
      %v2371 = vadd.f32 %v2270, %v2351
      %v2372 = vadd.f32 %v2271, %v2356
      %v2373 = vadd.f32 %v2272, %v2359
      %s2374 = scalar_lea.vmem %s9, 10
      %v2375 = vld [vmem:[%s2374] sm:$0x3]
      %v2377 = vsel %vm1120, %v1814, 0
      %v2380 = vsel %vm1843, %v2375, 0
      %2382 = vmatprep.subr.bf16.mxu0 0
      %2383 = vmatpush1.bf16.msra.mxu0 0
      %2384 = vmatprep.subr.bf16.mxu0 0
      %2385 = vmatpush1.bf16.msra.mxu0 0
      %2386 = vmatprep.subr.bf16.mxu0 0
      %2387 = vmatpush1.bf16.msra.mxu0 0
      %2388 = vmatprep.subr.bf16.mxu0 0
      %2389 = vmatpush1.bf16.msra.mxu0 0
      %2390 = vmatprep.subr.bf16.mxu0 0
      %2391 = vmatpush1.bf16.msra.mxu0 0
      %2392 = vmatprep.subr.bf16.mxu0 0
      %2393 = vmatpush1.bf16.msra.mxu0 0
      %2394 = vmatprep.subr.bf16.mxu0 0
      %2395 = vmatpush1.bf16.msra.mxu0 0
      %2396 = vmatprep.subr.bf16.mxu0 0
      %2397 = vmatpush1.bf16.msra.mxu0 %v2380
      %2398 = vmatprep.subr.bf16.mxu0 0
      %2399 = vmatpush2.bf16.msra.mxu0 0
      %2400 = vmatprep.subr.bf16.mxu0 0
      %2401 = vmatpush2.bf16.msra.mxu0 0
      %2402 = vmatprep.subr.bf16.mxu0 0
      %2403 = vmatpush2.bf16.msra.mxu0 0
      %2404 = vmatprep.subr.bf16.mxu0 0
      %2405 = vmatpush2.bf16.msra.mxu0 0
      %2406 = vmatprep.subr.bf16.mxu0 0
      %2407 = vmatpush2.bf16.msra.mxu0 0
      %2408 = vmatprep.subr.bf16.mxu0 0
      %2409 = vmatpush2.bf16.msra.mxu0 0
      %2410 = vmatprep.subr.bf16.mxu0 0
      %2411 = vmatpush2.bf16.msra.mxu0 0
      %2412 = vmatprep.subr.bf16.mxu0 0
      %2413 = vmatpush2.bf16.msra.mxu0 0
      %2414 = vmatprep.mubr.bf16.mxu0 0
      %2415 = vmatmul.mubr.bf16.gmra.mxu0 %v2062
      %v2416 = vpop.f32.mrf.mxu0
      %v2417 = vadd.f32 0.0, %v2416
      %v2418 = vpop.f32.mrf.mxu0
      %v2419 = vpop.f32.mrf.mxu0
      %v2420 = vadd.f32 0.0, %v2419
      %v2421 = vpop.f32.mrf.mxu0
      %2422 = vmatprep.mubr.bf16.mxu0 0
      %2423 = vmatmul.mubr.bf16.gmra.mxu0 %v2065
      %v2424 = vpop.f32.mrf.mxu0
      %v2425 = vadd.f32 0.0, %v2424
      %v2426 = vpop.f32.mrf.mxu0
      %v2427 = vpop.f32.mrf.mxu0
      %v2428 = vadd.f32 0.0, %v2427
      %v2429 = vpop.f32.mrf.mxu0
      %2430 = vmatprep.mubr.bf16.mxu0 0
      %2431 = vmatmul.mubr.bf16.gmra.mxu0 %v2068
      %v2432 = vpop.f32.mrf.mxu0
      %v2433 = vadd.f32 0.0, %v2432
      %v2434 = vpop.f32.mrf.mxu0
      %v2435 = vpop.f32.mrf.mxu0
      %v2436 = vadd.f32 0.0, %v2435
      %v2437 = vpop.f32.mrf.mxu0
      %2438 = vmatprep.mubr.bf16.mxu0 0
      %2439 = vmatmul.mubr.bf16.gmra.mxu0 %v2071
      %v2440 = vpop.f32.mrf.mxu0
      %v2441 = vadd.f32 0.0, %v2440
      %v2442 = vpop.f32.mrf.mxu0
      %v2443 = vpop.f32.mrf.mxu0
      %v2444 = vadd.f32 0.0, %v2443
      %v2445 = vpop.f32.mrf.mxu0
      %2446 = vmatprep.mubr.bf16.mxu0 0
      %2447 = vmatmul.mubr.bf16.gmra.mxu0 %v2074
      %v2448 = vpop.f32.mrf.mxu0
      %v2449 = vadd.f32 0.0, %v2448
      %v2450 = vpop.f32.mrf.mxu0
      %v2451 = vpop.f32.mrf.mxu0
      %v2452 = vadd.f32 0.0, %v2451
      %v2453 = vpop.f32.mrf.mxu0
      %2454 = vmatprep.mubr.bf16.mxu0 0
      %2455 = vmatmul.mubr.bf16.gmra.mxu0 %v2377
      %v2456 = vpop.f32.mrf.mxu0
      %v2457 = vadd.f32 0.0, %v2456
      %v2458 = vpop.f32.mrf.mxu0
      %v2459 = vpop.f32.mrf.mxu0
      %v2460 = vadd.f32 0.0, %v2459
      %v2461 = vpop.f32.mrf.mxu0
      %2462 = vdwg.mxu0
      %v2463 = vadd.f32 %v2362, %v2417
      %v2464 = vadd.f32 %v2363, %v2420
      %v2465 = vadd.f32 %v2364, %v2425
      %v2466 = vadd.f32 %v2365, %v2428
      %v2467 = vadd.f32 %v2366, %v2433
      %v2468 = vadd.f32 %v2367, %v2436
      %v2469 = vadd.f32 %v2368, %v2441
      %v2470 = vadd.f32 %v2369, %v2444
      %v2471 = vadd.f32 %v2370, %v2449
      %v2472 = vadd.f32 %v2371, %v2452
      %v2473 = vadd.f32 %v2372, %v2457
      %v2474 = vadd.f32 %v2373, %v2460
      %s2475 = scalar_lea.vmem %s9, 12
      %v2476 = vld [vmem:[%s2475] sm:$0x3]
      %v2478 = vsel %vm1120, %v1799, 0
      %v2481 = vsel %vm1843, %v2476, 0
      %2483 = vmatprep.subr.bf16.mxu0 0
      %2484 = vmatpush1.bf16.msra.mxu0 0
      %2485 = vmatprep.subr.bf16.mxu0 0
      %2486 = vmatpush1.bf16.msra.mxu0 0
      %2487 = vmatprep.subr.bf16.mxu0 0
      %2488 = vmatpush1.bf16.msra.mxu0 0
      %2489 = vmatprep.subr.bf16.mxu0 0
      %2490 = vmatpush1.bf16.msra.mxu0 0
      %2491 = vmatprep.subr.bf16.mxu0 0
      %2492 = vmatpush1.bf16.msra.mxu0 0
      %2493 = vmatprep.subr.bf16.mxu0 0
      %2494 = vmatpush1.bf16.msra.mxu0 0
      %2495 = vmatprep.subr.bf16.mxu0 0
      %2496 = vmatpush1.bf16.msra.mxu0 0
      %2497 = vmatprep.subr.bf16.mxu0 0
      %2498 = vmatpush1.bf16.msra.mxu0 %v2481
      %2499 = vmatprep.subr.bf16.mxu0 0
      %2500 = vmatpush2.bf16.msra.mxu0 0
      %2501 = vmatprep.subr.bf16.mxu0 0
      %2502 = vmatpush2.bf16.msra.mxu0 0
      %2503 = vmatprep.subr.bf16.mxu0 0
      %2504 = vmatpush2.bf16.msra.mxu0 0
      %2505 = vmatprep.subr.bf16.mxu0 0
      %2506 = vmatpush2.bf16.msra.mxu0 0
      %2507 = vmatprep.subr.bf16.mxu0 0
      %2508 = vmatpush2.bf16.msra.mxu0 0
      %2509 = vmatprep.subr.bf16.mxu0 0
      %2510 = vmatpush2.bf16.msra.mxu0 0
      %2511 = vmatprep.subr.bf16.mxu0 0
      %2512 = vmatpush2.bf16.msra.mxu0 0
      %2513 = vmatprep.subr.bf16.mxu0 0
      %2514 = vmatpush2.bf16.msra.mxu0 0
      %2515 = vmatprep.mubr.bf16.mxu0 0
      %2516 = vmatmul.mubr.bf16.gmra.mxu0 %v1832
      %v2517 = vpop.f32.mrf.mxu0
      %v2518 = vadd.f32 0.0, %v2517
      %v2519 = vpop.f32.mrf.mxu0
      %v2520 = vpop.f32.mrf.mxu0
      %v2521 = vadd.f32 0.0, %v2520
      %v2522 = vpop.f32.mrf.mxu0
      %2523 = vmatprep.mubr.bf16.mxu0 0
      %2524 = vmatmul.mubr.bf16.gmra.mxu0 %v1835
      %v2525 = vpop.f32.mrf.mxu0
      %v2526 = vadd.f32 0.0, %v2525
      %v2527 = vpop.f32.mrf.mxu0
      %v2528 = vpop.f32.mrf.mxu0
      %v2529 = vadd.f32 0.0, %v2528
      %v2530 = vpop.f32.mrf.mxu0
      %2531 = vmatprep.mubr.bf16.mxu0 0
      %2532 = vmatmul.mubr.bf16.gmra.mxu0 %v1838
      %v2533 = vpop.f32.mrf.mxu0
      %v2534 = vadd.f32 0.0, %v2533
      %v2535 = vpop.f32.mrf.mxu0
      %v2536 = vpop.f32.mrf.mxu0
      %v2537 = vadd.f32 0.0, %v2536
      %v2538 = vpop.f32.mrf.mxu0
      %2539 = vmatprep.mubr.bf16.mxu0 0
      %2540 = vmatmul.mubr.bf16.gmra.mxu0 %v1841
      %v2541 = vpop.f32.mrf.mxu0
      %v2542 = vadd.f32 0.0, %v2541
      %v2543 = vpop.f32.mrf.mxu0
      %v2544 = vpop.f32.mrf.mxu0
      %v2545 = vadd.f32 0.0, %v2544
      %v2546 = vpop.f32.mrf.mxu0
      %2547 = vmatprep.mubr.bf16.mxu0 0
      %2548 = vmatmul.mubr.bf16.gmra.mxu0 %v2175
      %v2549 = vpop.f32.mrf.mxu0
      %v2550 = vadd.f32 0.0, %v2549
      %v2551 = vpop.f32.mrf.mxu0
      %v2552 = vpop.f32.mrf.mxu0
      %v2553 = vadd.f32 0.0, %v2552
      %v2554 = vpop.f32.mrf.mxu0
      %2555 = vmatprep.mubr.bf16.mxu0 0
      %2556 = vmatmul.mubr.bf16.gmra.mxu0 %v2478
      %v2557 = vpop.f32.mrf.mxu0
      %v2558 = vadd.f32 0.0, %v2557
      %v2559 = vpop.f32.mrf.mxu0
      %v2560 = vpop.f32.mrf.mxu0
      %v2561 = vadd.f32 0.0, %v2560
      %v2562 = vpop.f32.mrf.mxu0
      %2563 = vdwg.mxu0
      %v2564 = vadd.f32 %v2463, %v2518
      %v2565 = vadd.f32 %v2464, %v2521
      %v2566 = vadd.f32 %v2465, %v2526
      %v2567 = vadd.f32 %v2466, %v2529
      %v2568 = vadd.f32 %v2467, %v2534
      %v2569 = vadd.f32 %v2468, %v2537
      %v2570 = vadd.f32 %v2469, %v2542
      %v2571 = vadd.f32 %v2470, %v2545
      %v2572 = vadd.f32 %v2471, %v2550
      %v2573 = vadd.f32 %v2472, %v2553
      %v2574 = vadd.f32 %v2473, %v2558
      %v2575 = vadd.f32 %v2474, %v2561
      %s2576 = scalar_lea.vmem %s9, 14
      %v2577 = vld [vmem:[%s2576] sm:$0x3]
      %v2579 = vsel %vm1120, %v1807, 0
      %v2582 = vsel %vm1843, %v2577, 0
      %2584 = vmatprep.subr.bf16.mxu0 0
      %2585 = vmatpush1.bf16.msra.mxu0 0
      %2586 = vmatprep.subr.bf16.mxu0 0
      %2587 = vmatpush1.bf16.msra.mxu0 0
      %2588 = vmatprep.subr.bf16.mxu0 0
      %2589 = vmatpush1.bf16.msra.mxu0 0
      %2590 = vmatprep.subr.bf16.mxu0 0
      %2591 = vmatpush1.bf16.msra.mxu0 0
      %2592 = vmatprep.subr.bf16.mxu0 0
      %2593 = vmatpush1.bf16.msra.mxu0 0
      %2594 = vmatprep.subr.bf16.mxu0 0
      %2595 = vmatpush1.bf16.msra.mxu0 0
      %2596 = vmatprep.subr.bf16.mxu0 0
      %2597 = vmatpush1.bf16.msra.mxu0 0
      %2598 = vmatprep.subr.bf16.mxu0 0
      %2599 = vmatpush1.bf16.msra.mxu0 %v2582
      %2600 = vmatprep.subr.bf16.mxu0 0
      %2601 = vmatpush2.bf16.msra.mxu0 0
      %2602 = vmatprep.subr.bf16.mxu0 0
      %2603 = vmatpush2.bf16.msra.mxu0 0
      %2604 = vmatprep.subr.bf16.mxu0 0
      %2605 = vmatpush2.bf16.msra.mxu0 0
      %2606 = vmatprep.subr.bf16.mxu0 0
      %2607 = vmatpush2.bf16.msra.mxu0 0
      %2608 = vmatprep.subr.bf16.mxu0 0
      %2609 = vmatpush2.bf16.msra.mxu0 0
      %2610 = vmatprep.subr.bf16.mxu0 0
      %2611 = vmatpush2.bf16.msra.mxu0 0
      %2612 = vmatprep.subr.bf16.mxu0 0
      %2613 = vmatpush2.bf16.msra.mxu0 0
      %2614 = vmatprep.subr.bf16.mxu0 0
      %2615 = vmatpush2.bf16.msra.mxu0 0
      %2616 = vmatprep.mubr.bf16.mxu0 0
      %2617 = vmatmul.mubr.bf16.gmra.mxu0 %v1949
      %v2618 = vpop.f32.mrf.mxu0
      %v2619 = vadd.f32 0.0, %v2618
      %v2620 = vpop.f32.mrf.mxu0
      %v2621 = vpop.f32.mrf.mxu0
      %v2622 = vadd.f32 0.0, %v2621
      %v2623 = vpop.f32.mrf.mxu0
      %2624 = vmatprep.mubr.bf16.mxu0 0
      %2625 = vmatmul.mubr.bf16.gmra.mxu0 %v1952
      %v2626 = vpop.f32.mrf.mxu0
      %v2627 = vadd.f32 0.0, %v2626
      %v2628 = vpop.f32.mrf.mxu0
      %v2629 = vpop.f32.mrf.mxu0
      %v2630 = vadd.f32 0.0, %v2629
      %v2631 = vpop.f32.mrf.mxu0
      %2632 = vmatprep.mubr.bf16.mxu0 0
      %2633 = vmatmul.mubr.bf16.gmra.mxu0 %v1955
      %v2634 = vpop.f32.mrf.mxu0
      %v2635 = vadd.f32 0.0, %v2634
      %v2636 = vpop.f32.mrf.mxu0
      %v2637 = vpop.f32.mrf.mxu0
      %v2638 = vadd.f32 0.0, %v2637
      %v2639 = vpop.f32.mrf.mxu0
      %2640 = vmatprep.mubr.bf16.mxu0 0
      %2641 = vmatmul.mubr.bf16.gmra.mxu0 %v1958
      %v2642 = vpop.f32.mrf.mxu0
      %v2643 = vadd.f32 0.0, %v2642
      %v2644 = vpop.f32.mrf.mxu0
      %v2645 = vpop.f32.mrf.mxu0
      %v2646 = vadd.f32 0.0, %v2645
      %v2647 = vpop.f32.mrf.mxu0
      %2648 = vmatprep.mubr.bf16.mxu0 0
      %2649 = vmatmul.mubr.bf16.gmra.mxu0 %v2276
      %v2650 = vpop.f32.mrf.mxu0
      %v2651 = vadd.f32 0.0, %v2650
      %v2652 = vpop.f32.mrf.mxu0
      %v2653 = vpop.f32.mrf.mxu0
      %v2654 = vadd.f32 0.0, %v2653
      %v2655 = vpop.f32.mrf.mxu0
      %2656 = vmatprep.mubr.bf16.mxu0 0
      %2657 = vmatmul.mubr.bf16.gmra.mxu0 %v2579
      %v2658 = vpop.f32.mrf.mxu0
      %v2659 = vadd.f32 0.0, %v2658
      %v2660 = vpop.f32.mrf.mxu0
      %v2661 = vpop.f32.mrf.mxu0
      %v2662 = vadd.f32 0.0, %v2661
      %v2663 = vpop.f32.mrf.mxu0
      %2664 = vdwg.mxu0
      %v2665 = vadd.f32 %v2564, %v2619
      %v2666 = vadd.f32 %v2565, %v2622
      %v2667 = vadd.f32 %v2566, %v2627
      %v2668 = vadd.f32 %v2567, %v2630
      %v2669 = vadd.f32 %v2568, %v2635
      %v2670 = vadd.f32 %v2569, %v2638
      %v2671 = vadd.f32 %v2570, %v2643
      %v2672 = vadd.f32 %v2571, %v2646
      %v2673 = vadd.f32 %v2572, %v2651
      %v2674 = vadd.f32 %v2573, %v2654
      %v2675 = vadd.f32 %v2574, %v2659
      %v2676 = vadd.f32 %v2575, %v2662
      %s2677 = scalar_lea.vmem %s9, 16
      %v2678 = vld [vmem:[%s2677] sm:$0x3]
      %v2680 = vsel %vm1120, %v1815, 0
      %v2683 = vsel %vm1843, %v2678, 0
      %2685 = vmatprep.subr.bf16.mxu0 0
      %2686 = vmatpush1.bf16.msra.mxu0 0
      %2687 = vmatprep.subr.bf16.mxu0 0
      %2688 = vmatpush1.bf16.msra.mxu0 0
      %2689 = vmatprep.subr.bf16.mxu0 0
      %2690 = vmatpush1.bf16.msra.mxu0 0
      %2691 = vmatprep.subr.bf16.mxu0 0
      %2692 = vmatpush1.bf16.msra.mxu0 0
      %2693 = vmatprep.subr.bf16.mxu0 0
      %2694 = vmatpush1.bf16.msra.mxu0 0
      %2695 = vmatprep.subr.bf16.mxu0 0
      %2696 = vmatpush1.bf16.msra.mxu0 0
      %2697 = vmatprep.subr.bf16.mxu0 0
      %2698 = vmatpush1.bf16.msra.mxu0 0
      %2699 = vmatprep.subr.bf16.mxu0 0
      %2700 = vmatpush1.bf16.msra.mxu0 %v2683
      %2701 = vmatprep.subr.bf16.mxu0 0
      %2702 = vmatpush2.bf16.msra.mxu0 0
      %2703 = vmatprep.subr.bf16.mxu0 0
      %2704 = vmatpush2.bf16.msra.mxu0 0
      %2705 = vmatprep.subr.bf16.mxu0 0
      %2706 = vmatpush2.bf16.msra.mxu0 0
      %2707 = vmatprep.subr.bf16.mxu0 0
      %2708 = vmatpush2.bf16.msra.mxu0 0
      %2709 = vmatprep.subr.bf16.mxu0 0
      %2710 = vmatpush2.bf16.msra.mxu0 0
      %2711 = vmatprep.subr.bf16.mxu0 0
      %2712 = vmatpush2.bf16.msra.mxu0 0
      %2713 = vmatprep.subr.bf16.mxu0 0
      %2714 = vmatpush2.bf16.msra.mxu0 0
      %2715 = vmatprep.subr.bf16.mxu0 0
      %2716 = vmatpush2.bf16.msra.mxu0 0
      %2717 = vmatprep.mubr.bf16.mxu0 0
      %2718 = vmatmul.mubr.bf16.gmra.mxu0 %v2065
      %v2719 = vpop.f32.mrf.mxu0
      %v2720 = vadd.f32 0.0, %v2719
      %v2721 = vpop.f32.mrf.mxu0
      %v2722 = vpop.f32.mrf.mxu0
      %v2723 = vadd.f32 0.0, %v2722
      %v2724 = vpop.f32.mrf.mxu0
      %2725 = vmatprep.mubr.bf16.mxu0 0
      %2726 = vmatmul.mubr.bf16.gmra.mxu0 %v2068
      %v2727 = vpop.f32.mrf.mxu0
      %v2728 = vadd.f32 0.0, %v2727
      %v2729 = vpop.f32.mrf.mxu0
      %v2730 = vpop.f32.mrf.mxu0
      %v2731 = vadd.f32 0.0, %v2730
      %v2732 = vpop.f32.mrf.mxu0
      %2733 = vmatprep.mubr.bf16.mxu0 0
      %2734 = vmatmul.mubr.bf16.gmra.mxu0 %v2071
      %v2735 = vpop.f32.mrf.mxu0
      %v2736 = vadd.f32 0.0, %v2735
      %v2737 = vpop.f32.mrf.mxu0
      %v2738 = vpop.f32.mrf.mxu0
      %v2739 = vadd.f32 0.0, %v2738
      %v2740 = vpop.f32.mrf.mxu0
      %2741 = vmatprep.mubr.bf16.mxu0 0
      %2742 = vmatmul.mubr.bf16.gmra.mxu0 %v2074
      %v2743 = vpop.f32.mrf.mxu0
      %v2744 = vadd.f32 0.0, %v2743
      %v2745 = vpop.f32.mrf.mxu0
      %v2746 = vpop.f32.mrf.mxu0
      %v2747 = vadd.f32 0.0, %v2746
      %v2748 = vpop.f32.mrf.mxu0
      %2749 = vmatprep.mubr.bf16.mxu0 0
      %2750 = vmatmul.mubr.bf16.gmra.mxu0 %v2377
      %v2751 = vpop.f32.mrf.mxu0
      %v2752 = vadd.f32 0.0, %v2751
      %v2753 = vpop.f32.mrf.mxu0
      %v2754 = vpop.f32.mrf.mxu0
      %v2755 = vadd.f32 0.0, %v2754
      %v2756 = vpop.f32.mrf.mxu0
      %2757 = vmatprep.mubr.bf16.mxu0 0
      %2758 = vmatmul.mubr.bf16.gmra.mxu0 %v2680
      %v2759 = vpop.f32.mrf.mxu0
      %v2760 = vadd.f32 0.0, %v2759
      %v2761 = vpop.f32.mrf.mxu0
      %v2762 = vpop.f32.mrf.mxu0
      %v2763 = vadd.f32 0.0, %v2762
      %v2764 = vpop.f32.mrf.mxu0
      %2765 = vdwg.mxu0
      %v2766 = vadd.f32 %v2665, %v2720
      %v2767 = vadd.f32 %v2666, %v2723
      %v2768 = vadd.f32 %v2667, %v2728
      %v2769 = vadd.f32 %v2668, %v2731
      %v2770 = vadd.f32 %v2669, %v2736
      %v2771 = vadd.f32 %v2670, %v2739
      %v2772 = vadd.f32 %v2671, %v2744
      %v2773 = vadd.f32 %v2672, %v2747
      %v2774 = vadd.f32 %v2673, %v2752
      %v2775 = vadd.f32 %v2674, %v2755
      %v2776 = vadd.f32 %v2675, %v2760
      %v2777 = vadd.f32 %v2676, %v2763
      %s2778 = ssub.s32 1, %s767
      %s2779 = smul.u32 %s2778, 16
      %v2780 = vstv %s2779
      %vm2781 = vcmp.ge.s32.totalorder %v769, %v2780
      %vm2782 = vcmp.ge.s32.totalorder %v770, %v2780
      %vm2783 = vcmp.ge.s32.totalorder %v771, %v2780
      %vm2784 = vcmp.ge.s32.totalorder %v772, %v2780
      %vm2785 = vcmp.ge.s32.totalorder %v1394, %v2780
      %vm2786 = vcmp.ge.s32.totalorder %v1395, %v2780
      %vm2787 = vcmp.ge.s32.totalorder %v1396, %v2780
      %vm2788 = vcmp.ge.s32.totalorder %v1397, %v2780
      %vm2789 = vcmp.ge.s32.totalorder %v1398, %v2780
      %vm2790 = vcmp.ge.s32.totalorder %v1399, %v2780
      %vm2791 = vcmp.ge.s32.totalorder %v1400, %v2780
      %vm2792 = vcmp.ge.s32.totalorder %v1401, %v2780
      %s2793 = ssub.s32 17, %s767
      %s2794 = smul.u32 %s2793, 16
      %v2795 = vstv %s2794
      %vm2796 = vcmp.lt.s32.totalorder %v769, %v2795
      %vm2797 = vcmp.lt.s32.totalorder %v770, %v2795
      %vm2798 = vcmp.lt.s32.totalorder %v771, %v2795
      %vm2799 = vcmp.lt.s32.totalorder %v772, %v2795
      %vm2800 = vcmp.lt.s32.totalorder %v1394, %v2795
      %vm2801 = vcmp.lt.s32.totalorder %v1395, %v2795
      %vm2802 = vcmp.lt.s32.totalorder %v1396, %v2795
      %vm2803 = vcmp.lt.s32.totalorder %v1397, %v2795
      %vm2804 = vcmp.lt.s32.totalorder %v1398, %v2795
      %vm2805 = vcmp.lt.s32.totalorder %v1399, %v2795
      %vm2806 = vcmp.lt.s32.totalorder %v1400, %v2795
      %vm2807 = vcmp.lt.s32.totalorder %v1401, %v2795
      %vm2808 = vmand %vm2781, %vm2796
      %vm2809 = vmand %vm2782, %vm2797
      %vm2810 = vmand %vm2783, %vm2798
      %vm2811 = vmand %vm2784, %vm2799
      %vm2812 = vmand %vm2785, %vm2800
      %vm2813 = vmand %vm2786, %vm2801
      %vm2814 = vmand %vm2787, %vm2802
      %vm2815 = vmand %vm2788, %vm2803
      %vm2816 = vmand %vm2789, %vm2804
      %vm2817 = vmand %vm2790, %vm2805
      %vm2818 = vmand %vm2791, %vm2806
      %vm2819 = vmand %vm2792, %vm2807
      %v2820 = vmax.f32 %v2766, 0.0
      %v2821 = vmax.f32 %v2767, 0.0
      %v2822 = vmax.f32 %v2768, 0.0
      %v2823 = vmax.f32 %v2769, 0.0
      %v2824 = vmax.f32 %v2770, 0.0
      %v2825 = vmax.f32 %v2771, 0.0
      %v2826 = vmax.f32 %v2772, 0.0
      %v2827 = vmax.f32 %v2773, 0.0
      %v2828 = vmax.f32 %v2774, 0.0
      %v2829 = vmax.f32 %v2775, 0.0
      %v2830 = vmax.f32 %v2776, 0.0
      %v2831 = vmax.f32 %v2777, 0.0
      %v2832 = vsel %vm2808, 1, 0
      %v2833 = vsel %vm2809, 1, 0
      %v2834 = vsel %vm2810, 1, 0
      %v2835 = vsel %vm2811, 1, 0
      %v2836 = vsel %vm2812, 1, 0
      %v2837 = vsel %vm2813, 1, 0
      %v2838 = vsel %vm2814, 1, 0
      %v2839 = vsel %vm2815, 1, 0
      %v2840 = vsel %vm2816, 1, 0
      %v2841 = vsel %vm2817, 1, 0
      %v2842 = vsel %vm2818, 1, 0
      %v2843 = vsel %vm2819, 1, 0
      %vm2844 = vcmp.eq.s32.totalorder %v2832, 1
      %vm2845 = vcmp.eq.s32.totalorder %v2833, 1
      %vm2846 = vcmp.eq.s32.totalorder %v2834, 1
      %vm2847 = vcmp.eq.s32.totalorder %v2835, 1
      %vm2848 = vcmp.eq.s32.totalorder %v2836, 1
      %vm2849 = vcmp.eq.s32.totalorder %v2837, 1
      %vm2850 = vcmp.eq.s32.totalorder %v2838, 1
      %vm2851 = vcmp.eq.s32.totalorder %v2839, 1
      %vm2852 = vcmp.eq.s32.totalorder %v2840, 1
      %vm2853 = vcmp.eq.s32.totalorder %v2841, 1
      %vm2854 = vcmp.eq.s32.totalorder %v2842, 1
      %vm2855 = vcmp.eq.s32.totalorder %v2843, 1
      %v2856 = vsel %vm2844, %v2820, 0.0
      %v2857 = vsel %vm2845, %v2821, 0.0
      %v2858 = vsel %vm2846, %v2822, 0.0
      %v2859 = vsel %vm2847, %v2823, 0.0
      %v2860 = vsel %vm2848, %v2824, 0.0
      %v2861 = vsel %vm2849, %v2825, 0.0
      %v2862 = vsel %vm2850, %v2826, 0.0
      %v2863 = vsel %vm2851, %v2827, 0.0
      %v2864 = vsel %vm2852, %v2828, 0.0
      %v2865 = vsel %vm2853, %v2829, 0.0
      %v2866 = vsel %vm2854, %v2830, 0.0
      %v2867 = vsel %vm2855, %v2831, 0.0
      %v2868 = vsel %vm1630, 0.0, %v2856
      %v2869 = vsel %vm1631, 0.0, %v2857
      %v2870 = vsel %vm1632, 0.0, %v2858
      %v2871 = vsel %vm1633, 0.0, %v2859
      %v2872 = vsel %vm1634, 0.0, %v2860
      %v2873 = vsel %vm1635, 0.0, %v2861
      %v2874 = vsel %vm1636, 0.0, %v2862
      %v2875 = vsel %vm1637, 0.0, %v2863
      %v2876 = vsel %vm1638, 0.0, %v2864
      %v2877 = vsel %vm1639, 0.0, %v2865
      %v2878 = vsel %vm1640, 0.0, %v2866
      %v2879 = vsel %vm1641, 0.0, %v2867
      %v2880 = vrot.slane %v2868, 1
      %v2881 = vrot.slane %v2869, 1
      %v2882 = vrot.slane %v2870, 1
      %v2883 = vrot.slane %v2871, 1
      %v2884 = vrot.slane %v2872, 1
      %v2885 = vrot.slane %v2873, 1
      %v2886 = vrot.slane %v2874, 1
      %v2887 = vrot.slane %v2875, 1
      %v2888 = vrot.slane %v2876, 1
      %v2889 = vrot.slane %v2877, 1
      %v2890 = vrot.slane %v2878, 1
      %v2891 = vrot.slane %v2879, 1
      %v2892 = vsel %vm1678, %v2890, %v2891
      %v2893 = vsel %vm1678, %v2889, %v2890
      %v2894 = vsel %vm1678, %v2888, %v2889
      %v2895 = vsel %vm1678, %v2887, %v2888
      %v2896 = vsel %vm1678, %v2886, %v2887
      %v2897 = vsel %vm1678, %v2885, %v2886
      %v2898 = vsel %vm1678, %v2884, %v2885
      %v2899 = vsel %vm1678, %v2883, %v2884
      %v2900 = vsel %vm1678, %v2882, %v2883
      %v2901 = vsel %vm1678, %v2881, %v2882
      %v2902 = vsel %vm1678, %v2880, %v2881
      %v2903 = vsel %vm1678, %v2891, %v2880
      %v2904 = vsel %vm1727, 0.0, %v2856
      %v2905 = vsel %vm1728, 0.0, %v2857
      %v2906 = vsel %vm1729, 0.0, %v2858
      %v2907 = vsel %vm1730, 0.0, %v2859
      %v2908 = vsel %vm1731, 0.0, %v2860
      %v2909 = vsel %vm1732, 0.0, %v2861
      %v2910 = vsel %vm1733, 0.0, %v2862
      %v2911 = vsel %vm1734, 0.0, %v2863
      %v2912 = vsel %vm1735, 0.0, %v2864
      %v2913 = vsel %vm1736, 0.0, %v2865
      %v2914 = vsel %vm1737, 0.0, %v2866
      %v2915 = vsel %vm1738, 0.0, %v2867
      %v2916 = vrot.slane %v2904, 7
      %v2917 = vrot.slane %v2905, 7
      %v2918 = vrot.slane %v2906, 7
      %v2919 = vrot.slane %v2907, 7
      %v2920 = vrot.slane %v2908, 7
      %v2921 = vrot.slane %v2909, 7
      %v2922 = vrot.slane %v2910, 7
      %v2923 = vrot.slane %v2911, 7
      %v2924 = vrot.slane %v2912, 7
      %v2925 = vrot.slane %v2913, 7
      %v2926 = vrot.slane %v2914, 7
      %v2927 = vrot.slane %v2915, 7
      %v2928 = vsel %vm1775, %v2926, %v2927
      %v2929 = vsel %vm1775, %v2925, %v2926
      %v2930 = vsel %vm1775, %v2924, %v2925
      %v2931 = vsel %vm1775, %v2923, %v2924
      %v2932 = vsel %vm1775, %v2922, %v2923
      %v2933 = vsel %vm1775, %v2921, %v2922
      %v2934 = vsel %vm1775, %v2920, %v2921
      %v2935 = vsel %vm1775, %v2919, %v2920
      %v2936 = vsel %vm1775, %v2918, %v2919
      %v2937 = vsel %vm1775, %v2917, %v2918
      %v2938 = vsel %vm1775, %v2916, %v2917
      %v2939 = vsel %vm1775, %v2927, %v2916
      %v2940 = vpack.c.bf16 %v2938, %v2939
      %v2941 = vpack.c.bf16 %v2936, %v2937
      %v2942 = vpack.c.bf16 %v2934, %v2935
      %v2943 = vpack.c.bf16 %v2932, %v2933
      %v2944 = vpack.c.bf16 %v2930, %v2931
      %v2945 = vpack.c.bf16 %v2928, %v2929
      %v2946 = vpack.c.bf16 %v2857, %v2856
      %v2947 = vpack.c.bf16 %v2859, %v2858
      %v2948 = vpack.c.bf16 %v2861, %v2860
      %v2949 = vpack.c.bf16 %v2863, %v2862
      %v2950 = vpack.c.bf16 %v2865, %v2864
      %v2951 = vpack.c.bf16 %v2867, %v2866
      %v2952 = vpack.c.bf16 %v2901, %v2902
      %v2953 = vpack.c.bf16 %v2899, %v2900
      %v2954 = vpack.c.bf16 %v2897, %v2898
      %v2955 = vpack.c.bf16 %v2895, %v2896
      %v2956 = vpack.c.bf16 %v2893, %v2894
      %v2957 = vpack.c.bf16 %v2903, %v2892
      %v2958 = vld [vmem:[%s12] sm:$0x1]
      %v2960 = vlaneseq
      %v2961 = vshrl.u32 %v2960, 7
      %v2962 = vsub.s32 0, %v2961
      %v2963 = vrot.slane %v2958, %v2962
      %v2965 = vadd.f32 %v2963, 0.0
      %v2966 = vld [vmem:[%s11] sm:$0x3]
      %v2968 = vsel %vm1120, %v2941, 0
      %v2971 = vsel %vm1120, %v2942, 0
      %v2974 = vsel %vm1120, %v2943, 0
      %v2977 = vsel %vm1120, %v2944, 0
      %v2980 = vsel %vm1843, %v2966, 0
      %2982 = vmatprep.subr.bf16.mxu0 0
      %2983 = vmatpush1.bf16.msra.mxu0 0
      %2984 = vmatprep.subr.bf16.mxu0 0
      %2985 = vmatpush1.bf16.msra.mxu0 0
      %2986 = vmatprep.subr.bf16.mxu0 0
      %2987 = vmatpush1.bf16.msra.mxu0 0
      %2988 = vmatprep.subr.bf16.mxu0 0
      %2989 = vmatpush1.bf16.msra.mxu0 0
      %2990 = vmatprep.subr.bf16.mxu0 0
      %2991 = vmatpush1.bf16.msra.mxu0 0
      %2992 = vmatprep.subr.bf16.mxu0 0
      %2993 = vmatpush1.bf16.msra.mxu0 0
      %2994 = vmatprep.subr.bf16.mxu0 0
      %2995 = vmatpush1.bf16.msra.mxu0 0
      %2996 = vmatprep.subr.bf16.mxu0 0
      %2997 = vmatpush1.bf16.msra.mxu0 %v2980
      %2998 = vmatprep.subr.bf16.mxu0 0
      %2999 = vmatpush2.bf16.msra.mxu0 0
      %3000 = vmatprep.subr.bf16.mxu0 0
      %3001 = vmatpush2.bf16.msra.mxu0 0
      %3002 = vmatprep.subr.bf16.mxu0 0
      %3003 = vmatpush2.bf16.msra.mxu0 0
      %3004 = vmatprep.subr.bf16.mxu0 0
      %3005 = vmatpush2.bf16.msra.mxu0 0
      %3006 = vmatprep.subr.bf16.mxu0 0
      %3007 = vmatpush2.bf16.msra.mxu0 0
      %3008 = vmatprep.subr.bf16.mxu0 0
      %3009 = vmatpush2.bf16.msra.mxu0 0
      %3010 = vmatprep.subr.bf16.mxu0 0
      %3011 = vmatpush2.bf16.msra.mxu0 0
      %3012 = vmatprep.subr.bf16.mxu0 0
      %3013 = vmatpush2.bf16.msra.mxu0 0
      %3014 = vmatprep.mubr.bf16.mxu0 0
      %3015 = vmatmul.mubr.bf16.gmra.mxu0 %v2968
      %v3016 = vpop.f32.mrf.mxu0
      %v3017 = vadd.f32 0.0, %v3016
      %v3018 = vpop.f32.mrf.mxu0
      %v3019 = vpop.f32.mrf.mxu0
      %v3020 = vadd.f32 0.0, %v3019
      %v3021 = vpop.f32.mrf.mxu0
      %3022 = vmatprep.mubr.bf16.mxu0 0
      %3023 = vmatmul.mubr.bf16.gmra.mxu0 %v2971
      %v3024 = vpop.f32.mrf.mxu0
      %v3025 = vadd.f32 0.0, %v3024
      %v3026 = vpop.f32.mrf.mxu0
      %v3027 = vpop.f32.mrf.mxu0
      %v3028 = vadd.f32 0.0, %v3027
      %v3029 = vpop.f32.mrf.mxu0
      %3030 = vmatprep.mubr.bf16.mxu0 0
      %3031 = vmatmul.mubr.bf16.gmra.mxu0 %v2974
      %v3032 = vpop.f32.mrf.mxu0
      %v3033 = vadd.f32 0.0, %v3032
      %v3034 = vpop.f32.mrf.mxu0
      %v3035 = vpop.f32.mrf.mxu0
      %v3036 = vadd.f32 0.0, %v3035
      %v3037 = vpop.f32.mrf.mxu0
      %3038 = vmatprep.mubr.bf16.mxu0 0
      %3039 = vmatmul.mubr.bf16.gmra.mxu0 %v2977
      %v3040 = vpop.f32.mrf.mxu0
      %v3041 = vadd.f32 0.0, %v3040
      %v3042 = vpop.f32.mrf.mxu0
      %v3043 = vpop.f32.mrf.mxu0
      %v3044 = vadd.f32 0.0, %v3043
      %v3045 = vpop.f32.mrf.mxu0
      %3046 = vdwg.mxu0
      %v3047 = vadd.f32 %v2965, %v3017
      %v3048 = vadd.f32 %v2965, %v3020
      %v3049 = vadd.f32 %v2965, %v3025
      %v3050 = vadd.f32 %v2965, %v3028
      %v3051 = vadd.f32 %v2965, %v3033
      %v3052 = vadd.f32 %v2965, %v3036
      %v3053 = vadd.f32 %v2965, %v3041
      %v3054 = vadd.f32 %v2965, %v3044
      %s3055 = scalar_lea.vmem %s11, 2
      %v3056 = vld [vmem:[%s3055] sm:$0x3]
      %v3058 = vsel %vm1120, %v2947, 0
      %v3061 = vsel %vm1120, %v2948, 0
      %v3064 = vsel %vm1120, %v2949, 0
      %v3067 = vsel %vm1120, %v2950, 0
      %v3070 = vsel %vm1843, %v3056, 0
      %3072 = vmatprep.subr.bf16.mxu0 0
      %3073 = vmatpush1.bf16.msra.mxu0 0
      %3074 = vmatprep.subr.bf16.mxu0 0
      %3075 = vmatpush1.bf16.msra.mxu0 0
      %3076 = vmatprep.subr.bf16.mxu0 0
      %3077 = vmatpush1.bf16.msra.mxu0 0
      %3078 = vmatprep.subr.bf16.mxu0 0
      %3079 = vmatpush1.bf16.msra.mxu0 0
      %3080 = vmatprep.subr.bf16.mxu0 0
      %3081 = vmatpush1.bf16.msra.mxu0 0
      %3082 = vmatprep.subr.bf16.mxu0 0
      %3083 = vmatpush1.bf16.msra.mxu0 0
      %3084 = vmatprep.subr.bf16.mxu0 0
      %3085 = vmatpush1.bf16.msra.mxu0 0
      %3086 = vmatprep.subr.bf16.mxu0 0
      %3087 = vmatpush1.bf16.msra.mxu0 %v3070
      %3088 = vmatprep.subr.bf16.mxu0 0
      %3089 = vmatpush2.bf16.msra.mxu0 0
      %3090 = vmatprep.subr.bf16.mxu0 0
      %3091 = vmatpush2.bf16.msra.mxu0 0
      %3092 = vmatprep.subr.bf16.mxu0 0
      %3093 = vmatpush2.bf16.msra.mxu0 0
      %3094 = vmatprep.subr.bf16.mxu0 0
      %3095 = vmatpush2.bf16.msra.mxu0 0
      %3096 = vmatprep.subr.bf16.mxu0 0
      %3097 = vmatpush2.bf16.msra.mxu0 0
      %3098 = vmatprep.subr.bf16.mxu0 0
      %3099 = vmatpush2.bf16.msra.mxu0 0
      %3100 = vmatprep.subr.bf16.mxu0 0
      %3101 = vmatpush2.bf16.msra.mxu0 0
      %3102 = vmatprep.subr.bf16.mxu0 0
      %3103 = vmatpush2.bf16.msra.mxu0 0
      %3104 = vmatprep.mubr.bf16.mxu0 0
      %3105 = vmatmul.mubr.bf16.gmra.mxu0 %v3058
      %v3106 = vpop.f32.mrf.mxu0
      %v3107 = vadd.f32 0.0, %v3106
      %v3108 = vpop.f32.mrf.mxu0
      %v3109 = vpop.f32.mrf.mxu0
      %v3110 = vadd.f32 0.0, %v3109
      %v3111 = vpop.f32.mrf.mxu0
      %3112 = vmatprep.mubr.bf16.mxu0 0
      %3113 = vmatmul.mubr.bf16.gmra.mxu0 %v3061
      %v3114 = vpop.f32.mrf.mxu0
      %v3115 = vadd.f32 0.0, %v3114
      %v3116 = vpop.f32.mrf.mxu0
      %v3117 = vpop.f32.mrf.mxu0
      %v3118 = vadd.f32 0.0, %v3117
      %v3119 = vpop.f32.mrf.mxu0
      %3120 = vmatprep.mubr.bf16.mxu0 0
      %3121 = vmatmul.mubr.bf16.gmra.mxu0 %v3064
      %v3122 = vpop.f32.mrf.mxu0
      %v3123 = vadd.f32 0.0, %v3122
      %v3124 = vpop.f32.mrf.mxu0
      %v3125 = vpop.f32.mrf.mxu0
      %v3126 = vadd.f32 0.0, %v3125
      %v3127 = vpop.f32.mrf.mxu0
      %3128 = vmatprep.mubr.bf16.mxu0 0
      %3129 = vmatmul.mubr.bf16.gmra.mxu0 %v3067
      %v3130 = vpop.f32.mrf.mxu0
      %v3131 = vadd.f32 0.0, %v3130
      %v3132 = vpop.f32.mrf.mxu0
      %v3133 = vpop.f32.mrf.mxu0
      %v3134 = vadd.f32 0.0, %v3133
      %v3135 = vpop.f32.mrf.mxu0
      %3136 = vdwg.mxu0
      %v3137 = vadd.f32 %v3047, %v3107
      %v3138 = vadd.f32 %v3048, %v3110
      %v3139 = vadd.f32 %v3049, %v3115
      %v3140 = vadd.f32 %v3050, %v3118
      %v3141 = vadd.f32 %v3051, %v3123
      %v3142 = vadd.f32 %v3052, %v3126
      %v3143 = vadd.f32 %v3053, %v3131
      %v3144 = vadd.f32 %v3054, %v3134
      %s3145 = scalar_lea.vmem %s11, 4
      %v3146 = vld [vmem:[%s3145] sm:$0x3]
      %v3148 = vsel %vm1120, %v2953, 0
      %v3151 = vsel %vm1120, %v2954, 0
      %v3154 = vsel %vm1120, %v2955, 0
      %v3157 = vsel %vm1120, %v2956, 0
      %v3160 = vsel %vm1843, %v3146, 0
      %3162 = vmatprep.subr.bf16.mxu0 0
      %3163 = vmatpush1.bf16.msra.mxu0 0
      %3164 = vmatprep.subr.bf16.mxu0 0
      %3165 = vmatpush1.bf16.msra.mxu0 0
      %3166 = vmatprep.subr.bf16.mxu0 0
      %3167 = vmatpush1.bf16.msra.mxu0 0
      %3168 = vmatprep.subr.bf16.mxu0 0
      %3169 = vmatpush1.bf16.msra.mxu0 0
      %3170 = vmatprep.subr.bf16.mxu0 0
      %3171 = vmatpush1.bf16.msra.mxu0 0
      %3172 = vmatprep.subr.bf16.mxu0 0
      %3173 = vmatpush1.bf16.msra.mxu0 0
      %3174 = vmatprep.subr.bf16.mxu0 0
      %3175 = vmatpush1.bf16.msra.mxu0 0
      %3176 = vmatprep.subr.bf16.mxu0 0
      %3177 = vmatpush1.bf16.msra.mxu0 %v3160
      %3178 = vmatprep.subr.bf16.mxu0 0
      %3179 = vmatpush2.bf16.msra.mxu0 0
      %3180 = vmatprep.subr.bf16.mxu0 0
      %3181 = vmatpush2.bf16.msra.mxu0 0
      %3182 = vmatprep.subr.bf16.mxu0 0
      %3183 = vmatpush2.bf16.msra.mxu0 0
      %3184 = vmatprep.subr.bf16.mxu0 0
      %3185 = vmatpush2.bf16.msra.mxu0 0
      %3186 = vmatprep.subr.bf16.mxu0 0
      %3187 = vmatpush2.bf16.msra.mxu0 0
      %3188 = vmatprep.subr.bf16.mxu0 0
      %3189 = vmatpush2.bf16.msra.mxu0 0
      %3190 = vmatprep.subr.bf16.mxu0 0
      %3191 = vmatpush2.bf16.msra.mxu0 0
      %3192 = vmatprep.subr.bf16.mxu0 0
      %3193 = vmatpush2.bf16.msra.mxu0 0
      %3194 = vmatprep.mubr.bf16.mxu0 0
      %3195 = vmatmul.mubr.bf16.gmra.mxu0 %v3148
      %v3196 = vpop.f32.mrf.mxu0
      %v3197 = vadd.f32 0.0, %v3196
      %v3198 = vpop.f32.mrf.mxu0
      %v3199 = vpop.f32.mrf.mxu0
      %v3200 = vadd.f32 0.0, %v3199
      %v3201 = vpop.f32.mrf.mxu0
      %3202 = vmatprep.mubr.bf16.mxu0 0
      %3203 = vmatmul.mubr.bf16.gmra.mxu0 %v3151
      %v3204 = vpop.f32.mrf.mxu0
      %v3205 = vadd.f32 0.0, %v3204
      %v3206 = vpop.f32.mrf.mxu0
      %v3207 = vpop.f32.mrf.mxu0
      %v3208 = vadd.f32 0.0, %v3207
      %v3209 = vpop.f32.mrf.mxu0
      %3210 = vmatprep.mubr.bf16.mxu0 0
      %3211 = vmatmul.mubr.bf16.gmra.mxu0 %v3154
      %v3212 = vpop.f32.mrf.mxu0
      %v3213 = vadd.f32 0.0, %v3212
      %v3214 = vpop.f32.mrf.mxu0
      %v3215 = vpop.f32.mrf.mxu0
      %v3216 = vadd.f32 0.0, %v3215
      %v3217 = vpop.f32.mrf.mxu0
      %3218 = vmatprep.mubr.bf16.mxu0 0
      %3219 = vmatmul.mubr.bf16.gmra.mxu0 %v3157
      %v3220 = vpop.f32.mrf.mxu0
      %v3221 = vadd.f32 0.0, %v3220
      %v3222 = vpop.f32.mrf.mxu0
      %v3223 = vpop.f32.mrf.mxu0
      %v3224 = vadd.f32 0.0, %v3223
      %v3225 = vpop.f32.mrf.mxu0
      %3226 = vdwg.mxu0
      %v3227 = vadd.f32 %v3137, %v3197
      %v3228 = vadd.f32 %v3138, %v3200
      %v3229 = vadd.f32 %v3139, %v3205
      %v3230 = vadd.f32 %v3140, %v3208
      %v3231 = vadd.f32 %v3141, %v3213
      %v3232 = vadd.f32 %v3142, %v3216
      %v3233 = vadd.f32 %v3143, %v3221
      %v3234 = vadd.f32 %v3144, %v3224
      %s3235 = scalar_lea.vmem %s11, 6
      %v3236 = vld [vmem:[%s3235] sm:$0x3]
      %v3238 = vsel %vm1120, %v2940, 0
      %v3241 = vsel %vm1843, %v3236, 0
      %3243 = vmatprep.subr.bf16.mxu0 0
      %3244 = vmatpush1.bf16.msra.mxu0 0
      %3245 = vmatprep.subr.bf16.mxu0 0
      %3246 = vmatpush1.bf16.msra.mxu0 0
      %3247 = vmatprep.subr.bf16.mxu0 0
      %3248 = vmatpush1.bf16.msra.mxu0 0
      %3249 = vmatprep.subr.bf16.mxu0 0
      %3250 = vmatpush1.bf16.msra.mxu0 0
      %3251 = vmatprep.subr.bf16.mxu0 0
      %3252 = vmatpush1.bf16.msra.mxu0 0
      %3253 = vmatprep.subr.bf16.mxu0 0
      %3254 = vmatpush1.bf16.msra.mxu0 0
      %3255 = vmatprep.subr.bf16.mxu0 0
      %3256 = vmatpush1.bf16.msra.mxu0 0
      %3257 = vmatprep.subr.bf16.mxu0 0
      %3258 = vmatpush1.bf16.msra.mxu0 %v3241
      %3259 = vmatprep.subr.bf16.mxu0 0
      %3260 = vmatpush2.bf16.msra.mxu0 0
      %3261 = vmatprep.subr.bf16.mxu0 0
      %3262 = vmatpush2.bf16.msra.mxu0 0
      %3263 = vmatprep.subr.bf16.mxu0 0
      %3264 = vmatpush2.bf16.msra.mxu0 0
      %3265 = vmatprep.subr.bf16.mxu0 0
      %3266 = vmatpush2.bf16.msra.mxu0 0
      %3267 = vmatprep.subr.bf16.mxu0 0
      %3268 = vmatpush2.bf16.msra.mxu0 0
      %3269 = vmatprep.subr.bf16.mxu0 0
      %3270 = vmatpush2.bf16.msra.mxu0 0
      %3271 = vmatprep.subr.bf16.mxu0 0
      %3272 = vmatpush2.bf16.msra.mxu0 0
      %3273 = vmatprep.subr.bf16.mxu0 0
      %3274 = vmatpush2.bf16.msra.mxu0 0
      %3275 = vmatprep.mubr.bf16.mxu0 0
      %3276 = vmatmul.mubr.bf16.gmra.mxu0 %v3238
      %v3277 = vpop.f32.mrf.mxu0
      %v3278 = vadd.f32 0.0, %v3277
      %v3279 = vpop.f32.mrf.mxu0
      %v3280 = vpop.f32.mrf.mxu0
      %v3281 = vadd.f32 0.0, %v3280
      %v3282 = vpop.f32.mrf.mxu0
      %3283 = vmatprep.mubr.bf16.mxu0 0
      %3284 = vmatmul.mubr.bf16.gmra.mxu0 %v2968
      %v3285 = vpop.f32.mrf.mxu0
      %v3286 = vadd.f32 0.0, %v3285
      %v3287 = vpop.f32.mrf.mxu0
      %v3288 = vpop.f32.mrf.mxu0
      %v3289 = vadd.f32 0.0, %v3288
      %v3290 = vpop.f32.mrf.mxu0
      %3291 = vmatprep.mubr.bf16.mxu0 0
      %3292 = vmatmul.mubr.bf16.gmra.mxu0 %v2971
      %v3293 = vpop.f32.mrf.mxu0
      %v3294 = vadd.f32 0.0, %v3293
      %v3295 = vpop.f32.mrf.mxu0
      %v3296 = vpop.f32.mrf.mxu0
      %v3297 = vadd.f32 0.0, %v3296
      %v3298 = vpop.f32.mrf.mxu0
      %3299 = vmatprep.mubr.bf16.mxu0 0
      %3300 = vmatmul.mubr.bf16.gmra.mxu0 %v2974
      %v3301 = vpop.f32.mrf.mxu0
      %v3302 = vadd.f32 0.0, %v3301
      %v3303 = vpop.f32.mrf.mxu0
      %v3304 = vpop.f32.mrf.mxu0
      %v3305 = vadd.f32 0.0, %v3304
      %v3306 = vpop.f32.mrf.mxu0
      %3307 = vdwg.mxu0
      %v3308 = vadd.f32 %v3227, %v3278
      %v3309 = vadd.f32 %v3228, %v3281
      %v3310 = vadd.f32 %v3229, %v3286
      %v3311 = vadd.f32 %v3230, %v3289
      %v3312 = vadd.f32 %v3231, %v3294
      %v3313 = vadd.f32 %v3232, %v3297
      %v3314 = vadd.f32 %v3233, %v3302
      %v3315 = vadd.f32 %v3234, %v3305
      %s3316 = scalar_lea.vmem %s11, 8
      %v3317 = vld [vmem:[%s3316] sm:$0x3]
      %v3319 = vsel %vm1120, %v2946, 0
      %v3322 = vsel %vm1843, %v3317, 0
      %3324 = vmatprep.subr.bf16.mxu0 0
      %3325 = vmatpush1.bf16.msra.mxu0 0
      %3326 = vmatprep.subr.bf16.mxu0 0
      %3327 = vmatpush1.bf16.msra.mxu0 0
      %3328 = vmatprep.subr.bf16.mxu0 0
      %3329 = vmatpush1.bf16.msra.mxu0 0
      %3330 = vmatprep.subr.bf16.mxu0 0
      %3331 = vmatpush1.bf16.msra.mxu0 0
      %3332 = vmatprep.subr.bf16.mxu0 0
      %3333 = vmatpush1.bf16.msra.mxu0 0
      %3334 = vmatprep.subr.bf16.mxu0 0
      %3335 = vmatpush1.bf16.msra.mxu0 0
      %3336 = vmatprep.subr.bf16.mxu0 0
      %3337 = vmatpush1.bf16.msra.mxu0 0
      %3338 = vmatprep.subr.bf16.mxu0 0
      %3339 = vmatpush1.bf16.msra.mxu0 %v3322
      %3340 = vmatprep.subr.bf16.mxu0 0
      %3341 = vmatpush2.bf16.msra.mxu0 0
      %3342 = vmatprep.subr.bf16.mxu0 0
      %3343 = vmatpush2.bf16.msra.mxu0 0
      %3344 = vmatprep.subr.bf16.mxu0 0
      %3345 = vmatpush2.bf16.msra.mxu0 0
      %3346 = vmatprep.subr.bf16.mxu0 0
      %3347 = vmatpush2.bf16.msra.mxu0 0
      %3348 = vmatprep.subr.bf16.mxu0 0
      %3349 = vmatpush2.bf16.msra.mxu0 0
      %3350 = vmatprep.subr.bf16.mxu0 0
      %3351 = vmatpush2.bf16.msra.mxu0 0
      %3352 = vmatprep.subr.bf16.mxu0 0
      %3353 = vmatpush2.bf16.msra.mxu0 0
      %3354 = vmatprep.subr.bf16.mxu0 0
      %3355 = vmatpush2.bf16.msra.mxu0 0
      %3356 = vmatprep.mubr.bf16.mxu0 0
      %3357 = vmatmul.mubr.bf16.gmra.mxu0 %v3319
      %v3358 = vpop.f32.mrf.mxu0
      %v3359 = vadd.f32 0.0, %v3358
      %v3360 = vpop.f32.mrf.mxu0
      %v3361 = vpop.f32.mrf.mxu0
      %v3362 = vadd.f32 0.0, %v3361
      %v3363 = vpop.f32.mrf.mxu0
      %3364 = vmatprep.mubr.bf16.mxu0 0
      %3365 = vmatmul.mubr.bf16.gmra.mxu0 %v3058
      %v3366 = vpop.f32.mrf.mxu0
      %v3367 = vadd.f32 0.0, %v3366
      %v3368 = vpop.f32.mrf.mxu0
      %v3369 = vpop.f32.mrf.mxu0
      %v3370 = vadd.f32 0.0, %v3369
      %v3371 = vpop.f32.mrf.mxu0
      %3372 = vmatprep.mubr.bf16.mxu0 0
      %3373 = vmatmul.mubr.bf16.gmra.mxu0 %v3061
      %v3374 = vpop.f32.mrf.mxu0
      %v3375 = vadd.f32 0.0, %v3374
      %v3376 = vpop.f32.mrf.mxu0
      %v3377 = vpop.f32.mrf.mxu0
      %v3378 = vadd.f32 0.0, %v3377
      %v3379 = vpop.f32.mrf.mxu0
      %3380 = vmatprep.mubr.bf16.mxu0 0
      %3381 = vmatmul.mubr.bf16.gmra.mxu0 %v3064
      %v3382 = vpop.f32.mrf.mxu0
      %v3383 = vadd.f32 0.0, %v3382
      %v3384 = vpop.f32.mrf.mxu0
      %v3385 = vpop.f32.mrf.mxu0
      %v3386 = vadd.f32 0.0, %v3385
      %v3387 = vpop.f32.mrf.mxu0
      %3388 = vdwg.mxu0
      %v3389 = vadd.f32 %v3308, %v3359
      %v3390 = vadd.f32 %v3309, %v3362
      %v3391 = vadd.f32 %v3310, %v3367
      %v3392 = vadd.f32 %v3311, %v3370
      %v3393 = vadd.f32 %v3312, %v3375
      %v3394 = vadd.f32 %v3313, %v3378
      %v3395 = vadd.f32 %v3314, %v3383
      %v3396 = vadd.f32 %v3315, %v3386
      %s3397 = scalar_lea.vmem %s11, 10
      %v3398 = vld [vmem:[%s3397] sm:$0x3]
      %v3400 = vsel %vm1120, %v2952, 0
      %v3403 = vsel %vm1843, %v3398, 0
      %3405 = vmatprep.subr.bf16.mxu0 0
      %3406 = vmatpush1.bf16.msra.mxu0 0
      %3407 = vmatprep.subr.bf16.mxu0 0
      %3408 = vmatpush1.bf16.msra.mxu0 0
      %3409 = vmatprep.subr.bf16.mxu0 0
      %3410 = vmatpush1.bf16.msra.mxu0 0
      %3411 = vmatprep.subr.bf16.mxu0 0
      %3412 = vmatpush1.bf16.msra.mxu0 0
      %3413 = vmatprep.subr.bf16.mxu0 0
      %3414 = vmatpush1.bf16.msra.mxu0 0
      %3415 = vmatprep.subr.bf16.mxu0 0
      %3416 = vmatpush1.bf16.msra.mxu0 0
      %3417 = vmatprep.subr.bf16.mxu0 0
      %3418 = vmatpush1.bf16.msra.mxu0 0
      %3419 = vmatprep.subr.bf16.mxu0 0
      %3420 = vmatpush1.bf16.msra.mxu0 %v3403
      %3421 = vmatprep.subr.bf16.mxu0 0
      %3422 = vmatpush2.bf16.msra.mxu0 0
      %3423 = vmatprep.subr.bf16.mxu0 0
      %3424 = vmatpush2.bf16.msra.mxu0 0
      %3425 = vmatprep.subr.bf16.mxu0 0
      %3426 = vmatpush2.bf16.msra.mxu0 0
      %3427 = vmatprep.subr.bf16.mxu0 0
      %3428 = vmatpush2.bf16.msra.mxu0 0
      %3429 = vmatprep.subr.bf16.mxu0 0
      %3430 = vmatpush2.bf16.msra.mxu0 0
      %3431 = vmatprep.subr.bf16.mxu0 0
      %3432 = vmatpush2.bf16.msra.mxu0 0
      %3433 = vmatprep.subr.bf16.mxu0 0
      %3434 = vmatpush2.bf16.msra.mxu0 0
      %3435 = vmatprep.subr.bf16.mxu0 0
      %3436 = vmatpush2.bf16.msra.mxu0 0
      %3437 = vmatprep.mubr.bf16.mxu0 0
      %3438 = vmatmul.mubr.bf16.gmra.mxu0 %v3400
      %v3439 = vpop.f32.mrf.mxu0
      %v3440 = vadd.f32 0.0, %v3439
      %v3441 = vpop.f32.mrf.mxu0
      %v3442 = vpop.f32.mrf.mxu0
      %v3443 = vadd.f32 0.0, %v3442
      %v3444 = vpop.f32.mrf.mxu0
      %3445 = vmatprep.mubr.bf16.mxu0 0
      %3446 = vmatmul.mubr.bf16.gmra.mxu0 %v3148
      %v3447 = vpop.f32.mrf.mxu0
      %v3448 = vadd.f32 0.0, %v3447
      %v3449 = vpop.f32.mrf.mxu0
      %v3450 = vpop.f32.mrf.mxu0
      %v3451 = vadd.f32 0.0, %v3450
      %v3452 = vpop.f32.mrf.mxu0
      %3453 = vmatprep.mubr.bf16.mxu0 0
      %3454 = vmatmul.mubr.bf16.gmra.mxu0 %v3151
      %v3455 = vpop.f32.mrf.mxu0
      %v3456 = vadd.f32 0.0, %v3455
      %v3457 = vpop.f32.mrf.mxu0
      %v3458 = vpop.f32.mrf.mxu0
      %v3459 = vadd.f32 0.0, %v3458
      %v3460 = vpop.f32.mrf.mxu0
      %3461 = vmatprep.mubr.bf16.mxu0 0
      %3462 = vmatmul.mubr.bf16.gmra.mxu0 %v3154
      %v3463 = vpop.f32.mrf.mxu0
      %v3464 = vadd.f32 0.0, %v3463
      %v3465 = vpop.f32.mrf.mxu0
      %v3466 = vpop.f32.mrf.mxu0
      %v3467 = vadd.f32 0.0, %v3466
      %v3468 = vpop.f32.mrf.mxu0
      %3469 = vdwg.mxu0
      %v3470 = vadd.f32 %v3389, %v3440
      %v3471 = vadd.f32 %v3390, %v3443
      %v3472 = vadd.f32 %v3391, %v3448
      %v3473 = vadd.f32 %v3392, %v3451
      %v3474 = vadd.f32 %v3393, %v3456
      %v3475 = vadd.f32 %v3394, %v3459
      %v3476 = vadd.f32 %v3395, %v3464
      %v3477 = vadd.f32 %v3396, %v3467
      %v3478 = vpack.c.bf16 %v3471, %v3470
      %v3479 = vpack.c.bf16 %v3473, %v3472
      %v3480 = vpack.c.bf16 %v3475, %v3474
      %v3481 = vpack.c.bf16 %v3477, %v3476
      %v3486 = vunpack.c.l.b16 %v3478
      %v3487 = vunpack.c.h.b16 %v3478
      %v3488 = vunpack.c.l.b16 %v3479
      %v3489 = vunpack.c.h.b16 %v3479
      %v3490 = vunpack.c.l.b16 %v3480
      %v3491 = vunpack.c.h.b16 %v3480
      %v3492 = vunpack.c.l.b16 %v3481
      %v3493 = vunpack.c.h.b16 %v3481
      %v3494 = vpack.c.b16 %v3486, %v3486
      %v3495 = vpack.c.b16 %v3487, %v3487
      %v3496 = vpack.c.b16 %v3488, %v3488
      %v3497 = vpack.c.b16 %v3489, %v3489
      %v3498 = vpack.c.b16 %v3490, %v3490
      %v3499 = vpack.c.b16 %v3491, %v3491
      %v3500 = vpack.c.b16 %v3492, %v3492
      %v3501 = vpack.c.b16 %v3493, %v3493
      %vm3510 = vcmask 60416
      %3511 = vst.msk [vmem:[%s764] sm:$0xf] %vm3510, %v3494
      %3512 = vst.msk [vmem:[%s764 + $0x4] sm:$0xf] %vm3510, %v3495
      %3513 = vst.msk [vmem:[%s764 + $0x10] sm:$0xf] %vm3510, %v3496
      %3514 = vst.msk [vmem:[%s764 + $0x14] sm:$0xf] %vm3510, %v3497
      %3515 = vst.msk [vmem:[%s764 + $0x20] sm:$0xf] %vm3510, %v3498
      %3516 = vst.msk [vmem:[%s764 + $0x24] sm:$0xf] %vm3510, %v3499
      %3517 = vst.msk [vmem:[%s764 + $0x30] sm:$0xf] %vm3510, %v3500
      %3518 = vst.msk [vmem:[%s764 + $0x34] sm:$0xf] %vm3510, %v3501
      %v3519 = vld [vmem:[%s12] sm:$0x1]
      %v3521 = vlaneseq
      %v3522 = vshrl.u32 %v3521, 7
      %v3523 = vsub.s32 0, %v3522
      %v3524 = vrot.slane %v3519, %v3523
      %v3526 = vadd.f32 %v3524, 0.0
      %s3527 = scalar_lea.vmem %s11, 12
      %v3528 = vld [vmem:[%s3527] sm:$0x3]
      %v3530 = vsel %vm1843, %v3528, 0
      %3532 = vmatprep.subr.bf16.mxu0 0
      %3533 = vmatpush1.bf16.msra.mxu0 0
      %3534 = vmatprep.subr.bf16.mxu0 0
      %3535 = vmatpush1.bf16.msra.mxu0 0
      %3536 = vmatprep.subr.bf16.mxu0 0
      %3537 = vmatpush1.bf16.msra.mxu0 0
      %3538 = vmatprep.subr.bf16.mxu0 0
      %3539 = vmatpush1.bf16.msra.mxu0 0
      %3540 = vmatprep.subr.bf16.mxu0 0
      %3541 = vmatpush1.bf16.msra.mxu0 0
      %3542 = vmatprep.subr.bf16.mxu0 0
      %3543 = vmatpush1.bf16.msra.mxu0 0
      %3544 = vmatprep.subr.bf16.mxu0 0
      %3545 = vmatpush1.bf16.msra.mxu0 0
      %3546 = vmatprep.subr.bf16.mxu0 0
      %3547 = vmatpush1.bf16.msra.mxu0 %v3530
      %3548 = vmatprep.subr.bf16.mxu0 0
      %3549 = vmatpush2.bf16.msra.mxu0 0
      %3550 = vmatprep.subr.bf16.mxu0 0
      %3551 = vmatpush2.bf16.msra.mxu0 0
      %3552 = vmatprep.subr.bf16.mxu0 0
      %3553 = vmatpush2.bf16.msra.mxu0 0
      %3554 = vmatprep.subr.bf16.mxu0 0
      %3555 = vmatpush2.bf16.msra.mxu0 0
      %3556 = vmatprep.subr.bf16.mxu0 0
      %3557 = vmatpush2.bf16.msra.mxu0 0
      %3558 = vmatprep.subr.bf16.mxu0 0
      %3559 = vmatpush2.bf16.msra.mxu0 0
      %3560 = vmatprep.subr.bf16.mxu0 0
      %3561 = vmatpush2.bf16.msra.mxu0 0
      %3562 = vmatprep.subr.bf16.mxu0 0
      %3563 = vmatpush2.bf16.msra.mxu0 0
      %3564 = vmatprep.mubr.bf16.mxu0 0
      %3565 = vmatmul.mubr.bf16.gmra.mxu0 %v2968
      %v3566 = vpop.f32.mrf.mxu0
      %v3567 = vadd.f32 0.0, %v3566
      %v3568 = vpop.f32.mrf.mxu0
      %v3569 = vpop.f32.mrf.mxu0
      %v3570 = vadd.f32 0.0, %v3569
      %v3571 = vpop.f32.mrf.mxu0
      %3572 = vmatprep.mubr.bf16.mxu0 0
      %3573 = vmatmul.mubr.bf16.gmra.mxu0 %v2971
      %v3574 = vpop.f32.mrf.mxu0
      %v3575 = vadd.f32 0.0, %v3574
      %v3576 = vpop.f32.mrf.mxu0
      %v3577 = vpop.f32.mrf.mxu0
      %v3578 = vadd.f32 0.0, %v3577
      %v3579 = vpop.f32.mrf.mxu0
      %3580 = vmatprep.mubr.bf16.mxu0 0
      %3581 = vmatmul.mubr.bf16.gmra.mxu0 %v2974
      %v3582 = vpop.f32.mrf.mxu0
      %v3583 = vadd.f32 0.0, %v3582
      %v3584 = vpop.f32.mrf.mxu0
      %v3585 = vpop.f32.mrf.mxu0
      %v3586 = vadd.f32 0.0, %v3585
      %v3587 = vpop.f32.mrf.mxu0
      %3588 = vmatprep.mubr.bf16.mxu0 0
      %3589 = vmatmul.mubr.bf16.gmra.mxu0 %v2977
      %v3590 = vpop.f32.mrf.mxu0
      %v3591 = vadd.f32 0.0, %v3590
      %v3592 = vpop.f32.mrf.mxu0
      %v3593 = vpop.f32.mrf.mxu0
      %v3594 = vadd.f32 0.0, %v3593
      %v3595 = vpop.f32.mrf.mxu0
      %3596 = vdwg.mxu0
      %v3597 = vadd.f32 %v3526, %v3567
      %v3598 = vadd.f32 %v3526, %v3570
      %v3599 = vadd.f32 %v3526, %v3575
      %v3600 = vadd.f32 %v3526, %v3578
      %v3601 = vadd.f32 %v3526, %v3583
      %v3602 = vadd.f32 %v3526, %v3586
      %v3603 = vadd.f32 %v3526, %v3591
      %v3604 = vadd.f32 %v3526, %v3594
      %s3605 = scalar_lea.vmem %s11, 14
      %v3606 = vld [vmem:[%s3605] sm:$0x3]
      %v3608 = vsel %vm1843, %v3606, 0
      %3610 = vmatprep.subr.bf16.mxu0 0
      %3611 = vmatpush1.bf16.msra.mxu0 0
      %3612 = vmatprep.subr.bf16.mxu0 0
      %3613 = vmatpush1.bf16.msra.mxu0 0
      %3614 = vmatprep.subr.bf16.mxu0 0
      %3615 = vmatpush1.bf16.msra.mxu0 0
      %3616 = vmatprep.subr.bf16.mxu0 0
      %3617 = vmatpush1.bf16.msra.mxu0 0
      %3618 = vmatprep.subr.bf16.mxu0 0
      %3619 = vmatpush1.bf16.msra.mxu0 0
      %3620 = vmatprep.subr.bf16.mxu0 0
      %3621 = vmatpush1.bf16.msra.mxu0 0
      %3622 = vmatprep.subr.bf16.mxu0 0
      %3623 = vmatpush1.bf16.msra.mxu0 0
      %3624 = vmatprep.subr.bf16.mxu0 0
      %3625 = vmatpush1.bf16.msra.mxu0 %v3608
      %3626 = vmatprep.subr.bf16.mxu0 0
      %3627 = vmatpush2.bf16.msra.mxu0 0
      %3628 = vmatprep.subr.bf16.mxu0 0
      %3629 = vmatpush2.bf16.msra.mxu0 0
      %3630 = vmatprep.subr.bf16.mxu0 0
      %3631 = vmatpush2.bf16.msra.mxu0 0
      %3632 = vmatprep.subr.bf16.mxu0 0
      %3633 = vmatpush2.bf16.msra.mxu0 0
      %3634 = vmatprep.subr.bf16.mxu0 0
      %3635 = vmatpush2.bf16.msra.mxu0 0
      %3636 = vmatprep.subr.bf16.mxu0 0
      %3637 = vmatpush2.bf16.msra.mxu0 0
      %3638 = vmatprep.subr.bf16.mxu0 0
      %3639 = vmatpush2.bf16.msra.mxu0 0
      %3640 = vmatprep.subr.bf16.mxu0 0
      %3641 = vmatpush2.bf16.msra.mxu0 0
      %3642 = vmatprep.mubr.bf16.mxu0 0
      %3643 = vmatmul.mubr.bf16.gmra.mxu0 %v3058
      %v3644 = vpop.f32.mrf.mxu0
      %v3645 = vadd.f32 0.0, %v3644
      %v3646 = vpop.f32.mrf.mxu0
      %v3647 = vpop.f32.mrf.mxu0
      %v3648 = vadd.f32 0.0, %v3647
      %v3649 = vpop.f32.mrf.mxu0
      %3650 = vmatprep.mubr.bf16.mxu0 0
      %3651 = vmatmul.mubr.bf16.gmra.mxu0 %v3061
      %v3652 = vpop.f32.mrf.mxu0
      %v3653 = vadd.f32 0.0, %v3652
      %v3654 = vpop.f32.mrf.mxu0
      %v3655 = vpop.f32.mrf.mxu0
      %v3656 = vadd.f32 0.0, %v3655
      %v3657 = vpop.f32.mrf.mxu0
      %3658 = vmatprep.mubr.bf16.mxu0 0
      %3659 = vmatmul.mubr.bf16.gmra.mxu0 %v3064
      %v3660 = vpop.f32.mrf.mxu0
      %v3661 = vadd.f32 0.0, %v3660
      %v3662 = vpop.f32.mrf.mxu0
      %v3663 = vpop.f32.mrf.mxu0
      %v3664 = vadd.f32 0.0, %v3663
      %v3665 = vpop.f32.mrf.mxu0
      %3666 = vmatprep.mubr.bf16.mxu0 0
      %3667 = vmatmul.mubr.bf16.gmra.mxu0 %v3067
      %v3668 = vpop.f32.mrf.mxu0
      %v3669 = vadd.f32 0.0, %v3668
      %v3670 = vpop.f32.mrf.mxu0
      %v3671 = vpop.f32.mrf.mxu0
      %v3672 = vadd.f32 0.0, %v3671
      %v3673 = vpop.f32.mrf.mxu0
      %3674 = vdwg.mxu0
      %v3675 = vadd.f32 %v3597, %v3645
      %v3676 = vadd.f32 %v3598, %v3648
      %v3677 = vadd.f32 %v3599, %v3653
      %v3678 = vadd.f32 %v3600, %v3656
      %v3679 = vadd.f32 %v3601, %v3661
      %v3680 = vadd.f32 %v3602, %v3664
      %v3681 = vadd.f32 %v3603, %v3669
      %v3682 = vadd.f32 %v3604, %v3672
      %s3683 = scalar_lea.vmem %s11, 16
      %v3684 = vld [vmem:[%s3683] sm:$0x3]
      %v3686 = vsel %vm1843, %v3684, 0
      %3688 = vmatprep.subr.bf16.mxu0 0
      %3689 = vmatpush1.bf16.msra.mxu0 0
      %3690 = vmatprep.subr.bf16.mxu0 0
      %3691 = vmatpush1.bf16.msra.mxu0 0
      %3692 = vmatprep.subr.bf16.mxu0 0
      %3693 = vmatpush1.bf16.msra.mxu0 0
      %3694 = vmatprep.subr.bf16.mxu0 0
      %3695 = vmatpush1.bf16.msra.mxu0 0
      %3696 = vmatprep.subr.bf16.mxu0 0
      %3697 = vmatpush1.bf16.msra.mxu0 0
      %3698 = vmatprep.subr.bf16.mxu0 0
      %3699 = vmatpush1.bf16.msra.mxu0 0
      %3700 = vmatprep.subr.bf16.mxu0 0
      %3701 = vmatpush1.bf16.msra.mxu0 0
      %3702 = vmatprep.subr.bf16.mxu0 0
      %3703 = vmatpush1.bf16.msra.mxu0 %v3686
      %3704 = vmatprep.subr.bf16.mxu0 0
      %3705 = vmatpush2.bf16.msra.mxu0 0
      %3706 = vmatprep.subr.bf16.mxu0 0
      %3707 = vmatpush2.bf16.msra.mxu0 0
      %3708 = vmatprep.subr.bf16.mxu0 0
      %3709 = vmatpush2.bf16.msra.mxu0 0
      %3710 = vmatprep.subr.bf16.mxu0 0
      %3711 = vmatpush2.bf16.msra.mxu0 0
      %3712 = vmatprep.subr.bf16.mxu0 0
      %3713 = vmatpush2.bf16.msra.mxu0 0
      %3714 = vmatprep.subr.bf16.mxu0 0
      %3715 = vmatpush2.bf16.msra.mxu0 0
      %3716 = vmatprep.subr.bf16.mxu0 0
      %3717 = vmatpush2.bf16.msra.mxu0 0
      %3718 = vmatprep.subr.bf16.mxu0 0
      %3719 = vmatpush2.bf16.msra.mxu0 0
      %3720 = vmatprep.mubr.bf16.mxu0 0
      %3721 = vmatmul.mubr.bf16.gmra.mxu0 %v3148
      %v3722 = vpop.f32.mrf.mxu0
      %v3723 = vadd.f32 0.0, %v3722
      %v3724 = vpop.f32.mrf.mxu0
      %v3725 = vpop.f32.mrf.mxu0
      %v3726 = vadd.f32 0.0, %v3725
      %v3727 = vpop.f32.mrf.mxu0
      %3728 = vmatprep.mubr.bf16.mxu0 0
      %3729 = vmatmul.mubr.bf16.gmra.mxu0 %v3151
      %v3730 = vpop.f32.mrf.mxu0
      %v3731 = vadd.f32 0.0, %v3730
      %v3732 = vpop.f32.mrf.mxu0
      %v3733 = vpop.f32.mrf.mxu0
      %v3734 = vadd.f32 0.0, %v3733
      %v3735 = vpop.f32.mrf.mxu0
      %3736 = vmatprep.mubr.bf16.mxu0 0
      %3737 = vmatmul.mubr.bf16.gmra.mxu0 %v3154
      %v3738 = vpop.f32.mrf.mxu0
      %v3739 = vadd.f32 0.0, %v3738
      %v3740 = vpop.f32.mrf.mxu0
      %v3741 = vpop.f32.mrf.mxu0
      %v3742 = vadd.f32 0.0, %v3741
      %v3743 = vpop.f32.mrf.mxu0
      %3744 = vmatprep.mubr.bf16.mxu0 0
      %3745 = vmatmul.mubr.bf16.gmra.mxu0 %v3157
      %v3746 = vpop.f32.mrf.mxu0
      %v3747 = vadd.f32 0.0, %v3746
      %v3748 = vpop.f32.mrf.mxu0
      %v3749 = vpop.f32.mrf.mxu0
      %v3750 = vadd.f32 0.0, %v3749
      %v3751 = vpop.f32.mrf.mxu0
      %3752 = vdwg.mxu0
      %v3753 = vadd.f32 %v3675, %v3723
      %v3754 = vadd.f32 %v3676, %v3726
      %v3755 = vadd.f32 %v3677, %v3731
      %v3756 = vadd.f32 %v3678, %v3734
      %v3757 = vadd.f32 %v3679, %v3739
      %v3758 = vadd.f32 %v3680, %v3742
      %v3759 = vadd.f32 %v3681, %v3747
      %v3760 = vadd.f32 %v3682, %v3750
      %s3761 = scalar_lea.vmem %s11, 18
      %v3762 = vld [vmem:[%s3761] sm:$0x3]
      %v3764 = vsel %vm1120, %v2945, 0
      %v3767 = vsel %vm1843, %v3762, 0
      %3769 = vmatprep.subr.bf16.mxu0 0
      %3770 = vmatpush1.bf16.msra.mxu0 0
      %3771 = vmatprep.subr.bf16.mxu0 0
      %3772 = vmatpush1.bf16.msra.mxu0 0
      %3773 = vmatprep.subr.bf16.mxu0 0
      %3774 = vmatpush1.bf16.msra.mxu0 0
      %3775 = vmatprep.subr.bf16.mxu0 0
      %3776 = vmatpush1.bf16.msra.mxu0 0
      %3777 = vmatprep.subr.bf16.mxu0 0
      %3778 = vmatpush1.bf16.msra.mxu0 0
      %3779 = vmatprep.subr.bf16.mxu0 0
      %3780 = vmatpush1.bf16.msra.mxu0 0
      %3781 = vmatprep.subr.bf16.mxu0 0
      %3782 = vmatpush1.bf16.msra.mxu0 0
      %3783 = vmatprep.subr.bf16.mxu0 0
      %3784 = vmatpush1.bf16.msra.mxu0 %v3767
      %3785 = vmatprep.subr.bf16.mxu0 0
      %3786 = vmatpush2.bf16.msra.mxu0 0
      %3787 = vmatprep.subr.bf16.mxu0 0
      %3788 = vmatpush2.bf16.msra.mxu0 0
      %3789 = vmatprep.subr.bf16.mxu0 0
      %3790 = vmatpush2.bf16.msra.mxu0 0
      %3791 = vmatprep.subr.bf16.mxu0 0
      %3792 = vmatpush2.bf16.msra.mxu0 0
      %3793 = vmatprep.subr.bf16.mxu0 0
      %3794 = vmatpush2.bf16.msra.mxu0 0
      %3795 = vmatprep.subr.bf16.mxu0 0
      %3796 = vmatpush2.bf16.msra.mxu0 0
      %3797 = vmatprep.subr.bf16.mxu0 0
      %3798 = vmatpush2.bf16.msra.mxu0 0
      %3799 = vmatprep.subr.bf16.mxu0 0
      %3800 = vmatpush2.bf16.msra.mxu0 0
      %3801 = vmatprep.mubr.bf16.mxu0 0
      %3802 = vmatmul.mubr.bf16.gmra.mxu0 %v2971
      %v3803 = vpop.f32.mrf.mxu0
      %v3804 = vadd.f32 0.0, %v3803
      %v3805 = vpop.f32.mrf.mxu0
      %v3806 = vpop.f32.mrf.mxu0
      %v3807 = vadd.f32 0.0, %v3806
      %v3808 = vpop.f32.mrf.mxu0
      %3809 = vmatprep.mubr.bf16.mxu0 0
      %3810 = vmatmul.mubr.bf16.gmra.mxu0 %v2974
      %v3811 = vpop.f32.mrf.mxu0
      %v3812 = vadd.f32 0.0, %v3811
      %v3813 = vpop.f32.mrf.mxu0
      %v3814 = vpop.f32.mrf.mxu0
      %v3815 = vadd.f32 0.0, %v3814
      %v3816 = vpop.f32.mrf.mxu0
      %3817 = vmatprep.mubr.bf16.mxu0 0
      %3818 = vmatmul.mubr.bf16.gmra.mxu0 %v2977
      %v3819 = vpop.f32.mrf.mxu0
      %v3820 = vadd.f32 0.0, %v3819
      %v3821 = vpop.f32.mrf.mxu0
      %v3822 = vpop.f32.mrf.mxu0
      %v3823 = vadd.f32 0.0, %v3822
      %v3824 = vpop.f32.mrf.mxu0
      %3825 = vmatprep.mubr.bf16.mxu0 0
      %3826 = vmatmul.mubr.bf16.gmra.mxu0 %v3764
      %v3827 = vpop.f32.mrf.mxu0
      %v3828 = vadd.f32 0.0, %v3827
      %v3829 = vpop.f32.mrf.mxu0
      %v3830 = vpop.f32.mrf.mxu0
      %v3831 = vadd.f32 0.0, %v3830
      %v3832 = vpop.f32.mrf.mxu0
      %3833 = vdwg.mxu0
      %v3834 = vadd.f32 %v3753, %v3804
      %v3835 = vadd.f32 %v3754, %v3807
      %v3836 = vadd.f32 %v3755, %v3812
      %v3837 = vadd.f32 %v3756, %v3815
      %v3838 = vadd.f32 %v3757, %v3820
      %v3839 = vadd.f32 %v3758, %v3823
      %v3840 = vadd.f32 %v3759, %v3828
      %v3841 = vadd.f32 %v3760, %v3831
      %s3842 = scalar_lea.vmem %s11, 20
      %v3843 = vld [vmem:[%s3842] sm:$0x3]
      %v3845 = vsel %vm1120, %v2951, 0
      %v3848 = vsel %vm1843, %v3843, 0
      %3850 = vmatprep.subr.bf16.mxu0 0
      %3851 = vmatpush1.bf16.msra.mxu0 0
      %3852 = vmatprep.subr.bf16.mxu0 0
      %3853 = vmatpush1.bf16.msra.mxu0 0
      %3854 = vmatprep.subr.bf16.mxu0 0
      %3855 = vmatpush1.bf16.msra.mxu0 0
      %3856 = vmatprep.subr.bf16.mxu0 0
      %3857 = vmatpush1.bf16.msra.mxu0 0
      %3858 = vmatprep.subr.bf16.mxu0 0
      %3859 = vmatpush1.bf16.msra.mxu0 0
      %3860 = vmatprep.subr.bf16.mxu0 0
      %3861 = vmatpush1.bf16.msra.mxu0 0
      %3862 = vmatprep.subr.bf16.mxu0 0
      %3863 = vmatpush1.bf16.msra.mxu0 0
      %3864 = vmatprep.subr.bf16.mxu0 0
      %3865 = vmatpush1.bf16.msra.mxu0 %v3848
      %3866 = vmatprep.subr.bf16.mxu0 0
      %3867 = vmatpush2.bf16.msra.mxu0 0
      %3868 = vmatprep.subr.bf16.mxu0 0
      %3869 = vmatpush2.bf16.msra.mxu0 0
      %3870 = vmatprep.subr.bf16.mxu0 0
      %3871 = vmatpush2.bf16.msra.mxu0 0
      %3872 = vmatprep.subr.bf16.mxu0 0
      %3873 = vmatpush2.bf16.msra.mxu0 0
      %3874 = vmatprep.subr.bf16.mxu0 0
      %3875 = vmatpush2.bf16.msra.mxu0 0
      %3876 = vmatprep.subr.bf16.mxu0 0
      %3877 = vmatpush2.bf16.msra.mxu0 0
      %3878 = vmatprep.subr.bf16.mxu0 0
      %3879 = vmatpush2.bf16.msra.mxu0 0
      %3880 = vmatprep.subr.bf16.mxu0 0
      %3881 = vmatpush2.bf16.msra.mxu0 0
      %3882 = vmatprep.mubr.bf16.mxu0 0
      %3883 = vmatmul.mubr.bf16.gmra.mxu0 %v3061
      %v3884 = vpop.f32.mrf.mxu0
      %v3885 = vadd.f32 0.0, %v3884
      %v3886 = vpop.f32.mrf.mxu0
      %v3887 = vpop.f32.mrf.mxu0
      %v3888 = vadd.f32 0.0, %v3887
      %v3889 = vpop.f32.mrf.mxu0
      %3890 = vmatprep.mubr.bf16.mxu0 0
      %3891 = vmatmul.mubr.bf16.gmra.mxu0 %v3064
      %v3892 = vpop.f32.mrf.mxu0
      %v3893 = vadd.f32 0.0, %v3892
      %v3894 = vpop.f32.mrf.mxu0
      %v3895 = vpop.f32.mrf.mxu0
      %v3896 = vadd.f32 0.0, %v3895
      %v3897 = vpop.f32.mrf.mxu0
      %3898 = vmatprep.mubr.bf16.mxu0 0
      %3899 = vmatmul.mubr.bf16.gmra.mxu0 %v3067
      %v3900 = vpop.f32.mrf.mxu0
      %v3901 = vadd.f32 0.0, %v3900
      %v3902 = vpop.f32.mrf.mxu0
      %v3903 = vpop.f32.mrf.mxu0
      %v3904 = vadd.f32 0.0, %v3903
      %v3905 = vpop.f32.mrf.mxu0
      %3906 = vmatprep.mubr.bf16.mxu0 0
      %3907 = vmatmul.mubr.bf16.gmra.mxu0 %v3845
      %v3908 = vpop.f32.mrf.mxu0
      %v3909 = vadd.f32 0.0, %v3908
      %v3910 = vpop.f32.mrf.mxu0
      %v3911 = vpop.f32.mrf.mxu0
      %v3912 = vadd.f32 0.0, %v3911
      %v3913 = vpop.f32.mrf.mxu0
      %3914 = vdwg.mxu0
      %v3915 = vadd.f32 %v3834, %v3885
      %v3916 = vadd.f32 %v3835, %v3888
      %v3917 = vadd.f32 %v3836, %v3893
      %v3918 = vadd.f32 %v3837, %v3896
      %v3919 = vadd.f32 %v3838, %v3901
      %v3920 = vadd.f32 %v3839, %v3904
      %v3921 = vadd.f32 %v3840, %v3909
      %v3922 = vadd.f32 %v3841, %v3912
      %s3923 = scalar_lea.vmem %s11, 22
      %v3924 = vld [vmem:[%s3923] sm:$0x3]
      %v3926 = vsel %vm1120, %v2957, 0
      %v3929 = vsel %vm1843, %v3924, 0
      %3931 = vmatprep.subr.bf16.mxu0 0
      %3932 = vmatpush1.bf16.msra.mxu0 0
      %3933 = vmatprep.subr.bf16.mxu0 0
      %3934 = vmatpush1.bf16.msra.mxu0 0
      %3935 = vmatprep.subr.bf16.mxu0 0
      %3936 = vmatpush1.bf16.msra.mxu0 0
      %3937 = vmatprep.subr.bf16.mxu0 0
      %3938 = vmatpush1.bf16.msra.mxu0 0
      %3939 = vmatprep.subr.bf16.mxu0 0
      %3940 = vmatpush1.bf16.msra.mxu0 0
      %3941 = vmatprep.subr.bf16.mxu0 0
      %3942 = vmatpush1.bf16.msra.mxu0 0
      %3943 = vmatprep.subr.bf16.mxu0 0
      %3944 = vmatpush1.bf16.msra.mxu0 0
      %3945 = vmatprep.subr.bf16.mxu0 0
      %3946 = vmatpush1.bf16.msra.mxu0 %v3929
      %3947 = vmatprep.subr.bf16.mxu0 0
      %3948 = vmatpush2.bf16.msra.mxu0 0
      %3949 = vmatprep.subr.bf16.mxu0 0
      %3950 = vmatpush2.bf16.msra.mxu0 0
      %3951 = vmatprep.subr.bf16.mxu0 0
      %3952 = vmatpush2.bf16.msra.mxu0 0
      %3953 = vmatprep.subr.bf16.mxu0 0
      %3954 = vmatpush2.bf16.msra.mxu0 0
      %3955 = vmatprep.subr.bf16.mxu0 0
      %3956 = vmatpush2.bf16.msra.mxu0 0
      %3957 = vmatprep.subr.bf16.mxu0 0
      %3958 = vmatpush2.bf16.msra.mxu0 0
      %3959 = vmatprep.subr.bf16.mxu0 0
      %3960 = vmatpush2.bf16.msra.mxu0 0
      %3961 = vmatprep.subr.bf16.mxu0 0
      %3962 = vmatpush2.bf16.msra.mxu0 0
      %3963 = vmatprep.mubr.bf16.mxu0 0
      %3964 = vmatmul.mubr.bf16.gmra.mxu0 %v3151
      %v3965 = vpop.f32.mrf.mxu0
      %v3966 = vadd.f32 0.0, %v3965
      %v3967 = vpop.f32.mrf.mxu0
      %v3968 = vpop.f32.mrf.mxu0
      %v3969 = vadd.f32 0.0, %v3968
      %v3970 = vpop.f32.mrf.mxu0
      %3971 = vmatprep.mubr.bf16.mxu0 0
      %3972 = vmatmul.mubr.bf16.gmra.mxu0 %v3154
      %v3973 = vpop.f32.mrf.mxu0
      %v3974 = vadd.f32 0.0, %v3973
      %v3975 = vpop.f32.mrf.mxu0
      %v3976 = vpop.f32.mrf.mxu0
      %v3977 = vadd.f32 0.0, %v3976
      %v3978 = vpop.f32.mrf.mxu0
      %3979 = vmatprep.mubr.bf16.mxu0 0
      %3980 = vmatmul.mubr.bf16.gmra.mxu0 %v3157
      %v3981 = vpop.f32.mrf.mxu0
      %v3982 = vadd.f32 0.0, %v3981
      %v3983 = vpop.f32.mrf.mxu0
      %v3984 = vpop.f32.mrf.mxu0
      %v3985 = vadd.f32 0.0, %v3984
      %v3986 = vpop.f32.mrf.mxu0
      %3987 = vmatprep.mubr.bf16.mxu0 0
      %3988 = vmatmul.mubr.bf16.gmra.mxu0 %v3926
      %v3989 = vpop.f32.mrf.mxu0
      %v3990 = vadd.f32 0.0, %v3989
      %v3991 = vpop.f32.mrf.mxu0
      %v3992 = vpop.f32.mrf.mxu0
      %v3993 = vadd.f32 0.0, %v3992
      %v3994 = vpop.f32.mrf.mxu0
      %3995 = vdwg.mxu0
      %v3996 = vadd.f32 %v3915, %v3966
      %v3997 = vadd.f32 %v3916, %v3969
      %v3998 = vadd.f32 %v3917, %v3974
      %v3999 = vadd.f32 %v3918, %v3977
      %v4000 = vadd.f32 %v3919, %v3982
      %v4001 = vadd.f32 %v3920, %v3985
      %v4002 = vadd.f32 %v3921, %v3990
      %v4003 = vadd.f32 %v3922, %v3993
      %v4004 = vpack.c.bf16 %v3997, %v3996
      %v4005 = vpack.c.bf16 %v3999, %v3998
      %v4006 = vpack.c.bf16 %v4001, %v4000
      %v4007 = vpack.c.bf16 %v4003, %v4002
      %v4012 = vunpack.c.l.b16 %v4004
      %v4013 = vunpack.c.h.b16 %v4004
      %v4014 = vunpack.c.l.b16 %v4005
      %v4015 = vunpack.c.h.b16 %v4005
      %v4016 = vunpack.c.l.b16 %v4006
      %v4017 = vunpack.c.h.b16 %v4006
      %v4018 = vunpack.c.l.b16 %v4007
      %v4019 = vunpack.c.h.b16 %v4007
      %v4020 = vpack.c.b16 %v4012, %v4012
      %v4021 = vpack.c.b16 %v4013, %v4013
      %v4022 = vpack.c.b16 %v4014, %v4014
      %v4023 = vpack.c.b16 %v4015, %v4015
      %v4024 = vpack.c.b16 %v4016, %v4016
      %v4025 = vpack.c.b16 %v4017, %v4017
      %v4026 = vpack.c.b16 %v4018, %v4018
      %v4027 = vpack.c.b16 %v4019, %v4019
      %s4036 = scalar_lea.vmem %s764, 8
      %4037 = vst.msk [vmem:[%s4036] sm:$0xf] %vm3510, %v4020
      %4038 = vst.msk [vmem:[%s4036 + $0x4] sm:$0xf] %vm3510, %v4021
      %4039 = vst.msk [vmem:[%s4036 + $0x10] sm:$0xf] %vm3510, %v4022
      %4040 = vst.msk [vmem:[%s4036 + $0x14] sm:$0xf] %vm3510, %v4023
      %4041 = vst.msk [vmem:[%s4036 + $0x20] sm:$0xf] %vm3510, %v4024
      %4042 = vst.msk [vmem:[%s4036 + $0x24] sm:$0xf] %vm3510, %v4025
      %4043 = vst.msk [vmem:[%s4036 + $0x30] sm:$0xf] %vm3510, %v4026
      %4044 = vst.msk [vmem:[%s4036 + $0x34] sm:$0xf] %vm3510, %v4027
      %s4045 = smul.u32 4, %s29
      %p4046 = scmp.lt.s32.totalorder %s28, 1
      %s4047 = scalar_select %p4046, %s28, 1
      %p4048 = scmp.lt.s32.totalorder %s4045, 15
      %s4049 = scalar_select %p4048, %s4045, 15
      %s4050 = smul.addr %s4049, 4
      %s4051 = smul.addr %s4047, 64
      %s4052 = sadd.s32 %s4050, %s4051
      %s4053 = smul.addr %s4052, 4
      %s4054 = scalar_lea.vmem %s13, %s4053
      // Predicated region
      $region73: #{upblok_forward.1} parent=71 // pred_check
        %p4055 = pneg %p403
      $region74: #{upblok_forward.1} parent=71 // pred_check_branch
        %4057 = sbr.rel (%p4055) target = $region76
      $region75: #{upblok_forward.1} parent=71 // pred_region
        %s4058 = smul.u32 4, %s29
      $region76: #{upblok_forward.1} parent=71 // pred_fallthru
        _
    $region72: #{upblok_forward.1} parent=5 // pred_fallthru
      _
    %p4059 = scmp.le.s32.totalorder 2, %s19
    // Predicated region
    $region77: #{upblok_forward.1} parent=5 // pred_check
      %p4060 = pneg %p4059
    $region78: #{upblok_forward.1} parent=5 // pred_check_branch
      %4062 = sbr.rel (%p4060) target = $region80
    $region79: #{upblok_forward.1} parent=5 // pred_region
      %s4063 = ssub.s32 %s19, 2
      // Predicated region
      $region81: #{upblok_forward.1} parent=79 // pred_check
        %p4064 = pneg %p409
      $region82: #{upblok_forward.1} parent=79 // pred_check_branch
        %4066 = sbr.rel (%p4064) target = $region84
      $region83: #{upblok_forward.1} parent=79 // pred_region
        %s4067 = smul.u32 4, %s31
        %p4068 = scmp.lt.s32.totalorder %s30, 1
        %s4069 = scalar_select %p4068, %s30, 1
        %p4070 = scmp.lt.s32.totalorder %s4067, 15
        %s4071 = scalar_select %p4070, %s4067, 15
        %s4072 = smul.addr %s4071, 4
        %s4073 = smul.addr %s4069, 64
        %s4074 = sadd.s32 %s4072, %s4073
        %s4075 = smul.addr %s4074, 4
        %s4076 = scalar_lea.vmem %s13, %s4075
      $region84: #{upblok_forward.1} parent=79 // pred_fallthru
        _
    $region80: #{upblok_forward.1} parent=5 // pred_fallthru
      _
  $region6: #{upblok_forward.1} parent=0 // loop_footer
    %s23 = sadd.s32 1, %s19
  $region7: #{upblok_forward.1} parent=0 // loop_footer_branch
    %18 = sbr.rel target = $region3
  $region8: #{upblok_forward.1} parent=0 // loop_exit
    _

</llo_original>
